<compile_context>
chip_gen: v6e
topology: v6e:2x2x1
jax: 0.10.0
libtpu: 0.0.40
codegen_flags: <defaults>
</compile_context>

<pallas_src>
import functools

import jax
import jax.numpy as jnp
from jax import lax
from jax.experimental import pallas as pl
from jax.experimental.pallas import tpu as pltpu


# ----------------------------------------------------------------------------
# Pallas kernel: one ConvTranspose2d layer as a single matmul + fused epilogue.
# ----------------------------------------------------------------------------
def _deconv_matmul_kernel(w_ref, p_ref, b_ref, o_ref, *, activation):
    """Shapes per grid step:
      w_ref: (COUT, K*K*CIN)   spatially-flipped, tap-major weight matrix
      p_ref: (K*K*CIN, TM)     lane-dense im2col patches (TM multiple of 128)
      b_ref: (COUT, 1)         bias
      o_ref: (COUT, TM)        lane-dense output tile (full-width stores)
    """
    acc = jnp.dot(w_ref[...], p_ref[...], preferred_element_type=jnp.float32)
    acc = acc + b_ref[...]
    if activation == "relu":
        acc = jnp.maximum(acc, 0.0)
    elif activation == "tanh":
        acc = jnp.tanh(acc)
    elif activation != "identity":
        raise ValueError(f"unknown activation {activation}")
    o_ref[...] = acc.astype(o_ref.dtype)


# ----------------------------------------------------------------------------
# ConvTranspose2d layer (PyTorch semantics) in CNHW layout
# ----------------------------------------------------------------------------
def conv_transpose2d_cnhw(x, w, b, *, stride, padding, output_padding,
                          activation):
    """x: [CIN, N, H, W] (CNHW); w: [CIN, COUT, K, K] (PyTorch layout).
    Returns [COUT, N, OH, OW] (CNHW)."""
    CIN, N, H, W = x.shape
    _, COUT, K, _ = w.shape
    s, p, op = stride, padding, output_padding
    OH = (H - 1) * s - 2 * p + K + op
    OW = (W - 1) * s - 2 * p + K + op

    lo = K - 1 - p
    hi = K - 1 - p + op
    if lo < 0 or hi < 0:
        # TODO(synk): padding > kernel_size - 1 needs output cropping instead.
        raise NotImplementedError("padding > kernel_size - 1 not supported")

    # Zero-dilate (interior padding) + edge-pad in ONE fused XLA pad op.
    xp = lax.pad(x, jnp.array(0.0, x.dtype),
                 ((0, 0, 0), (0, 0, 0), (lo, hi, s - 1), (lo, hi, s - 1)))

    # Lane-dense im2col: (K*K*CIN, N*OH*OW). Batch folds into the lane dim
    # because the layout is CNHW (trailing N, OH, OW collapse for free).
    M = N * OH * OW
    KKC = K * K * CIN
    taps = [xp[:, :, kh:kh + OH, kw:kw + OW]
            for kh in range(K) for kw in range(K)]
    patches = jnp.stack(taps, axis=0).reshape(KKC, M)

    # Weight matrix (COUT, K*K*CIN), tap-major to match the patches rows:
    #   wmat[co, (kh*K+kw)*CIN + ci] = w[ci, co, K-1-kh, K-1-kw]
    wmat = jnp.flip(w, axis=(2, 3)).transpose(2, 3, 0, 1).reshape(KKC, COUT).T
    b2 = b.reshape(COUT, 1)

    # 2-way parallel split of the lane dimension M (one fat block per v7x TC;
    # each half stays a multiple of 128 lanes -> unmasked stores).
    G = 2 if (M % 256 == 0) else 1
    TM = M // G

    cost = pl.CostEstimate(
        flops=2 * COUT * KKC * M,
        transcendentals=(COUT * M if activation == "tanh" else 0),
        bytes_accessed=4 * (KKC * M + COUT * KKC + COUT + COUT * M),
    )

    out = pl.pallas_call(
        functools.partial(_deconv_matmul_kernel, activation=activation),
        out_shape=jax.ShapeDtypeStruct((COUT, M), x.dtype),
        grid=(G,),
        in_specs=[
            pl.BlockSpec((COUT, KKC), lambda g: (0, 0)),
            pl.BlockSpec((KKC, TM), lambda g: (0, g)),
            pl.BlockSpec((COUT, 1), lambda g: (0, 0)),
        ],
        out_specs=pl.BlockSpec((COUT, TM), lambda g: (0, g)),
        compiler_params=pltpu.CompilerParams(
            dimension_semantics=("parallel",)),
        cost_estimate=cost,
    )(wmat, patches, b2)

    # Free reshape (no transpose): (COUT, N*OH*OW) -> (COUT, N, OH, OW).
    return out.reshape(COUT, N, OH, OW)


# ----------------------------------------------------------------------------
# ConvTransposeNet forward (NCHW in / NCHW out; CNHW internally)
# ----------------------------------------------------------------------------
def conv_transpose_net(x, params, strides, paddings, output_paddings,
                       activations):
    y = x.transpose(1, 0, 2, 3)  # NCHW -> CNHW (tiny, one-time)
    for (w, b), s, p, op, act in zip(params, strides, paddings,
                                     output_paddings, activations):
        y = conv_transpose2d_cnhw(y, w, b, stride=s, padding=p,
                                  output_padding=op, activation=act)
    return y.transpose(1, 0, 2, 3)  # CNHW -> NCHW (single tiny transpose)


# ----------------------------------------------------------------------------
# Pure-XLA reference (for the correctness check only)
# ----------------------------------------------------------------------------
def _reference_layer(x, w, b, *, stride, padding, output_padding, activation):
    CIN, COUT, K, _ = w.shape
    s, p, op = stride, padding, output_padding
    lo, hi = K - 1 - p, K - 1 - p + op
    w_conv = jnp.flip(w, axis=(2, 3)).transpose(1, 0, 2, 3)  # [COUT, CIN, K, K]
    y = lax.conv_general_dilated(
        x, w_conv, window_strides=(1, 1), padding=((lo, hi), (lo, hi)),
        lhs_dilation=(s, s), dimension_numbers=("NCHW", "OIHW", "NCHW"),
        precision=lax.Precision.HIGHEST)
    y = y + b.reshape(1, COUT, 1, 1)
    if activation == "relu":
        y = jnp.maximum(y, 0.0)
    elif activation == "tanh":
        y = jnp.tanh(y)
    return y


def reference_net(x, params, strides, paddings, output_paddings, activations):
    for (w, b), s, p, op, act in zip(params, strides, paddings,
                                     output_paddings, activations):
        x = _reference_layer(x, w, b, stride=s, padding=p, output_padding=op,
                             activation=act)
    return x


# ----------------------------------------------------------------------------
# Deterministic parameter init (mimics PyTorch U(-1/sqrt(fan), 1/sqrt(fan)))
# ----------------------------------------------------------------------------
def init_params(key, input_size, num_channels, kernel_sizes):
    params = []
    cins = [input_size] + num_channels[:-1]
    for i, (cin, cout, k) in enumerate(zip(cins, num_channels, kernel_sizes)):
        kw_key, kb_key = jax.random.split(jax.random.fold_in(key, i))
        bound = 1.0 / jnp.sqrt(float(cin * k * k))
        w = jax.random.uniform(kw_key, (cin, cout, k, k), jnp.float32,
                               minval=-bound, maxval=bound)
        b = jax.random.uniform(kb_key, (cout,), jnp.float32,
                               minval=-bound, maxval=bound)
        params.append((w, b))
    return params


if __name__ == "__main__":
    # Module config (activations = [ReLU, Tanh])
    input_size = 4
    num_channels = [8, 4]
    kernel_sizes = [3, 3]
    strides = [2, 2]
    paddings = [1, 1]
    output_paddings = [1, 1]
    activations = ["relu", "tanh"]

    key = jax.random.PRNGKey(0)
    k_params, k_x = jax.random.split(key)
    params = init_params(k_params, input_size, num_channels, kernel_sizes)

    # input: NCHW, small shapes
    N, H, W = 2, 16, 16
    x = jax.random.normal(k_x, (N, input_size, H, W), jnp.float32)

    fwd = jax.jit(functools.partial(
        conv_transpose_net,
        strides=strides, paddings=paddings,
        output_paddings=output_paddings, activations=activations))

    out = fwd(x, params)
    jax.block_until_ready(out)

    # [2,4,16,16] -> layer1 (s=2,p=1,op=1,k=3): [2,8,32,32] -> layer2: [2,4,64,64]
    assert out.shape == (2, 4, 64, 64), out.shape

    ref = reference_net(x, params, strides, paddings, output_paddings,
                        activations)
    err = float(jnp.max(jnp.abs(out - ref)))
    assert err < 5e-3, f"max abs error vs reference: {err}"

    print("KERNEL_OK")
</pallas_src>

<mosaic_0001>
module attributes {stable_mosaic.version = 11 : i64} {
  func.func @_deconv_matmul_kernel(%arg0: i32, %arg1: memref<8x36xf32, #tpu.memory_space<vmem>>, %arg2: memref<36x1024xf32, #tpu.memory_space<vmem>>, %arg3: memref<8x1xf32, #tpu.memory_space<vmem>>, %arg4: memref<8x1024xf32, #tpu.memory_space<vmem>>) attributes {dimension_semantics = [#tpu.dimension_semantics<parallel>], iteration_bounds = array<i64: 2>, scalar_prefetch = 0 : i64, scratch_operands = 0 : i64, tpu.core_type = #tpu.core_type<tc>, window_params = [{pipeline_mode = #tpu.pipeline_mode<synchronous>, transform_indices = @transform_0, window_bounds = array<i64: 8, 36>}, {transform_indices = @transform_1, window_bounds = array<i64: 36, 1024>}, {pipeline_mode = #tpu.pipeline_mode<synchronous>, transform_indices = @transform_2, window_bounds = array<i64: 8, 1>}, {transform_indices = @transform_3, window_bounds = array<i64: 8, 1024>}]} {
    %c0 = arith.constant 0 : index
    %c0_0 = arith.constant 0 : index
    %0 = vector.load %arg1[%c0, %c0_0] : memref<8x36xf32, #tpu.memory_space<vmem>>, vector<8x36xf32>
    %c0_1 = arith.constant 0 : index
    %c0_2 = arith.constant 0 : index
    %1 = vector.load %arg2[%c0_1, %c0_2] : memref<36x1024xf32, #tpu.memory_space<vmem>>, vector<36x1024xf32>
    %cst = arith.constant dense<0.000000e+00> : vector<8x1024xf32>
    %2 = tpu.matmul %0, %1, %cst {dimension_numbers = #tpu.dot_dimension_numbers<[1], [0], [0], [1], [0, 0, 1, 1], [], []>} : vector<8x36xf32>, vector<36x1024xf32>, vector<8x1024xf32> -> vector<8x1024xf32>
    %c0_3 = arith.constant 0 : index
    %c0_4 = arith.constant 0 : index
    %3 = vector.load %arg3[%c0_3, %c0_4] : memref<8x1xf32, #tpu.memory_space<vmem>>, vector<8x1xf32>
    %4 = vector.broadcast %3 : vector<8x1xf32> to vector<8x1024xf32>
    %5 = arith.addf %2, %4 : vector<8x1024xf32>
    %cst_5 = arith.constant 0.000000e+00 : f32
    %6 = vector.broadcast %cst_5 : f32 to vector<8x1024xf32>
    %7 = arith.maximumf %5, %6 : vector<8x1024xf32>
    %c0_6 = arith.constant 0 : index
    %c0_7 = arith.constant 0 : index
    %8 = vector.load %arg4[%c0_6, %c0_7] : memref<8x1024xf32, #tpu.memory_space<vmem>>, vector<8x1024xf32>
    tpu.vector_store %arg4[%c0_6, %c0_7], %7 {strides = array<i32>} : memref<8x1024xf32, #tpu.memory_space<vmem>>, vector<8x1024xf32>,
    return
  }
  func.func @transform_0(%arg0: i32) -> (i32, i32) {
    %c0_i32 = arith.constant 0 : i32
    %c0_i32_0 = arith.constant 0 : i32
    %c0_i32_1 = arith.constant 0 : i32
    return %c0_i32, %c0_i32_0 : i32, i32
  }
  func.func @transform_1(%arg0: i32) -> (i32, i32) {
    %c0_i32 = arith.constant 0 : i32
    %c0_i32_0 = arith.constant 0 : i32
    return %c0_i32, %arg0 : i32, i32
  }
  func.func @transform_2(%arg0: i32) -> (i32, i32) {
    %c0_i32 = arith.constant 0 : i32
    %c0_i32_0 = arith.constant 0 : i32
    %c0_i32_1 = arith.constant 0 : i32
    return %c0_i32, %c0_i32_0 : i32, i32
  }
  func.func @transform_3(%arg0: i32) -> (i32, i32) {
    %c0_i32 = arith.constant 0 : i32
    %c0_i32_0 = arith.constant 0 : i32
    return %c0_i32, %arg0 : i32, i32
  }
}

module attributes {stable_mosaic.version = 11 : i64} {
  func.func @_deconv_matmul_kernel(%arg0: i32, %arg1: memref<4x72xf32, #tpu.memory_space<vmem>>, %arg2: memref<72x4096xf32, #tpu.memory_space<vmem>>, %arg3: memref<4x1xf32, #tpu.memory_space<vmem>>, %arg4: memref<4x4096xf32, #tpu.memory_space<vmem>>) attributes {dimension_semantics = [#tpu.dimension_semantics<parallel>], iteration_bounds = array<i64: 2>, scalar_prefetch = 0 : i64, scratch_operands = 0 : i64, tpu.core_type = #tpu.core_type<tc>, window_params = [{pipeline_mode = #tpu.pipeline_mode<synchronous>, transform_indices = @transform_0, window_bounds = array<i64: 4, 72>}, {transform_indices = @transform_1, window_bounds = array<i64: 72, 4096>}, {pipeline_mode = #tpu.pipeline_mode<synchronous>, transform_indices = @transform_2, window_bounds = array<i64: 4, 1>}, {transform_indices = @transform_3, window_bounds = array<i64: 4, 4096>}]} {
    %c0 = arith.constant 0 : index
    %c0_0 = arith.constant 0 : index
    %0 = vector.load %arg1[%c0, %c0_0] : memref<4x72xf32, #tpu.memory_space<vmem>>, vector<4x72xf32>
    %c0_1 = arith.constant 0 : index
    %c0_2 = arith.constant 0 : index
    %1 = vector.load %arg2[%c0_1, %c0_2] : memref<72x4096xf32, #tpu.memory_space<vmem>>, vector<72x4096xf32>
    %cst = arith.constant dense<0.000000e+00> : vector<4x4096xf32>
    %2 = tpu.matmul %0, %1, %cst {dimension_numbers = #tpu.dot_dimension_numbers<[1], [0], [0], [1], [0, 0, 1, 1], [], []>} : vector<4x72xf32>, vector<72x4096xf32>, vector<4x4096xf32> -> vector<4x4096xf32>
    %c0_3 = arith.constant 0 : index
    %c0_4 = arith.constant 0 : index
    %3 = vector.load %arg3[%c0_3, %c0_4] : memref<4x1xf32, #tpu.memory_space<vmem>>, vector<4x1xf32>
    %4 = vector.broadcast %3 : vector<4x1xf32> to vector<4x4096xf32>
    %5 = arith.addf %2, %4 : vector<4x4096xf32>
    %6 = math.tanh %5 : vector<4x4096xf32>
    %c0_5 = arith.constant 0 : index
    %c0_6 = arith.constant 0 : index
    %7 = vector.load %arg4[%c0_5, %c0_6] : memref<4x4096xf32, #tpu.memory_space<vmem>>, vector<4x4096xf32>
    tpu.vector_store %arg4[%c0_5, %c0_6], %6 {strides = array<i32>} : memref<4x4096xf32, #tpu.memory_space<vmem>>, vector<4x4096xf32>,
    return
  }
  func.func @transform_0(%arg0: i32) -> (i32, i32) {
    %c0_i32 = arith.constant 0 : i32
    %c0_i32_0 = arith.constant 0 : i32
    %c0_i32_1 = arith.constant 0 : i32
    return %c0_i32, %c0_i32_0 : i32, i32
  }
  func.func @transform_1(%arg0: i32) -> (i32, i32) {
    %c0_i32 = arith.constant 0 : i32
    %c0_i32_0 = arith.constant 0 : i32
    return %c0_i32, %arg0 : i32, i32
  }
  func.func @transform_2(%arg0: i32) -> (i32, i32) {
    %c0_i32 = arith.constant 0 : i32
    %c0_i32_0 = arith.constant 0 : i32
    %c0_i32_1 = arith.constant 0 : i32
    return %c0_i32, %c0_i32_0 : i32, i32
  }
  func.func @transform_3(%arg0: i32) -> (i32, i32) {
    %c0_i32 = arith.constant 0 : i32
    %c0_i32_0 = arith.constant 0 : i32
    return %c0_i32, %arg0 : i32, i32
  }
}

</mosaic_0001>

<llo_original>
// kernel: conv_transpose_net.2
$region0: #{conv_transpose_net.2}
  #allocation0 [shape = 'u32[]', space=smem, size = 0x4, offset = 0x4, fixed_abs, tag = 'smem constant byte address 0x4 - core index']
  #allocation1 [shape = 'u32[144,128]{1,0:T(1,128)}', space=vmem, size = 0x12000, scoped, tag = 'internal scratch']
  %s0 = inlined_call_operand.vmem [shape: f32[8,36], index: 0, kind: input, shape index: {}]
  %s1 = inlined_call_operand.vmem [shape: f32[36,2048], index: 1, kind: input, shape index: {}]
  %s2 = inlined_call_operand.vmem [shape: f32[8,1], index: 2, kind: input, shape index: {}]
  %s3 = inlined_call_operand.vmem [shape: f32[8,2048], index: 3, kind: output, shape index: {}]
  %s4 = sld [smem:[#allocation0]]
  $region68: #{conv_transpose_net.2} parent=0
    _
  %s6 = ssub.s32 1, %s4
  %s7 = scalar_select 0, %s6, %s4
  $region1: #{conv_transpose_net.2} parent=0
    #allocation2 [shape = 'u8[327680]{0}', space=vmem, size = 0x50000, scoped, tag = 'input window, operand 1']
    loop: start=0, step=1, limit=4
    $region2: #{conv_transpose_net.2} parent=1 // loop_pre_header
      _
    $region3: #{conv_transpose_net.2} parent=1 // loop_header
      %s9 = sphi 0, %s13
      %p10 = scmp.ge.s32.totalorder %s9, 4
      %s17 = sphi 0, %s17
      %s19 = sphi 0, %s17
      %s20 = sphi 0, %s19
      %s34 = sphi 0, %s20
      %s40 = sphi 0, %s42
      %s43 = sphi 0, %s40
      %s44 = sphi 0, %s43
      %s60 = sphi 0, %s44
      %s64 = sphi 0, %s64
      %s66 = sphi 0, %s64
      %s67 = sphi 0, %s66
      %s81 = sphi 0, %s67
      %s87 = sphi 0, %s89
      %s90 = sphi 0, %s87
      %s91 = sphi 0, %s90
      %s107 = sphi 0, %s91
    $region4: #{conv_transpose_net.2} parent=1 // loop_header_branch
      %12 = sbr.rel (%p10) target = $region8
    $region5: #{conv_transpose_net.2} parent=1 // loop_body
      %s14 = ssub.s32 %s9, 1
      %s15 = ssub.s32 %s9, 2
      %s16 = sadd.s32 %s9, 1
      %s18 = sadd.s32 %s17, 1
      %p21 = scmp.eq.s32.totalorder %s9, 1
      %p22 = scmp.ne.s32.totalorder %s17, %s19
      %p23 = scmp.eq.s32.totalorder %s9, 0
      %p24 = por %p22, %p23
      %p25 = scmp.ne.s32.totalorder %s17, %s19
      %p26 = scmp.eq.s32.totalorder %s14, 1
      %p27 = por %p25, %p26
      %p28 = scmp.ne.s32.totalorder %s19, %s20
      %p29 = scmp.eq.s32.totalorder %s14, 0
      %p30 = por %p28, %p29
      %p31 = scmp.ne.s32.totalorder %s19, %s20
      %p32 = scmp.eq.s32.totalorder %s15, 1
      %p33 = por %p31, %p32
      %p35 = scmp.ne.s32.totalorder %s20, %s34
      %p36 = scmp.eq.s32.totalorder %s15, 0
      %p37 = por %p35, %p36
      %s38 = ssub.s32 %s9, %s16
      %p39 = scmp.eq.s32.totalorder %s38, 0
      %s41 = sadd.s32 %s40, 1
      %s42 = scalar_select %p39, %s40, %s41
      %p45 = pneg %p39
      %p46 = scmp.eq.s32.totalorder %s9, 1
      %p47 = por %p45, %p46
      %p48 = scmp.ne.s32.totalorder %s40, %s43
      %p49 = scmp.eq.s32.totalorder %s9, 0
      %p50 = por %p48, %p49
      %p51 = scmp.ne.s32.totalorder %s40, %s43
      %p52 = scmp.eq.s32.totalorder %s14, 1
      %p53 = por %p51, %p52
      %p54 = scmp.ne.s32.totalorder %s43, %s44
      %p55 = scmp.eq.s32.totalorder %s14, 0
      %p56 = por %p54, %p55
      %p57 = scmp.ne.s32.totalorder %s43, %s44
      %p58 = scmp.eq.s32.totalorder %s15, 1
      %p59 = por %p57, %p58
      %p61 = scmp.ne.s32.totalorder %s44, %s60
      %p62 = scmp.eq.s32.totalorder %s15, 0
      %p63 = por %p61, %p62
      %s65 = sadd.s32 %s64, 1
      %p68 = scmp.eq.s32.totalorder %s9, 1
      %p69 = scmp.ne.s32.totalorder %s64, %s66
      %p70 = scmp.eq.s32.totalorder %s9, 0
      %p71 = por %p69, %p70
      %p72 = scmp.ne.s32.totalorder %s64, %s66
      %p73 = scmp.eq.s32.totalorder %s14, 1
      %p74 = por %p72, %p73
      %p75 = scmp.ne.s32.totalorder %s66, %s67
      %p76 = scmp.eq.s32.totalorder %s14, 0
      %p77 = por %p75, %p76
      %p78 = scmp.ne.s32.totalorder %s66, %s67
      %p79 = scmp.eq.s32.totalorder %s15, 1
      %p80 = por %p78, %p79
      %p82 = scmp.ne.s32.totalorder %s67, %s81
      %p83 = scmp.eq.s32.totalorder %s15, 0
      %p84 = por %p82, %p83
      %s85 = ssub.s32 %s9, %s16
      %p86 = scmp.eq.s32.totalorder %s85, 0
      %s88 = sadd.s32 %s87, 1
      %s89 = scalar_select %p86, %s87, %s88
      %p92 = pneg %p86
      %p93 = scmp.eq.s32.totalorder %s9, 1
      %p94 = por %p92, %p93
      %p95 = scmp.ne.s32.totalorder %s87, %s90
      %p96 = scmp.eq.s32.totalorder %s9, 0
      %p97 = por %p95, %p96
      %p98 = scmp.ne.s32.totalorder %s87, %s90
      %p99 = scmp.eq.s32.totalorder %s14, 1
      %p100 = por %p98, %p99
      %p101 = scmp.ne.s32.totalorder %s90, %s91
      %p102 = scmp.eq.s32.totalorder %s14, 0
      %p103 = por %p101, %p102
      %p104 = scmp.ne.s32.totalorder %s90, %s91
      %p105 = scmp.eq.s32.totalorder %s15, 1
      %p106 = por %p104, %p105
      %p108 = scmp.ne.s32.totalorder %s91, %s107
      %p109 = scmp.eq.s32.totalorder %s15, 0
      %p110 = por %p108, %p109
      %p111 = scmp.le.s32.totalorder 1, %s9
      %p112 = scmp.lt.s32.totalorder %s9, 3
      %p113 = pnand %p111, %p112
      %p114 = pneg %p113
      // Predicated region
      $region9: #{conv_transpose_net.2} parent=5 // pred_check
        _
      $region10: #{conv_transpose_net.2} parent=5 // pred_check_branch
        %116 = sbr.rel (%p113) target = $region12
      $region11: #{conv_transpose_net.2} parent=5 // pred_region
        %s117 = ssub.s32 %s9, 1
        // Predicated region
        $region13: #{conv_transpose_net.2} parent=11 // pred_check
          %p118 = pneg %p30
        $region14: #{conv_transpose_net.2} parent=11 // pred_check_branch
          %120 = sbr.rel (%p118) target = $region16
        $region15: #{conv_transpose_net.2} parent=11 // pred_region
          _
        $region16: #{conv_transpose_net.2} parent=11 // pred_fallthru
          _
        // Predicated region
        $region17: #{conv_transpose_net.2} parent=11 // pred_check
          %p121 = pneg %p77
        $region18: #{conv_transpose_net.2} parent=11 // pred_check_branch
          %123 = sbr.rel (%p121) target = $region20
        $region19: #{conv_transpose_net.2} parent=11 // pred_region
          _
        $region20: #{conv_transpose_net.2} parent=11 // pred_fallthru
          _
      $region12: #{conv_transpose_net.2} parent=5 // pred_fallthru
        _
      %p124 = scmp.lt.s32.totalorder %s9, 2
      // Predicated region
      $region21: #{conv_transpose_net.2} parent=5 // pred_check
        %p125 = pneg %p124
      $region22: #{conv_transpose_net.2} parent=5 // pred_check_branch
        %127 = sbr.rel (%p125) target = $region24
      $region23: #{conv_transpose_net.2} parent=5 // pred_region
        // Predicated region
        $region25: #{conv_transpose_net.2} parent=23 // pred_check
          %p128 = pneg %p50
        $region26: #{conv_transpose_net.2} parent=23 // pred_check_branch
          %130 = sbr.rel (%p128) target = $region28
        $region27: #{conv_transpose_net.2} parent=23 // pred_region
          %s131 = sand.u32 %s40, 1
          %s132 = sand.u32 %s40, 1
          %s133 = smul.addr %s132, 320
          %s134 = scalar_lea.vmem [#allocation2], %s133
          %s135 = smul.u32 8, %s9
          %s136 = smul.addr %s135, 8
          %s137 = scalar_lea.vmem %s1, %s136
          // Predicated region
          $region29: #{conv_transpose_net.2} parent=27 // pred_check
            _
          $region30: #{conv_transpose_net.2} parent=27 // pred_check_branch
            %139 = sbr.rel (0) target = $region32
          $region31: #{conv_transpose_net.2} parent=27 // pred_region
            // Predicated region
            $region33: #{conv_transpose_net.2} parent=31 // pred_check
              _
            $region34: #{conv_transpose_net.2} parent=31 // pred_check_branch
              %141 = sbr.rel (0) target = $region36
            $region35: #{conv_transpose_net.2} parent=31 // pred_region
              loop: start=0, step=1, limit=1
              $region37: #{conv_transpose_net.2} parent=35 // loop_pre_header
                _
              $region38: #{conv_transpose_net.2} parent=35 // loop_header
                %s143 = sphi 0, %s147
                %p144 = scmp.ge.s32.totalorder %s143, 1
                %s148 = sphi %s137, %s137
                %s149 = sphi %s134, %s134
              $region39: #{conv_transpose_net.2} parent=35 // loop_header_branch
                %146 = sbr.rel (%p144) target = $region43
              $region40: #{conv_transpose_net.2} parent=35 // loop_body
                %v150 = vld [vmem:[%s148] sm:$0xff]
                %151 = vst [vmem:[%s149] sm:$0xff] %v150
                %v152 = vld [vmem:[%s148 + $0x8] sm:$0xff]
                %153 = vst [vmem:[%s149 + $0x8] sm:$0xff] %v152
                %v154 = vld [vmem:[%s148 + $0x10] sm:$0xff]
                %155 = vst [vmem:[%s149 + $0x10] sm:$0xff] %v154
                %v156 = vld [vmem:[%s148 + $0x18] sm:$0xff]
                %157 = vst [vmem:[%s149 + $0x18] sm:$0xff] %v156
                %v158 = vld [vmem:[%s148 + $0x20] sm:$0xff]
                %159 = vst [vmem:[%s149 + $0x20] sm:$0xff] %v158
                %v160 = vld [vmem:[%s148 + $0x28] sm:$0xff]
                %161 = vst [vmem:[%s149 + $0x28] sm:$0xff] %v160
                %v162 = vld [vmem:[%s148 + $0x30] sm:$0xff]
                %163 = vst [vmem:[%s149 + $0x30] sm:$0xff] %v162
                %v164 = vld [vmem:[%s148 + $0x38] sm:$0xff]
                %165 = vst [vmem:[%s149 + $0x38] sm:$0xff] %v164
                %v166 = vld [vmem:[%s148 + $0x80] sm:$0xff]
                %167 = vst [vmem:[%s149 + $0x40] sm:$0xff] %v166
                %v168 = vld [vmem:[%s148 + $0x88] sm:$0xff]
                %169 = vst [vmem:[%s149 + $0x48] sm:$0xff] %v168
                %v170 = vld [vmem:[%s148 + $0x90] sm:$0xff]
                %171 = vst [vmem:[%s149 + $0x50] sm:$0xff] %v170
                %v172 = vld [vmem:[%s148 + $0x98] sm:$0xff]
                %173 = vst [vmem:[%s149 + $0x58] sm:$0xff] %v172
                %v174 = vld [vmem:[%s148 + $0xa0] sm:$0xff]
                %175 = vst [vmem:[%s149 + $0x60] sm:$0xff] %v174
                %v176 = vld [vmem:[%s148 + $0xa8] sm:$0xff]
                %177 = vst [vmem:[%s149 + $0x68] sm:$0xff] %v176
                %v178 = vld [vmem:[%s148 + $0xb0] sm:$0xff]
                %179 = vst [vmem:[%s149 + $0x70] sm:$0xff] %v178
                %v180 = vld [vmem:[%s148 + $0xb8] sm:$0xff]
                %181 = vst [vmem:[%s149 + $0x78] sm:$0xff] %v180
                %v182 = vld [vmem:[%s148 + $0x100] sm:$0xff]
                %183 = vst [vmem:[%s149 + $0x80] sm:$0xff] %v182
                %v184 = vld [vmem:[%s148 + $0x108] sm:$0xff]
                %185 = vst [vmem:[%s149 + $0x88] sm:$0xff] %v184
                %v186 = vld [vmem:[%s148 + $0x110] sm:$0xff]
                %187 = vst [vmem:[%s149 + $0x90] sm:$0xff] %v186
                %v188 = vld [vmem:[%s148 + $0x118] sm:$0xff]
                %189 = vst [vmem:[%s149 + $0x98] sm:$0xff] %v188
                %v190 = vld [vmem:[%s148 + $0x120] sm:$0xff]
                %191 = vst [vmem:[%s149 + $0xa0] sm:$0xff] %v190
                %v192 = vld [vmem:[%s148 + $0x128] sm:$0xff]
                %193 = vst [vmem:[%s149 + $0xa8] sm:$0xff] %v192
                %v194 = vld [vmem:[%s148 + $0x130] sm:$0xff]
                %195 = vst [vmem:[%s149 + $0xb0] sm:$0xff] %v194
                %v196 = vld [vmem:[%s148 + $0x138] sm:$0xff]
                %197 = vst [vmem:[%s149 + $0xb8] sm:$0xff] %v196
                %v198 = vld [vmem:[%s148 + $0x180] sm:$0xff]
                %199 = vst [vmem:[%s149 + $0xc0] sm:$0xff] %v198
                %v200 = vld [vmem:[%s148 + $0x188] sm:$0xff]
                %201 = vst [vmem:[%s149 + $0xc8] sm:$0xff] %v200
                %v202 = vld [vmem:[%s148 + $0x190] sm:$0xff]
                %203 = vst [vmem:[%s149 + $0xd0] sm:$0xff] %v202
                %v204 = vld [vmem:[%s148 + $0x198] sm:$0xff]
                %205 = vst [vmem:[%s149 + $0xd8] sm:$0xff] %v204
                %v206 = vld [vmem:[%s148 + $0x1a0] sm:$0xff]
                %207 = vst [vmem:[%s149 + $0xe0] sm:$0xff] %v206
                %v208 = vld [vmem:[%s148 + $0x1a8] sm:$0xff]
                %209 = vst [vmem:[%s149 + $0xe8] sm:$0xff] %v208
                %v210 = vld [vmem:[%s148 + $0x1b0] sm:$0xff]
                %211 = vst [vmem:[%s149 + $0xf0] sm:$0xff] %v210
                %v212 = vld [vmem:[%s148 + $0x1b8] sm:$0xff]
                %213 = vst [vmem:[%s149 + $0xf8] sm:$0xff] %v212
                %v214 = vld [vmem:[%s148 + $0x200] sm:$0xff]
                %215 = vst [vmem:[%s149 + $0x100] sm:$0xff] %v214
                %v216 = vld [vmem:[%s148 + $0x208] sm:$0xff]
                %217 = vst [vmem:[%s149 + $0x108] sm:$0xff] %v216
                %v218 = vld [vmem:[%s148 + $0x210] sm:$0xff]
                %219 = vst [vmem:[%s149 + $0x110] sm:$0xff] %v218
                %v220 = vld [vmem:[%s148 + $0x218] sm:$0xff]
                %221 = vst [vmem:[%s149 + $0x118] sm:$0xff] %v220
                %v222 = vld [vmem:[%s148 + $0x220] sm:$0xff]
                %223 = vst [vmem:[%s149 + $0x120] sm:$0xff] %v222
                %v224 = vld [vmem:[%s148 + $0x228] sm:$0xff]
                %225 = vst [vmem:[%s149 + $0x128] sm:$0xff] %v224
                %v226 = vld [vmem:[%s148 + $0x230] sm:$0xff]
                %227 = vst [vmem:[%s149 + $0x130] sm:$0xff] %v226
                %v228 = vld [vmem:[%s148 + $0x238] sm:$0xff]
                %229 = vst [vmem:[%s149 + $0x138] sm:$0xff] %v228
              $region41: #{conv_transpose_net.2} parent=35 // loop_footer
                %s147 = sadd.s32 1, %s143
              $region42: #{conv_transpose_net.2} parent=35 // loop_footer_branch
                %142 = sbr.rel target = $region38
              $region43: #{conv_transpose_net.2} parent=35 // loop_exit
                _
            $region36: #{conv_transpose_net.2} parent=31 // pred_fallthru
              _
            // Predicated region
            $region44: #{conv_transpose_net.2} parent=31 // pred_check
              _
            $region45: #{conv_transpose_net.2} parent=31 // pred_check_branch
              %231 = sbr.rel target = $region47
            $region46: #{conv_transpose_net.2} parent=31 // pred_region
              _
            $region47: #{conv_transpose_net.2} parent=31 // pred_fallthru
              _
          $region32: #{conv_transpose_net.2} parent=27 // pred_fallthru
            _
          %232 = vnop
        $region28: #{conv_transpose_net.2} parent=23 // pred_fallthru
          _
      $region24: #{conv_transpose_net.2} parent=5 // pred_fallthru
        _
      %p233 = scmp.le.s32.totalorder 1, %s9
      %p234 = scmp.lt.s32.totalorder %s9, 3
      %p235 = pnand %p233, %p234
      %p236 = pneg %p235
      // Predicated region
      $region48: #{conv_transpose_net.2} parent=5 // pred_check
        _
      $region49: #{conv_transpose_net.2} parent=5 // pred_check_branch
        %238 = sbr.rel (%p235) target = $region51
      $region50: #{conv_transpose_net.2} parent=5 // pred_region
        %s239 = ssub.s32 %s9, 1
        %s240 = sand.u32 %s43, 1
        %s241 = sand.u32 %s43, 1
        %s242 = smul.addr %s241, 320
        %s243 = scalar_lea.vmem [#allocation2], %s242
        // Predicated region
        $region52: #{conv_transpose_net.2} parent=50 // pred_check
          %p244 = pneg %p56
        $region53: #{conv_transpose_net.2} parent=50 // pred_check_branch
          %246 = sbr.rel (%p244) target = $region55
        $region54: #{conv_transpose_net.2} parent=50 // pred_region
          _
        $region55: #{conv_transpose_net.2} parent=50 // pred_fallthru
          _
        %p247 = pneg %p30
        %p248 = pneg %p27
        %s249 = sand.u32 %s43, 1
        %s250 = sand.u32 %s43, 1
        %s251 = smul.addr %s250, 320
        %s252 = scalar_lea.vmem [#allocation2], %s251
        %p253 = pneg %p56
        %p254 = pneg %p53
        %p255 = pneg %p77
        %p256 = pneg %p74
        %p257 = pneg %p103
        %p258 = pneg %p100
        %s259 = smul.u32 8, %s14
        %p260 = scmp.lt.s32.totalorder %s259, 15
        %s261 = scalar_select %p260, %s259, 15
        %s262 = smul.addr %s261, 8
        %s263 = scalar_lea.vmem %s3, %s262
        %s264 = smul.u32 8, %s14
        %s265 = smul.u32 8, %s14
        %p266 = scmp.lt.s32.totalorder %s265, 15
        %s267 = scalar_select %p266, %s265, 15
        %s268 = smul.addr %s267, 8
        %s269 = scalar_lea.vmem %s3, %s268
        %s270 = smul.u32 8, %s14
        %v271 = vld [vmem:[%s0] sm:$0xff]
        %v272 = vld [vmem:[%s243] sm:$0xff]
        %v273 = vld [vmem:[%s243 + $0x8] sm:$0xff]
        %v274 = vld [vmem:[%s243 + $0x10] sm:$0xff]
        %v275 = vld [vmem:[%s243 + $0x18] sm:$0xff]
        %v276 = vld [vmem:[%s243 + $0x20] sm:$0xff]
        %v277 = vld [vmem:[%s243 + $0x28] sm:$0xff]
        %v278 = vld [vmem:[%s243 + $0x30] sm:$0xff]
        %v279 = vld [vmem:[%s243 + $0x38] sm:$0xff]
        %v280 = vld [vmem:[%s243 + $0x40] sm:$0xff]
        %v281 = vld [vmem:[%s243 + $0x48] sm:$0xff]
        %v282 = vld [vmem:[%s243 + $0x50] sm:$0xff]
        %v283 = vld [vmem:[%s243 + $0x58] sm:$0xff]
        %v284 = vld [vmem:[%s243 + $0x60] sm:$0xff]
        %v285 = vld [vmem:[%s243 + $0x68] sm:$0xff]
        %v286 = vld [vmem:[%s243 + $0x70] sm:$0xff]
        %v287 = vld [vmem:[%s243 + $0x78] sm:$0xff]
        %v288 = vld [vmem:[%s243 + $0x80] sm:$0xff]
        %v289 = vld [vmem:[%s243 + $0x88] sm:$0xff]
        %v290 = vld [vmem:[%s243 + $0x90] sm:$0xff]
        %v291 = vld [vmem:[%s243 + $0x98] sm:$0xff]
        %v292 = vld [vmem:[%s243 + $0xa0] sm:$0xff]
        %v293 = vld [vmem:[%s243 + $0xa8] sm:$0xff]
        %v294 = vld [vmem:[%s243 + $0xb0] sm:$0xff]
        %v295 = vld [vmem:[%s243 + $0xb8] sm:$0xff]
        %v296 = vld [vmem:[%s243 + $0xc0] sm:$0xff]
        %v297 = vld [vmem:[%s243 + $0xc8] sm:$0xff]
        %v298 = vld [vmem:[%s243 + $0xd0] sm:$0xff]
        %v299 = vld [vmem:[%s243 + $0xd8] sm:$0xff]
        %v300 = vld [vmem:[%s243 + $0xe0] sm:$0xff]
        %v301 = vld [vmem:[%s243 + $0xe8] sm:$0xff]
        %v302 = vld [vmem:[%s243 + $0xf0] sm:$0xff]
        %v303 = vld [vmem:[%s243 + $0xf8] sm:$0xff]
        %v304 = vld [vmem:[%s243 + $0x100] sm:$0xf]
        %v305 = vld [vmem:[%s243 + $0x108] sm:$0xf]
        %v306 = vld [vmem:[%s243 + $0x110] sm:$0xf]
        %v307 = vld [vmem:[%s243 + $0x118] sm:$0xf]
        %v308 = vld [vmem:[%s243 + $0x120] sm:$0xf]
        %v309 = vld [vmem:[%s243 + $0x128] sm:$0xf]
        %v310 = vld [vmem:[%s243 + $0x130] sm:$0xf]
        %v311 = vld [vmem:[%s243 + $0x138] sm:$0xf]
        %v312 = vld [vmem:[%s2] sm:$0xff]
        %314 = vset.pattern.permute.xlu0 0
        %315 = vperm.xlu0 %314, %v312
        %v316 = vpop.permute.xlu0 %315
        %vm318 = vcmask 293888
        %v320 = vsel %vm318, %v271, 0
        %vm322 = vcmask 1043456
        %v324 = vsel %vm322, %v304, 0
        %v327 = vsel %vm322, %v305, 0
        %v330 = vsel %vm322, %v306, 0
        %v333 = vsel %vm322, %v307, 0
        %v336 = vsel %vm322, %v308, 0
        %v339 = vsel %vm322, %v309, 0
        %v342 = vsel %vm322, %v310, 0
        %v345 = vsel %vm322, %v311, 0
        %347 = vmatprep.subr.mxu0 0.0
        %348 = vmatpush1.msra.mxu0 0.0
        %349 = vmatprep.subr.mxu0 0.0
        %350 = vmatpush1.msra.mxu0 0.0
        %351 = vmatprep.subr.mxu0 0.0
        %352 = vmatpush1.msra.mxu0 0.0
        %353 = vmatprep.subr.mxu0 0.0
        %354 = vmatpush1.msra.mxu0 0.0
        %355 = vmatprep.subr.mxu0 0.0
        %356 = vmatpush1.msra.mxu0 0.0
        %357 = vmatprep.subr.mxu0 0.0
        %358 = vmatpush1.msra.mxu0 0.0
        %359 = vmatprep.subr.mxu0 0.0
        %360 = vmatpush1.msra.mxu0 0.0
        %361 = vmatprep.subr.mxu0 0.0
        %362 = vmatpush1.msra.mxu0 0.0
        %363 = vmatprep.subr.mxu0 0.0
        %364 = vmatpush1.msra.mxu0 0.0
        %365 = vmatprep.subr.mxu0 0.0
        %366 = vmatpush1.msra.mxu0 0.0
        %367 = vmatprep.subr.mxu0 0.0
        %368 = vmatpush1.msra.mxu0 0.0
        %369 = vmatprep.subr.mxu0 %v327
        %370 = vmatpush1.msra.mxu0 %v324
        %371 = vmatprep.subr.mxu0 %v297
        %372 = vmatpush1.msra.mxu0 %v296
        %373 = vmatprep.subr.mxu0 %v289
        %374 = vmatpush1.msra.mxu0 %v288
        %375 = vmatprep.subr.mxu0 %v281
        %376 = vmatpush1.msra.mxu0 %v280
        %377 = vmatprep.subr.mxu0 %v273
        %378 = vmatpush1.msra.mxu0 %v272
        %379 = vmatprep.subr.mxu0 0.0
        %380 = vmatpush2.msra.mxu0 0.0
        %381 = vmatprep.subr.mxu0 0.0
        %382 = vmatpush2.msra.mxu0 0.0
        %383 = vmatprep.subr.mxu0 0.0
        %384 = vmatpush2.msra.mxu0 0.0
        %385 = vmatprep.subr.mxu0 0.0
        %386 = vmatpush2.msra.mxu0 0.0
        %387 = vmatprep.subr.mxu0 0.0
        %388 = vmatpush2.msra.mxu0 0.0
        %389 = vmatprep.subr.mxu0 0.0
        %390 = vmatpush2.msra.mxu0 0.0
        %391 = vmatprep.subr.mxu0 0.0
        %392 = vmatpush2.msra.mxu0 0.0
        %393 = vmatprep.subr.mxu0 0.0
        %394 = vmatpush2.msra.mxu0 0.0
        %395 = vmatprep.subr.mxu0 0.0
        %396 = vmatpush2.msra.mxu0 0.0
        %397 = vmatprep.subr.mxu0 0.0
        %398 = vmatpush2.msra.mxu0 0.0
        %399 = vmatprep.subr.mxu0 0.0
        %400 = vmatpush2.msra.mxu0 0.0
        %401 = vmatprep.subr.mxu0 0.0
        %402 = vmatpush2.msra.mxu0 0.0
        %403 = vmatprep.subr.mxu0 0.0
        %404 = vmatpush2.msra.mxu0 0.0
        %405 = vmatprep.subr.mxu0 0.0
        %406 = vmatpush2.msra.mxu0 0.0
        %407 = vmatprep.subr.mxu0 0.0
        %408 = vmatpush2.msra.mxu0 0.0
        %409 = vmatprep.subr.mxu0 0.0
        %410 = vmatpush2.msra.mxu0 0.0
        %411 = vmatprep.mubr.f32.mxu0 0.0
        %412 = vmatmul.mubr.f32.gmra.mxu0 %v320
        %v413 = vpop.f32.mrf.mxu0
        %v414 = vadd.f32 %v316, %v413
        %v415 = vpop.f32.mrf.mxu0
        %v416 = vadd.f32 %v316, %v415
        %417 = vdwg.mxu0
        %418 = vmatprep.subr.mxu0 0.0
        %419 = vmatpush1.msra.mxu0 0.0
        %420 = vmatprep.subr.mxu0 0.0
        %421 = vmatpush1.msra.mxu0 0.0
        %422 = vmatprep.subr.mxu0 0.0
        %423 = vmatpush1.msra.mxu0 0.0
        %424 = vmatprep.subr.mxu0 0.0
        %425 = vmatpush1.msra.mxu0 0.0
        %426 = vmatprep.subr.mxu0 0.0
        %427 = vmatpush1.msra.mxu0 0.0
        %428 = vmatprep.subr.mxu0 0.0
        %429 = vmatpush1.msra.mxu0 0.0
        %430 = vmatprep.subr.mxu0 0.0
        %431 = vmatpush1.msra.mxu0 0.0
        %432 = vmatprep.subr.mxu0 0.0
        %433 = vmatpush1.msra.mxu0 0.0
        %434 = vmatprep.subr.mxu0 0.0
        %435 = vmatpush1.msra.mxu0 0.0
        %436 = vmatprep.subr.mxu0 0.0
        %437 = vmatpush1.msra.mxu0 0.0
        %438 = vmatprep.subr.mxu0 0.0
        %439 = vmatpush1.msra.mxu0 0.0
        %440 = vmatprep.subr.mxu0 %v333
        %441 = vmatpush1.msra.mxu0 %v330
        %442 = vmatprep.subr.mxu0 %v299
        %443 = vmatpush1.msra.mxu0 %v298
        %444 = vmatprep.subr.mxu0 %v291
        %445 = vmatpush1.msra.mxu0 %v290
        %446 = vmatprep.subr.mxu0 %v283
        %447 = vmatpush1.msra.mxu0 %v282
        %448 = vmatprep.subr.mxu0 %v275
        %449 = vmatpush1.msra.mxu0 %v274
        %450 = vmatprep.subr.mxu0 0.0
        %451 = vmatpush2.msra.mxu0 0.0
        %452 = vmatprep.subr.mxu0 0.0
        %453 = vmatpush2.msra.mxu0 0.0
        %454 = vmatprep.subr.mxu0 0.0
        %455 = vmatpush2.msra.mxu0 0.0
        %456 = vmatprep.subr.mxu0 0.0
        %457 = vmatpush2.msra.mxu0 0.0
        %458 = vmatprep.subr.mxu0 0.0
        %459 = vmatpush2.msra.mxu0 0.0
        %460 = vmatprep.subr.mxu0 0.0
        %461 = vmatpush2.msra.mxu0 0.0
        %462 = vmatprep.subr.mxu0 0.0
        %463 = vmatpush2.msra.mxu0 0.0
        %464 = vmatprep.subr.mxu0 0.0
        %465 = vmatpush2.msra.mxu0 0.0
        %466 = vmatprep.subr.mxu0 0.0
        %467 = vmatpush2.msra.mxu0 0.0
        %468 = vmatprep.subr.mxu0 0.0
        %469 = vmatpush2.msra.mxu0 0.0
        %470 = vmatprep.subr.mxu0 0.0
        %471 = vmatpush2.msra.mxu0 0.0
        %472 = vmatprep.subr.mxu0 0.0
        %473 = vmatpush2.msra.mxu0 0.0
        %474 = vmatprep.subr.mxu0 0.0
        %475 = vmatpush2.msra.mxu0 0.0
        %476 = vmatprep.subr.mxu0 0.0
        %477 = vmatpush2.msra.mxu0 0.0
        %478 = vmatprep.subr.mxu0 0.0
        %479 = vmatpush2.msra.mxu0 0.0
        %480 = vmatprep.subr.mxu0 0.0
        %481 = vmatpush2.msra.mxu0 0.0
        %482 = vmatprep.mubr.f32.mxu0 0.0
        %483 = vmatmul.mubr.f32.gmra.mxu0 %v320
        %v484 = vpop.f32.mrf.mxu0
        %v485 = vadd.f32 %v316, %v484
        %v486 = vpop.f32.mrf.mxu0
        %v487 = vadd.f32 %v316, %v486
        %488 = vdwg.mxu0
        %489 = vmatprep.subr.mxu0 0.0
        %490 = vmatpush1.msra.mxu0 0.0
        %491 = vmatprep.subr.mxu0 0.0
        %492 = vmatpush1.msra.mxu0 0.0
        %493 = vmatprep.subr.mxu0 0.0
        %494 = vmatpush1.msra.mxu0 0.0
        %495 = vmatprep.subr.mxu0 0.0
        %496 = vmatpush1.msra.mxu0 0.0
        %497 = vmatprep.subr.mxu0 0.0
        %498 = vmatpush1.msra.mxu0 0.0
        %499 = vmatprep.subr.mxu0 0.0
        %500 = vmatpush1.msra.mxu0 0.0
        %501 = vmatprep.subr.mxu0 0.0
        %502 = vmatpush1.msra.mxu0 0.0
        %503 = vmatprep.subr.mxu0 0.0
        %504 = vmatpush1.msra.mxu0 0.0
        %505 = vmatprep.subr.mxu0 0.0
        %506 = vmatpush1.msra.mxu0 0.0
        %507 = vmatprep.subr.mxu0 0.0
        %508 = vmatpush1.msra.mxu0 0.0
        %509 = vmatprep.subr.mxu0 0.0
        %510 = vmatpush1.msra.mxu0 0.0
        %511 = vmatprep.subr.mxu0 %v339
        %512 = vmatpush1.msra.mxu0 %v336
        %513 = vmatprep.subr.mxu0 %v301
        %514 = vmatpush1.msra.mxu0 %v300
        %515 = vmatprep.subr.mxu0 %v293
        %516 = vmatpush1.msra.mxu0 %v292
        %517 = vmatprep.subr.mxu0 %v285
        %518 = vmatpush1.msra.mxu0 %v284
        %519 = vmatprep.subr.mxu0 %v277
        %520 = vmatpush1.msra.mxu0 %v276
        %521 = vmatprep.subr.mxu0 0.0
        %522 = vmatpush2.msra.mxu0 0.0
        %523 = vmatprep.subr.mxu0 0.0
        %524 = vmatpush2.msra.mxu0 0.0
        %525 = vmatprep.subr.mxu0 0.0
        %526 = vmatpush2.msra.mxu0 0.0
        %527 = vmatprep.subr.mxu0 0.0
        %528 = vmatpush2.msra.mxu0 0.0
        %529 = vmatprep.subr.mxu0 0.0
        %530 = vmatpush2.msra.mxu0 0.0
        %531 = vmatprep.subr.mxu0 0.0
        %532 = vmatpush2.msra.mxu0 0.0
        %533 = vmatprep.subr.mxu0 0.0
        %534 = vmatpush2.msra.mxu0 0.0
        %535 = vmatprep.subr.mxu0 0.0
        %536 = vmatpush2.msra.mxu0 0.0
        %537 = vmatprep.subr.mxu0 0.0
        %538 = vmatpush2.msra.mxu0 0.0
        %539 = vmatprep.subr.mxu0 0.0
        %540 = vmatpush2.msra.mxu0 0.0
        %541 = vmatprep.subr.mxu0 0.0
        %542 = vmatpush2.msra.mxu0 0.0
        %543 = vmatprep.subr.mxu0 0.0
        %544 = vmatpush2.msra.mxu0 0.0
        %545 = vmatprep.subr.mxu0 0.0
        %546 = vmatpush2.msra.mxu0 0.0
        %547 = vmatprep.subr.mxu0 0.0
        %548 = vmatpush2.msra.mxu0 0.0
        %549 = vmatprep.subr.mxu0 0.0
        %550 = vmatpush2.msra.mxu0 0.0
        %551 = vmatprep.subr.mxu0 0.0
        %552 = vmatpush2.msra.mxu0 0.0
        %553 = vmatprep.mubr.f32.mxu0 0.0
        %554 = vmatmul.mubr.f32.gmra.mxu0 %v320
        %v555 = vpop.f32.mrf.mxu0
        %v556 = vadd.f32 %v316, %v555
        %v557 = vpop.f32.mrf.mxu0
        %v558 = vadd.f32 %v316, %v557
        %559 = vdwg.mxu0
        %560 = vmatprep.subr.mxu0 0.0
        %561 = vmatpush1.msra.mxu0 0.0
        %562 = vmatprep.subr.mxu0 0.0
        %563 = vmatpush1.msra.mxu0 0.0
        %564 = vmatprep.subr.mxu0 0.0
        %565 = vmatpush1.msra.mxu0 0.0
        %566 = vmatprep.subr.mxu0 0.0
        %567 = vmatpush1.msra.mxu0 0.0
        %568 = vmatprep.subr.mxu0 0.0
        %569 = vmatpush1.msra.mxu0 0.0
        %570 = vmatprep.subr.mxu0 0.0
        %571 = vmatpush1.msra.mxu0 0.0
        %572 = vmatprep.subr.mxu0 0.0
        %573 = vmatpush1.msra.mxu0 0.0
        %574 = vmatprep.subr.mxu0 0.0
        %575 = vmatpush1.msra.mxu0 0.0
        %576 = vmatprep.subr.mxu0 0.0
        %577 = vmatpush1.msra.mxu0 0.0
        %578 = vmatprep.subr.mxu0 0.0
        %579 = vmatpush1.msra.mxu0 0.0
        %580 = vmatprep.subr.mxu0 0.0
        %581 = vmatpush1.msra.mxu0 0.0
        %582 = vmatprep.subr.mxu0 %v345
        %583 = vmatpush1.msra.mxu0 %v342
        %584 = vmatprep.subr.mxu0 %v303
        %585 = vmatpush1.msra.mxu0 %v302
        %586 = vmatprep.subr.mxu0 %v295
        %587 = vmatpush1.msra.mxu0 %v294
        %588 = vmatprep.subr.mxu0 %v287
        %589 = vmatpush1.msra.mxu0 %v286
        %590 = vmatprep.subr.mxu0 %v279
        %591 = vmatpush1.msra.mxu0 %v278
        %592 = vmatprep.subr.mxu0 0.0
        %593 = vmatpush2.msra.mxu0 0.0
        %594 = vmatprep.subr.mxu0 0.0
        %595 = vmatpush2.msra.mxu0 0.0
        %596 = vmatprep.subr.mxu0 0.0
        %597 = vmatpush2.msra.mxu0 0.0
        %598 = vmatprep.subr.mxu0 0.0
        %599 = vmatpush2.msra.mxu0 0.0
        %600 = vmatprep.subr.mxu0 0.0
        %601 = vmatpush2.msra.mxu0 0.0
        %602 = vmatprep.subr.mxu0 0.0
        %603 = vmatpush2.msra.mxu0 0.0
        %604 = vmatprep.subr.mxu0 0.0
        %605 = vmatpush2.msra.mxu0 0.0
        %606 = vmatprep.subr.mxu0 0.0
        %607 = vmatpush2.msra.mxu0 0.0
        %608 = vmatprep.subr.mxu0 0.0
        %609 = vmatpush2.msra.mxu0 0.0
        %610 = vmatprep.subr.mxu0 0.0
        %611 = vmatpush2.msra.mxu0 0.0
        %612 = vmatprep.subr.mxu0 0.0
        %613 = vmatpush2.msra.mxu0 0.0
        %614 = vmatprep.subr.mxu0 0.0
        %615 = vmatpush2.msra.mxu0 0.0
        %616 = vmatprep.subr.mxu0 0.0
        %617 = vmatpush2.msra.mxu0 0.0
        %618 = vmatprep.subr.mxu0 0.0
        %619 = vmatpush2.msra.mxu0 0.0
        %620 = vmatprep.subr.mxu0 0.0
        %621 = vmatpush2.msra.mxu0 0.0
        %622 = vmatprep.subr.mxu0 0.0
        %623 = vmatpush2.msra.mxu0 0.0
        %624 = vmatprep.mubr.f32.mxu0 0.0
        %625 = vmatmul.mubr.f32.gmra.mxu0 %v320
        %v626 = vpop.f32.mrf.mxu0
        %v627 = vadd.f32 %v316, %v626
        %v628 = vpop.f32.mrf.mxu0
        %v629 = vadd.f32 %v316, %v628
        %630 = vdwg.mxu0
        %v631 = vmax.f32 %v414, 0.0
        %v632 = vmax.f32 %v416, 0.0
        %v633 = vmax.f32 %v485, 0.0
        %v634 = vmax.f32 %v487, 0.0
        %v635 = vmax.f32 %v556, 0.0
        %v636 = vmax.f32 %v558, 0.0
        %v637 = vmax.f32 %v627, 0.0
        %v638 = vmax.f32 %v629, 0.0
        %639 = vst [vmem:[%s269] sm:$0xff] %v631
        %640 = vst [vmem:[%s269 + $0x8] sm:$0xff] %v632
        %641 = vst [vmem:[%s269 + $0x10] sm:$0xff] %v633
        %642 = vst [vmem:[%s269 + $0x18] sm:$0xff] %v634
        %643 = vst [vmem:[%s269 + $0x20] sm:$0xff] %v635
        %644 = vst [vmem:[%s269 + $0x28] sm:$0xff] %v636
        %645 = vst [vmem:[%s269 + $0x30] sm:$0xff] %v637
        %646 = vst [vmem:[%s269 + $0x38] sm:$0xff] %v638
        %s647 = smul.u32 8, %s14
        %p648 = scmp.lt.s32.totalorder %s647, 15
        %s649 = scalar_select %p648, %s647, 15
        %s650 = smul.addr %s649, 8
        %s651 = scalar_lea.vmem %s3, %s650
        // Predicated region
        $region56: #{conv_transpose_net.2} parent=50 // pred_check
          %p652 = pneg %p100
        $region57: #{conv_transpose_net.2} parent=50 // pred_check_branch
          %654 = sbr.rel (%p652) target = $region59
        $region58: #{conv_transpose_net.2} parent=50 // pred_region
          %s655 = smul.u32 8, %s14
        $region59: #{conv_transpose_net.2} parent=50 // pred_fallthru
          _
      $region51: #{conv_transpose_net.2} parent=5 // pred_fallthru
        _
      %p656 = scmp.le.s32.totalorder 2, %s9
      // Predicated region
      $region60: #{conv_transpose_net.2} parent=5 // pred_check
        %p657 = pneg %p656
      $region61: #{conv_transpose_net.2} parent=5 // pred_check_branch
        %659 = sbr.rel (%p657) target = $region63
      $region62: #{conv_transpose_net.2} parent=5 // pred_region
        %s660 = ssub.s32 %s9, 2
        // Predicated region
        $region64: #{conv_transpose_net.2} parent=62 // pred_check
          %p661 = pneg %p106
        $region65: #{conv_transpose_net.2} parent=62 // pred_check_branch
          %663 = sbr.rel (%p661) target = $region67
        $region66: #{conv_transpose_net.2} parent=62 // pred_region
          %s664 = smul.u32 8, %s15
          %p665 = scmp.lt.s32.totalorder %s664, 15
          %s666 = scalar_select %p665, %s664, 15
          %s667 = smul.addr %s666, 8
          %s668 = scalar_lea.vmem %s3, %s667
        $region67: #{conv_transpose_net.2} parent=62 // pred_fallthru
          _
      $region63: #{conv_transpose_net.2} parent=5 // pred_fallthru
        _
    $region6: #{conv_transpose_net.2} parent=1 // loop_footer
      %s13 = sadd.s32 1, %s9
    $region7: #{conv_transpose_net.2} parent=1 // loop_footer_branch
      %8 = sbr.rel target = $region3
    $region8: #{conv_transpose_net.2} parent=1 // loop_exit
      _

// kernel: conv_transpose_net.3
$region0: #{conv_transpose_net.3}
  #allocation0 [shape = 'u32[]', space=smem, size = 0x4, offset = 0x4, fixed_abs, tag = 'smem constant byte address 0x4 - core index']
  #allocation1 [shape = 'u32[144,128]{1,0:T(1,128)}', space=vmem, size = 0x12000, scoped, tag = 'internal scratch']
  %s0 = inlined_call_operand.vmem [shape: f32[4,72], index: 0, kind: input, shape index: {}]
  %s1 = inlined_call_operand.vmem [shape: f32[72,8192], index: 1, kind: input, shape index: {}]
  %s2 = inlined_call_operand.vmem [shape: f32[4,1], index: 2, kind: input, shape index: {}]
  %s3 = inlined_call_operand.vmem [shape: f32[4,8192], index: 3, kind: output, shape index: {}]
  %s4 = sld [smem:[#allocation0]]
  $region68: #{conv_transpose_net.3} parent=0
    _
  %s6 = ssub.s32 1, %s4
  %s7 = scalar_select 0, %s6, %s4
  $region1: #{conv_transpose_net.3} parent=0
    #allocation2 [shape = 'u8[2359296]{0}', space=vmem, size = 0x240000, scoped, tag = 'input window, operand 1']
    loop: start=0, step=1, limit=4
    $region2: #{conv_transpose_net.3} parent=1 // loop_pre_header
      _
    $region3: #{conv_transpose_net.3} parent=1 // loop_header
      %s9 = sphi 0, %s13
      %p10 = scmp.ge.s32.totalorder %s9, 4
      %s17 = sphi 0, %s17
      %s19 = sphi 0, %s17
      %s20 = sphi 0, %s19
      %s34 = sphi 0, %s20
      %s40 = sphi 0, %s42
      %s43 = sphi 0, %s40
      %s44 = sphi 0, %s43
      %s60 = sphi 0, %s44
      %s64 = sphi 0, %s64
      %s66 = sphi 0, %s64
      %s67 = sphi 0, %s66
      %s81 = sphi 0, %s67
      %s87 = sphi 0, %s89
      %s90 = sphi 0, %s87
      %s91 = sphi 0, %s90
      %s107 = sphi 0, %s91
    $region4: #{conv_transpose_net.3} parent=1 // loop_header_branch
      %12 = sbr.rel (%p10) target = $region8
    $region5: #{conv_transpose_net.3} parent=1 // loop_body
      %s14 = ssub.s32 %s9, 1
      %s15 = ssub.s32 %s9, 2
      %s16 = sadd.s32 %s9, 1
      %s18 = sadd.s32 %s17, 1
      %p21 = scmp.eq.s32.totalorder %s9, 1
      %p22 = scmp.ne.s32.totalorder %s17, %s19
      %p23 = scmp.eq.s32.totalorder %s9, 0
      %p24 = por %p22, %p23
      %p25 = scmp.ne.s32.totalorder %s17, %s19
      %p26 = scmp.eq.s32.totalorder %s14, 1
      %p27 = por %p25, %p26
      %p28 = scmp.ne.s32.totalorder %s19, %s20
      %p29 = scmp.eq.s32.totalorder %s14, 0
      %p30 = por %p28, %p29
      %p31 = scmp.ne.s32.totalorder %s19, %s20
      %p32 = scmp.eq.s32.totalorder %s15, 1
      %p33 = por %p31, %p32
      %p35 = scmp.ne.s32.totalorder %s20, %s34
      %p36 = scmp.eq.s32.totalorder %s15, 0
      %p37 = por %p35, %p36
      %s38 = ssub.s32 %s9, %s16
      %p39 = scmp.eq.s32.totalorder %s38, 0
      %s41 = sadd.s32 %s40, 1
      %s42 = scalar_select %p39, %s40, %s41
      %p45 = pneg %p39
      %p46 = scmp.eq.s32.totalorder %s9, 1
      %p47 = por %p45, %p46
      %p48 = scmp.ne.s32.totalorder %s40, %s43
      %p49 = scmp.eq.s32.totalorder %s9, 0
      %p50 = por %p48, %p49
      %p51 = scmp.ne.s32.totalorder %s40, %s43
      %p52 = scmp.eq.s32.totalorder %s14, 1
      %p53 = por %p51, %p52
      %p54 = scmp.ne.s32.totalorder %s43, %s44
      %p55 = scmp.eq.s32.totalorder %s14, 0
      %p56 = por %p54, %p55
      %p57 = scmp.ne.s32.totalorder %s43, %s44
      %p58 = scmp.eq.s32.totalorder %s15, 1
      %p59 = por %p57, %p58
      %p61 = scmp.ne.s32.totalorder %s44, %s60
      %p62 = scmp.eq.s32.totalorder %s15, 0
      %p63 = por %p61, %p62
      %s65 = sadd.s32 %s64, 1
      %p68 = scmp.eq.s32.totalorder %s9, 1
      %p69 = scmp.ne.s32.totalorder %s64, %s66
      %p70 = scmp.eq.s32.totalorder %s9, 0
      %p71 = por %p69, %p70
      %p72 = scmp.ne.s32.totalorder %s64, %s66
      %p73 = scmp.eq.s32.totalorder %s14, 1
      %p74 = por %p72, %p73
      %p75 = scmp.ne.s32.totalorder %s66, %s67
      %p76 = scmp.eq.s32.totalorder %s14, 0
      %p77 = por %p75, %p76
      %p78 = scmp.ne.s32.totalorder %s66, %s67
      %p79 = scmp.eq.s32.totalorder %s15, 1
      %p80 = por %p78, %p79
      %p82 = scmp.ne.s32.totalorder %s67, %s81
      %p83 = scmp.eq.s32.totalorder %s15, 0
      %p84 = por %p82, %p83
      %s85 = ssub.s32 %s9, %s16
      %p86 = scmp.eq.s32.totalorder %s85, 0
      %s88 = sadd.s32 %s87, 1
      %s89 = scalar_select %p86, %s87, %s88
      %p92 = pneg %p86
      %p93 = scmp.eq.s32.totalorder %s9, 1
      %p94 = por %p92, %p93
      %p95 = scmp.ne.s32.totalorder %s87, %s90
      %p96 = scmp.eq.s32.totalorder %s9, 0
      %p97 = por %p95, %p96
      %p98 = scmp.ne.s32.totalorder %s87, %s90
      %p99 = scmp.eq.s32.totalorder %s14, 1
      %p100 = por %p98, %p99
      %p101 = scmp.ne.s32.totalorder %s90, %s91
      %p102 = scmp.eq.s32.totalorder %s14, 0
      %p103 = por %p101, %p102
      %p104 = scmp.ne.s32.totalorder %s90, %s91
      %p105 = scmp.eq.s32.totalorder %s15, 1
      %p106 = por %p104, %p105
      %p108 = scmp.ne.s32.totalorder %s91, %s107
      %p109 = scmp.eq.s32.totalorder %s15, 0
      %p110 = por %p108, %p109
      %p111 = scmp.le.s32.totalorder 1, %s9
      %p112 = scmp.lt.s32.totalorder %s9, 3
      %p113 = pnand %p111, %p112
      %p114 = pneg %p113
      // Predicated region
      $region9: #{conv_transpose_net.3} parent=5 // pred_check
        _
      $region10: #{conv_transpose_net.3} parent=5 // pred_check_branch
        %116 = sbr.rel (%p113) target = $region12
      $region11: #{conv_transpose_net.3} parent=5 // pred_region
        %s117 = ssub.s32 %s9, 1
        // Predicated region
        $region13: #{conv_transpose_net.3} parent=11 // pred_check
          %p118 = pneg %p30
        $region14: #{conv_transpose_net.3} parent=11 // pred_check_branch
          %120 = sbr.rel (%p118) target = $region16
        $region15: #{conv_transpose_net.3} parent=11 // pred_region
          _
        $region16: #{conv_transpose_net.3} parent=11 // pred_fallthru
          _
        // Predicated region
        $region17: #{conv_transpose_net.3} parent=11 // pred_check
          %p121 = pneg %p77
        $region18: #{conv_transpose_net.3} parent=11 // pred_check_branch
          %123 = sbr.rel (%p121) target = $region20
        $region19: #{conv_transpose_net.3} parent=11 // pred_region
          _
        $region20: #{conv_transpose_net.3} parent=11 // pred_fallthru
          _
      $region12: #{conv_transpose_net.3} parent=5 // pred_fallthru
        _
      %p124 = scmp.lt.s32.totalorder %s9, 2
      // Predicated region
      $region21: #{conv_transpose_net.3} parent=5 // pred_check
        %p125 = pneg %p124
      $region22: #{conv_transpose_net.3} parent=5 // pred_check_branch
        %127 = sbr.rel (%p125) target = $region24
      $region23: #{conv_transpose_net.3} parent=5 // pred_region
        // Predicated region
        $region25: #{conv_transpose_net.3} parent=23 // pred_check
          %p128 = pneg %p50
        $region26: #{conv_transpose_net.3} parent=23 // pred_check_branch
          %130 = sbr.rel (%p128) target = $region28
        $region27: #{conv_transpose_net.3} parent=23 // pred_region
          %s131 = sand.u32 %s40, 1
          %s132 = sand.u32 %s40, 1
          %s133 = smul.addr %s132, 2304
          %s134 = scalar_lea.vmem [#allocation2], %s133
          %s135 = smul.u32 32, %s9
          %s136 = smul.addr %s135, 8
          %s137 = scalar_lea.vmem %s1, %s136
          // Predicated region
          $region29: #{conv_transpose_net.3} parent=27 // pred_check
            _
          $region30: #{conv_transpose_net.3} parent=27 // pred_check_branch
            %139 = sbr.rel (0) target = $region32
          $region31: #{conv_transpose_net.3} parent=27 // pred_region
            // Predicated region
            $region33: #{conv_transpose_net.3} parent=31 // pred_check
              _
            $region34: #{conv_transpose_net.3} parent=31 // pred_check_branch
              %141 = sbr.rel (0) target = $region36
            $region35: #{conv_transpose_net.3} parent=31 // pred_region
              loop: start=0, step=1, limit=1
              $region37: #{conv_transpose_net.3} parent=35 // loop_pre_header
                _
              $region38: #{conv_transpose_net.3} parent=35 // loop_header
                %s143 = sphi 0, %s147
                %p144 = scmp.ge.s32.totalorder %s143, 1
                %s148 = sphi %s137, %s137
                %s149 = sphi %s134, %s134
              $region39: #{conv_transpose_net.3} parent=35 // loop_header_branch
                %146 = sbr.rel (%p144) target = $region43
              $region40: #{conv_transpose_net.3} parent=35 // loop_body
                %v150 = vld [vmem:[%s148] sm:$0xff]
                %151 = vst [vmem:[%s149] sm:$0xff] %v150
                %v152 = vld [vmem:[%s148 + $0x8] sm:$0xff]
                %153 = vst [vmem:[%s149 + $0x8] sm:$0xff] %v152
                %v154 = vld [vmem:[%s148 + $0x10] sm:$0xff]
                %155 = vst [vmem:[%s149 + $0x10] sm:$0xff] %v154
                %v156 = vld [vmem:[%s148 + $0x18] sm:$0xff]
                %157 = vst [vmem:[%s149 + $0x18] sm:$0xff] %v156
                %v158 = vld [vmem:[%s148 + $0x20] sm:$0xff]
                %159 = vst [vmem:[%s149 + $0x20] sm:$0xff] %v158
                %v160 = vld [vmem:[%s148 + $0x28] sm:$0xff]
                %161 = vst [vmem:[%s149 + $0x28] sm:$0xff] %v160
                %v162 = vld [vmem:[%s148 + $0x30] sm:$0xff]
                %163 = vst [vmem:[%s149 + $0x30] sm:$0xff] %v162
                %v164 = vld [vmem:[%s148 + $0x38] sm:$0xff]
                %165 = vst [vmem:[%s149 + $0x38] sm:$0xff] %v164
                %v166 = vld [vmem:[%s148 + $0x40] sm:$0xff]
                %167 = vst [vmem:[%s149 + $0x40] sm:$0xff] %v166
                %v168 = vld [vmem:[%s148 + $0x48] sm:$0xff]
                %169 = vst [vmem:[%s149 + $0x48] sm:$0xff] %v168
                %v170 = vld [vmem:[%s148 + $0x50] sm:$0xff]
                %171 = vst [vmem:[%s149 + $0x50] sm:$0xff] %v170
                %v172 = vld [vmem:[%s148 + $0x58] sm:$0xff]
                %173 = vst [vmem:[%s149 + $0x58] sm:$0xff] %v172
                %v174 = vld [vmem:[%s148 + $0x60] sm:$0xff]
                %175 = vst [vmem:[%s149 + $0x60] sm:$0xff] %v174
                %v176 = vld [vmem:[%s148 + $0x68] sm:$0xff]
                %177 = vst [vmem:[%s149 + $0x68] sm:$0xff] %v176
                %v178 = vld [vmem:[%s148 + $0x70] sm:$0xff]
                %179 = vst [vmem:[%s149 + $0x70] sm:$0xff] %v178
                %v180 = vld [vmem:[%s148 + $0x78] sm:$0xff]
                %181 = vst [vmem:[%s149 + $0x78] sm:$0xff] %v180
                %v182 = vld [vmem:[%s148 + $0x80] sm:$0xff]
                %183 = vst [vmem:[%s149 + $0x80] sm:$0xff] %v182
                %v184 = vld [vmem:[%s148 + $0x88] sm:$0xff]
                %185 = vst [vmem:[%s149 + $0x88] sm:$0xff] %v184
                %v186 = vld [vmem:[%s148 + $0x90] sm:$0xff]
                %187 = vst [vmem:[%s149 + $0x90] sm:$0xff] %v186
                %v188 = vld [vmem:[%s148 + $0x98] sm:$0xff]
                %189 = vst [vmem:[%s149 + $0x98] sm:$0xff] %v188
                %v190 = vld [vmem:[%s148 + $0xa0] sm:$0xff]
                %191 = vst [vmem:[%s149 + $0xa0] sm:$0xff] %v190
                %v192 = vld [vmem:[%s148 + $0xa8] sm:$0xff]
                %193 = vst [vmem:[%s149 + $0xa8] sm:$0xff] %v192
                %v194 = vld [vmem:[%s148 + $0xb0] sm:$0xff]
                %195 = vst [vmem:[%s149 + $0xb0] sm:$0xff] %v194
                %v196 = vld [vmem:[%s148 + $0xb8] sm:$0xff]
                %197 = vst [vmem:[%s149 + $0xb8] sm:$0xff] %v196
                %v198 = vld [vmem:[%s148 + $0xc0] sm:$0xff]
                %199 = vst [vmem:[%s149 + $0xc0] sm:$0xff] %v198
                %v200 = vld [vmem:[%s148 + $0xc8] sm:$0xff]
                %201 = vst [vmem:[%s149 + $0xc8] sm:$0xff] %v200
                %v202 = vld [vmem:[%s148 + $0xd0] sm:$0xff]
                %203 = vst [vmem:[%s149 + $0xd0] sm:$0xff] %v202
                %v204 = vld [vmem:[%s148 + $0xd8] sm:$0xff]
                %205 = vst [vmem:[%s149 + $0xd8] sm:$0xff] %v204
                %v206 = vld [vmem:[%s148 + $0xe0] sm:$0xff]
                %207 = vst [vmem:[%s149 + $0xe0] sm:$0xff] %v206
                %v208 = vld [vmem:[%s148 + $0xe8] sm:$0xff]
                %209 = vst [vmem:[%s149 + $0xe8] sm:$0xff] %v208
                %v210 = vld [vmem:[%s148 + $0xf0] sm:$0xff]
                %211 = vst [vmem:[%s149 + $0xf0] sm:$0xff] %v210
                %v212 = vld [vmem:[%s148 + $0xf8] sm:$0xff]
                %213 = vst [vmem:[%s149 + $0xf8] sm:$0xff] %v212
                %v214 = vld [vmem:[%s148 + $0x200] sm:$0xff]
                %215 = vst [vmem:[%s149 + $0x100] sm:$0xff] %v214
                %v216 = vld [vmem:[%s148 + $0x208] sm:$0xff]
                %217 = vst [vmem:[%s149 + $0x108] sm:$0xff] %v216
                %v218 = vld [vmem:[%s148 + $0x210] sm:$0xff]
                %219 = vst [vmem:[%s149 + $0x110] sm:$0xff] %v218
                %v220 = vld [vmem:[%s148 + $0x218] sm:$0xff]
                %221 = vst [vmem:[%s149 + $0x118] sm:$0xff] %v220
                %v222 = vld [vmem:[%s148 + $0x220] sm:$0xff]
                %223 = vst [vmem:[%s149 + $0x120] sm:$0xff] %v222
                %v224 = vld [vmem:[%s148 + $0x228] sm:$0xff]
                %225 = vst [vmem:[%s149 + $0x128] sm:$0xff] %v224
                %v226 = vld [vmem:[%s148 + $0x230] sm:$0xff]
                %227 = vst [vmem:[%s149 + $0x130] sm:$0xff] %v226
                %v228 = vld [vmem:[%s148 + $0x238] sm:$0xff]
                %229 = vst [vmem:[%s149 + $0x138] sm:$0xff] %v228
                %v230 = vld [vmem:[%s148 + $0x240] sm:$0xff]
                %231 = vst [vmem:[%s149 + $0x140] sm:$0xff] %v230
                %v232 = vld [vmem:[%s148 + $0x248] sm:$0xff]
                %233 = vst [vmem:[%s149 + $0x148] sm:$0xff] %v232
                %v234 = vld [vmem:[%s148 + $0x250] sm:$0xff]
                %235 = vst [vmem:[%s149 + $0x150] sm:$0xff] %v234
                %v236 = vld [vmem:[%s148 + $0x258] sm:$0xff]
                %237 = vst [vmem:[%s149 + $0x158] sm:$0xff] %v236
                %v238 = vld [vmem:[%s148 + $0x260] sm:$0xff]
                %239 = vst [vmem:[%s149 + $0x160] sm:$0xff] %v238
                %v240 = vld [vmem:[%s148 + $0x268] sm:$0xff]
                %241 = vst [vmem:[%s149 + $0x168] sm:$0xff] %v240
                %v242 = vld [vmem:[%s148 + $0x270] sm:$0xff]
                %243 = vst [vmem:[%s149 + $0x170] sm:$0xff] %v242
                %v244 = vld [vmem:[%s148 + $0x278] sm:$0xff]
                %245 = vst [vmem:[%s149 + $0x178] sm:$0xff] %v244
                %v246 = vld [vmem:[%s148 + $0x280] sm:$0xff]
                %247 = vst [vmem:[%s149 + $0x180] sm:$0xff] %v246
                %v248 = vld [vmem:[%s148 + $0x288] sm:$0xff]
                %249 = vst [vmem:[%s149 + $0x188] sm:$0xff] %v248
                %v250 = vld [vmem:[%s148 + $0x290] sm:$0xff]
                %251 = vst [vmem:[%s149 + $0x190] sm:$0xff] %v250
                %v252 = vld [vmem:[%s148 + $0x298] sm:$0xff]
                %253 = vst [vmem:[%s149 + $0x198] sm:$0xff] %v252
                %v254 = vld [vmem:[%s148 + $0x2a0] sm:$0xff]
                %255 = vst [vmem:[%s149 + $0x1a0] sm:$0xff] %v254
                %v256 = vld [vmem:[%s148 + $0x2a8] sm:$0xff]
                %257 = vst [vmem:[%s149 + $0x1a8] sm:$0xff] %v256
                %v258 = vld [vmem:[%s148 + $0x2b0] sm:$0xff]
                %259 = vst [vmem:[%s149 + $0x1b0] sm:$0xff] %v258
                %v260 = vld [vmem:[%s148 + $0x2b8] sm:$0xff]
                %261 = vst [vmem:[%s149 + $0x1b8] sm:$0xff] %v260
                %v262 = vld [vmem:[%s148 + $0x2c0] sm:$0xff]
                %263 = vst [vmem:[%s149 + $0x1c0] sm:$0xff] %v262
                %v264 = vld [vmem:[%s148 + $0x2c8] sm:$0xff]
                %265 = vst [vmem:[%s149 + $0x1c8] sm:$0xff] %v264
                %v266 = vld [vmem:[%s148 + $0x2d0] sm:$0xff]
                %267 = vst [vmem:[%s149 + $0x1d0] sm:$0xff] %v266
                %v268 = vld [vmem:[%s148 + $0x2d8] sm:$0xff]
                %269 = vst [vmem:[%s149 + $0x1d8] sm:$0xff] %v268
                %v270 = vld [vmem:[%s148 + $0x2e0] sm:$0xff]
                %271 = vst [vmem:[%s149 + $0x1e0] sm:$0xff] %v270
                %v272 = vld [vmem:[%s148 + $0x2e8] sm:$0xff]
                %273 = vst [vmem:[%s149 + $0x1e8] sm:$0xff] %v272
                %v274 = vld [vmem:[%s148 + $0x2f0] sm:$0xff]
                %275 = vst [vmem:[%s149 + $0x1f0] sm:$0xff] %v274
                %v276 = vld [vmem:[%s148 + $0x2f8] sm:$0xff]
                %277 = vst [vmem:[%s149 + $0x1f8] sm:$0xff] %v276
                %v278 = vld [vmem:[%s148 + $0x400] sm:$0xff]
                %279 = vst [vmem:[%s149 + $0x200] sm:$0xff] %v278
                %v280 = vld [vmem:[%s148 + $0x408] sm:$0xff]
                %281 = vst [vmem:[%s149 + $0x208] sm:$0xff] %v280
                %v282 = vld [vmem:[%s148 + $0x410] sm:$0xff]
                %283 = vst [vmem:[%s149 + $0x210] sm:$0xff] %v282
                %v284 = vld [vmem:[%s148 + $0x418] sm:$0xff]
                %285 = vst [vmem:[%s149 + $0x218] sm:$0xff] %v284
                %v286 = vld [vmem:[%s148 + $0x420] sm:$0xff]
                %287 = vst [vmem:[%s149 + $0x220] sm:$0xff] %v286
                %v288 = vld [vmem:[%s148 + $0x428] sm:$0xff]
                %289 = vst [vmem:[%s149 + $0x228] sm:$0xff] %v288
                %v290 = vld [vmem:[%s148 + $0x430] sm:$0xff]
                %291 = vst [vmem:[%s149 + $0x230] sm:$0xff] %v290
                %v292 = vld [vmem:[%s148 + $0x438] sm:$0xff]
                %293 = vst [vmem:[%s149 + $0x238] sm:$0xff] %v292
                %v294 = vld [vmem:[%s148 + $0x440] sm:$0xff]
                %295 = vst [vmem:[%s149 + $0x240] sm:$0xff] %v294
                %v296 = vld [vmem:[%s148 + $0x448] sm:$0xff]
                %297 = vst [vmem:[%s149 + $0x248] sm:$0xff] %v296
                %v298 = vld [vmem:[%s148 + $0x450] sm:$0xff]
                %299 = vst [vmem:[%s149 + $0x250] sm:$0xff] %v298
                %v300 = vld [vmem:[%s148 + $0x458] sm:$0xff]
                %301 = vst [vmem:[%s149 + $0x258] sm:$0xff] %v300
                %v302 = vld [vmem:[%s148 + $0x460] sm:$0xff]
                %303 = vst [vmem:[%s149 + $0x260] sm:$0xff] %v302
                %v304 = vld [vmem:[%s148 + $0x468] sm:$0xff]
                %305 = vst [vmem:[%s149 + $0x268] sm:$0xff] %v304
                %v306 = vld [vmem:[%s148 + $0x470] sm:$0xff]
                %307 = vst [vmem:[%s149 + $0x270] sm:$0xff] %v306
                %v308 = vld [vmem:[%s148 + $0x478] sm:$0xff]
                %309 = vst [vmem:[%s149 + $0x278] sm:$0xff] %v308
                %v310 = vld [vmem:[%s148 + $0x480] sm:$0xff]
                %311 = vst [vmem:[%s149 + $0x280] sm:$0xff] %v310
                %v312 = vld [vmem:[%s148 + $0x488] sm:$0xff]
                %313 = vst [vmem:[%s149 + $0x288] sm:$0xff] %v312
                %v314 = vld [vmem:[%s148 + $0x490] sm:$0xff]
                %315 = vst [vmem:[%s149 + $0x290] sm:$0xff] %v314
                %v316 = vld [vmem:[%s148 + $0x498] sm:$0xff]
                %317 = vst [vmem:[%s149 + $0x298] sm:$0xff] %v316
                %v318 = vld [vmem:[%s148 + $0x4a0] sm:$0xff]
                %319 = vst [vmem:[%s149 + $0x2a0] sm:$0xff] %v318
                %v320 = vld [vmem:[%s148 + $0x4a8] sm:$0xff]
                %321 = vst [vmem:[%s149 + $0x2a8] sm:$0xff] %v320
                %v322 = vld [vmem:[%s148 + $0x4b0] sm:$0xff]
                %323 = vst [vmem:[%s149 + $0x2b0] sm:$0xff] %v322
                %v324 = vld [vmem:[%s148 + $0x4b8] sm:$0xff]
                %325 = vst [vmem:[%s149 + $0x2b8] sm:$0xff] %v324
                %v326 = vld [vmem:[%s148 + $0x4c0] sm:$0xff]
                %327 = vst [vmem:[%s149 + $0x2c0] sm:$0xff] %v326
                %v328 = vld [vmem:[%s148 + $0x4c8] sm:$0xff]
                %329 = vst [vmem:[%s149 + $0x2c8] sm:$0xff] %v328
                %v330 = vld [vmem:[%s148 + $0x4d0] sm:$0xff]
                %331 = vst [vmem:[%s149 + $0x2d0] sm:$0xff] %v330
                %v332 = vld [vmem:[%s148 + $0x4d8] sm:$0xff]
                %333 = vst [vmem:[%s149 + $0x2d8] sm:$0xff] %v332
                %v334 = vld [vmem:[%s148 + $0x4e0] sm:$0xff]
                %335 = vst [vmem:[%s149 + $0x2e0] sm:$0xff] %v334
                %v336 = vld [vmem:[%s148 + $0x4e8] sm:$0xff]
                %337 = vst [vmem:[%s149 + $0x2e8] sm:$0xff] %v336
                %v338 = vld [vmem:[%s148 + $0x4f0] sm:$0xff]
                %339 = vst [vmem:[%s149 + $0x2f0] sm:$0xff] %v338
                %v340 = vld [vmem:[%s148 + $0x4f8] sm:$0xff]
                %341 = vst [vmem:[%s149 + $0x2f8] sm:$0xff] %v340
                %v342 = vld [vmem:[%s148 + $0x600] sm:$0xff]
                %343 = vst [vmem:[%s149 + $0x300] sm:$0xff] %v342
                %v344 = vld [vmem:[%s148 + $0x608] sm:$0xff]
                %345 = vst [vmem:[%s149 + $0x308] sm:$0xff] %v344
                %v346 = vld [vmem:[%s148 + $0x610] sm:$0xff]
                %347 = vst [vmem:[%s149 + $0x310] sm:$0xff] %v346
                %v348 = vld [vmem:[%s148 + $0x618] sm:$0xff]
                %349 = vst [vmem:[%s149 + $0x318] sm:$0xff] %v348
                %v350 = vld [vmem:[%s148 + $0x620] sm:$0xff]
                %351 = vst [vmem:[%s149 + $0x320] sm:$0xff] %v350
                %v352 = vld [vmem:[%s148 + $0x628] sm:$0xff]
                %353 = vst [vmem:[%s149 + $0x328] sm:$0xff] %v352
                %v354 = vld [vmem:[%s148 + $0x630] sm:$0xff]
                %355 = vst [vmem:[%s149 + $0x330] sm:$0xff] %v354
                %v356 = vld [vmem:[%s148 + $0x638] sm:$0xff]
                %357 = vst [vmem:[%s149 + $0x338] sm:$0xff] %v356
                %v358 = vld [vmem:[%s148 + $0x640] sm:$0xff]
                %359 = vst [vmem:[%s149 + $0x340] sm:$0xff] %v358
                %v360 = vld [vmem:[%s148 + $0x648] sm:$0xff]
                %361 = vst [vmem:[%s149 + $0x348] sm:$0xff] %v360
                %v362 = vld [vmem:[%s148 + $0x650] sm:$0xff]
                %363 = vst [vmem:[%s149 + $0x350] sm:$0xff] %v362
                %v364 = vld [vmem:[%s148 + $0x658] sm:$0xff]
                %365 = vst [vmem:[%s149 + $0x358] sm:$0xff] %v364
                %v366 = vld [vmem:[%s148 + $0x660] sm:$0xff]
                %367 = vst [vmem:[%s149 + $0x360] sm:$0xff] %v366
                %v368 = vld [vmem:[%s148 + $0x668] sm:$0xff]
                %369 = vst [vmem:[%s149 + $0x368] sm:$0xff] %v368
                %v370 = vld [vmem:[%s148 + $0x670] sm:$0xff]
                %371 = vst [vmem:[%s149 + $0x370] sm:$0xff] %v370
                %v372 = vld [vmem:[%s148 + $0x678] sm:$0xff]
                %373 = vst [vmem:[%s149 + $0x378] sm:$0xff] %v372
                %v374 = vld [vmem:[%s148 + $0x680] sm:$0xff]
                %375 = vst [vmem:[%s149 + $0x380] sm:$0xff] %v374
                %v376 = vld [vmem:[%s148 + $0x688] sm:$0xff]
                %377 = vst [vmem:[%s149 + $0x388] sm:$0xff] %v376
                %v378 = vld [vmem:[%s148 + $0x690] sm:$0xff]
                %379 = vst [vmem:[%s149 + $0x390] sm:$0xff] %v378
                %v380 = vld [vmem:[%s148 + $0x698] sm:$0xff]
                %381 = vst [vmem:[%s149 + $0x398] sm:$0xff] %v380
                %v382 = vld [vmem:[%s148 + $0x6a0] sm:$0xff]
                %383 = vst [vmem:[%s149 + $0x3a0] sm:$0xff] %v382
                %v384 = vld [vmem:[%s148 + $0x6a8] sm:$0xff]
                %385 = vst [vmem:[%s149 + $0x3a8] sm:$0xff] %v384
                %v386 = vld [vmem:[%s148 + $0x6b0] sm:$0xff]
                %387 = vst [vmem:[%s149 + $0x3b0] sm:$0xff] %v386
                %v388 = vld [vmem:[%s148 + $0x6b8] sm:$0xff]
                %389 = vst [vmem:[%s149 + $0x3b8] sm:$0xff] %v388
                %v390 = vld [vmem:[%s148 + $0x6c0] sm:$0xff]
                %391 = vst [vmem:[%s149 + $0x3c0] sm:$0xff] %v390
                %v392 = vld [vmem:[%s148 + $0x6c8] sm:$0xff]
                %393 = vst [vmem:[%s149 + $0x3c8] sm:$0xff] %v392
                %v394 = vld [vmem:[%s148 + $0x6d0] sm:$0xff]
                %395 = vst [vmem:[%s149 + $0x3d0] sm:$0xff] %v394
                %v396 = vld [vmem:[%s148 + $0x6d8] sm:$0xff]
                %397 = vst [vmem:[%s149 + $0x3d8] sm:$0xff] %v396
                %v398 = vld [vmem:[%s148 + $0x6e0] sm:$0xff]
                %399 = vst [vmem:[%s149 + $0x3e0] sm:$0xff] %v398
                %v400 = vld [vmem:[%s148 + $0x6e8] sm:$0xff]
                %401 = vst [vmem:[%s149 + $0x3e8] sm:$0xff] %v400
                %v402 = vld [vmem:[%s148 + $0x6f0] sm:$0xff]
                %403 = vst [vmem:[%s149 + $0x3f0] sm:$0xff] %v402
                %v404 = vld [vmem:[%s148 + $0x6f8] sm:$0xff]
                %405 = vst [vmem:[%s149 + $0x3f8] sm:$0xff] %v404
                %v406 = vld [vmem:[%s148 + $0x800] sm:$0xff]
                %407 = vst [vmem:[%s149 + $0x400] sm:$0xff] %v406
                %v408 = vld [vmem:[%s148 + $0x808] sm:$0xff]
                %409 = vst [vmem:[%s149 + $0x408] sm:$0xff] %v408
                %v410 = vld [vmem:[%s148 + $0x810] sm:$0xff]
                %411 = vst [vmem:[%s149 + $0x410] sm:$0xff] %v410
                %v412 = vld [vmem:[%s148 + $0x818] sm:$0xff]
                %413 = vst [vmem:[%s149 + $0x418] sm:$0xff] %v412
                %v414 = vld [vmem:[%s148 + $0x820] sm:$0xff]
                %415 = vst [vmem:[%s149 + $0x420] sm:$0xff] %v414
                %v416 = vld [vmem:[%s148 + $0x828] sm:$0xff]
                %417 = vst [vmem:[%s149 + $0x428] sm:$0xff] %v416
                %v418 = vld [vmem:[%s148 + $0x830] sm:$0xff]
                %419 = vst [vmem:[%s149 + $0x430] sm:$0xff] %v418
                %v420 = vld [vmem:[%s148 + $0x838] sm:$0xff]
                %421 = vst [vmem:[%s149 + $0x438] sm:$0xff] %v420
                %v422 = vld [vmem:[%s148 + $0x840] sm:$0xff]
                %423 = vst [vmem:[%s149 + $0x440] sm:$0xff] %v422
                %v424 = vld [vmem:[%s148 + $0x848] sm:$0xff]
                %425 = vst [vmem:[%s149 + $0x448] sm:$0xff] %v424
                %v426 = vld [vmem:[%s148 + $0x850] sm:$0xff]
                %427 = vst [vmem:[%s149 + $0x450] sm:$0xff] %v426
                %v428 = vld [vmem:[%s148 + $0x858] sm:$0xff]
                %429 = vst [vmem:[%s149 + $0x458] sm:$0xff] %v428
                %v430 = vld [vmem:[%s148 + $0x860] sm:$0xff]
                %431 = vst [vmem:[%s149 + $0x460] sm:$0xff] %v430
                %v432 = vld [vmem:[%s148 + $0x868] sm:$0xff]
                %433 = vst [vmem:[%s149 + $0x468] sm:$0xff] %v432
                %v434 = vld [vmem:[%s148 + $0x870] sm:$0xff]
                %435 = vst [vmem:[%s149 + $0x470] sm:$0xff] %v434
                %v436 = vld [vmem:[%s148 + $0x878] sm:$0xff]
                %437 = vst [vmem:[%s149 + $0x478] sm:$0xff] %v436
                %v438 = vld [vmem:[%s148 + $0x880] sm:$0xff]
                %439 = vst [vmem:[%s149 + $0x480] sm:$0xff] %v438
                %v440 = vld [vmem:[%s148 + $0x888] sm:$0xff]
                %441 = vst [vmem:[%s149 + $0x488] sm:$0xff] %v440
                %v442 = vld [vmem:[%s148 + $0x890] sm:$0xff]
                %443 = vst [vmem:[%s149 + $0x490] sm:$0xff] %v442
                %v444 = vld [vmem:[%s148 + $0x898] sm:$0xff]
                %445 = vst [vmem:[%s149 + $0x498] sm:$0xff] %v444
                %v446 = vld [vmem:[%s148 + $0x8a0] sm:$0xff]
                %447 = vst [vmem:[%s149 + $0x4a0] sm:$0xff] %v446
                %v448 = vld [vmem:[%s148 + $0x8a8] sm:$0xff]
                %449 = vst [vmem:[%s149 + $0x4a8] sm:$0xff] %v448
                %v450 = vld [vmem:[%s148 + $0x8b0] sm:$0xff]
                %451 = vst [vmem:[%s149 + $0x4b0] sm:$0xff] %v450
                %v452 = vld [vmem:[%s148 + $0x8b8] sm:$0xff]
                %453 = vst [vmem:[%s149 + $0x4b8] sm:$0xff] %v452
                %v454 = vld [vmem:[%s148 + $0x8c0] sm:$0xff]
                %455 = vst [vmem:[%s149 + $0x4c0] sm:$0xff] %v454
                %v456 = vld [vmem:[%s148 + $0x8c8] sm:$0xff]
                %457 = vst [vmem:[%s149 + $0x4c8] sm:$0xff] %v456
                %v458 = vld [vmem:[%s148 + $0x8d0] sm:$0xff]
                %459 = vst [vmem:[%s149 + $0x4d0] sm:$0xff] %v458
                %v460 = vld [vmem:[%s148 + $0x8d8] sm:$0xff]
                %461 = vst [vmem:[%s149 + $0x4d8] sm:$0xff] %v460
                %v462 = vld [vmem:[%s148 + $0x8e0] sm:$0xff]
                %463 = vst [vmem:[%s149 + $0x4e0] sm:$0xff] %v462
                %v464 = vld [vmem:[%s148 + $0x8e8] sm:$0xff]
                %465 = vst [vmem:[%s149 + $0x4e8] sm:$0xff] %v464
                %v466 = vld [vmem:[%s148 + $0x8f0] sm:$0xff]
                %467 = vst [vmem:[%s149 + $0x4f0] sm:$0xff] %v466
                %v468 = vld [vmem:[%s148 + $0x8f8] sm:$0xff]
                %469 = vst [vmem:[%s149 + $0x4f8] sm:$0xff] %v468
                %v470 = vld [vmem:[%s148 + $0xa00] sm:$0xff]
                %471 = vst [vmem:[%s149 + $0x500] sm:$0xff] %v470
                %v472 = vld [vmem:[%s148 + $0xa08] sm:$0xff]
                %473 = vst [vmem:[%s149 + $0x508] sm:$0xff] %v472
                %v474 = vld [vmem:[%s148 + $0xa10] sm:$0xff]
                %475 = vst [vmem:[%s149 + $0x510] sm:$0xff] %v474
                %v476 = vld [vmem:[%s148 + $0xa18] sm:$0xff]
                %477 = vst [vmem:[%s149 + $0x518] sm:$0xff] %v476
                %v478 = vld [vmem:[%s148 + $0xa20] sm:$0xff]
                %479 = vst [vmem:[%s149 + $0x520] sm:$0xff] %v478
                %v480 = vld [vmem:[%s148 + $0xa28] sm:$0xff]
                %481 = vst [vmem:[%s149 + $0x528] sm:$0xff] %v480
                %v482 = vld [vmem:[%s148 + $0xa30] sm:$0xff]
                %483 = vst [vmem:[%s149 + $0x530] sm:$0xff] %v482
                %v484 = vld [vmem:[%s148 + $0xa38] sm:$0xff]
                %485 = vst [vmem:[%s149 + $0x538] sm:$0xff] %v484
                %v486 = vld [vmem:[%s148 + $0xa40] sm:$0xff]
                %487 = vst [vmem:[%s149 + $0x540] sm:$0xff] %v486
                %v488 = vld [vmem:[%s148 + $0xa48] sm:$0xff]
                %489 = vst [vmem:[%s149 + $0x548] sm:$0xff] %v488
                %v490 = vld [vmem:[%s148 + $0xa50] sm:$0xff]
                %491 = vst [vmem:[%s149 + $0x550] sm:$0xff] %v490
                %v492 = vld [vmem:[%s148 + $0xa58] sm:$0xff]
                %493 = vst [vmem:[%s149 + $0x558] sm:$0xff] %v492
                %v494 = vld [vmem:[%s148 + $0xa60] sm:$0xff]
                %495 = vst [vmem:[%s149 + $0x560] sm:$0xff] %v494
                %v496 = vld [vmem:[%s148 + $0xa68] sm:$0xff]
                %497 = vst [vmem:[%s149 + $0x568] sm:$0xff] %v496
                %v498 = vld [vmem:[%s148 + $0xa70] sm:$0xff]
                %499 = vst [vmem:[%s149 + $0x570] sm:$0xff] %v498
                %v500 = vld [vmem:[%s148 + $0xa78] sm:$0xff]
                %501 = vst [vmem:[%s149 + $0x578] sm:$0xff] %v500
                %v502 = vld [vmem:[%s148 + $0xa80] sm:$0xff]
                %503 = vst [vmem:[%s149 + $0x580] sm:$0xff] %v502
                %v504 = vld [vmem:[%s148 + $0xa88] sm:$0xff]
                %505 = vst [vmem:[%s149 + $0x588] sm:$0xff] %v504
                %v506 = vld [vmem:[%s148 + $0xa90] sm:$0xff]
                %507 = vst [vmem:[%s149 + $0x590] sm:$0xff] %v506
                %v508 = vld [vmem:[%s148 + $0xa98] sm:$0xff]
                %509 = vst [vmem:[%s149 + $0x598] sm:$0xff] %v508
                %v510 = vld [vmem:[%s148 + $0xaa0] sm:$0xff]
                %511 = vst [vmem:[%s149 + $0x5a0] sm:$0xff] %v510
                %v512 = vld [vmem:[%s148 + $0xaa8] sm:$0xff]
                %513 = vst [vmem:[%s149 + $0x5a8] sm:$0xff] %v512
                %v514 = vld [vmem:[%s148 + $0xab0] sm:$0xff]
                %515 = vst [vmem:[%s149 + $0x5b0] sm:$0xff] %v514
                %v516 = vld [vmem:[%s148 + $0xab8] sm:$0xff]
                %517 = vst [vmem:[%s149 + $0x5b8] sm:$0xff] %v516
                %v518 = vld [vmem:[%s148 + $0xac0] sm:$0xff]
                %519 = vst [vmem:[%s149 + $0x5c0] sm:$0xff] %v518
                %v520 = vld [vmem:[%s148 + $0xac8] sm:$0xff]
                %521 = vst [vmem:[%s149 + $0x5c8] sm:$0xff] %v520
                %v522 = vld [vmem:[%s148 + $0xad0] sm:$0xff]
                %523 = vst [vmem:[%s149 + $0x5d0] sm:$0xff] %v522
                %v524 = vld [vmem:[%s148 + $0xad8] sm:$0xff]
                %525 = vst [vmem:[%s149 + $0x5d8] sm:$0xff] %v524
                %v526 = vld [vmem:[%s148 + $0xae0] sm:$0xff]
                %527 = vst [vmem:[%s149 + $0x5e0] sm:$0xff] %v526
                %v528 = vld [vmem:[%s148 + $0xae8] sm:$0xff]
                %529 = vst [vmem:[%s149 + $0x5e8] sm:$0xff] %v528
                %v530 = vld [vmem:[%s148 + $0xaf0] sm:$0xff]
                %531 = vst [vmem:[%s149 + $0x5f0] sm:$0xff] %v530
                %v532 = vld [vmem:[%s148 + $0xaf8] sm:$0xff]
                %533 = vst [vmem:[%s149 + $0x5f8] sm:$0xff] %v532
                %v534 = vld [vmem:[%s148 + $0xc00] sm:$0xff]
                %535 = vst [vmem:[%s149 + $0x600] sm:$0xff] %v534
                %v536 = vld [vmem:[%s148 + $0xc08] sm:$0xff]
                %537 = vst [vmem:[%s149 + $0x608] sm:$0xff] %v536
                %v538 = vld [vmem:[%s148 + $0xc10] sm:$0xff]
                %539 = vst [vmem:[%s149 + $0x610] sm:$0xff] %v538
                %v540 = vld [vmem:[%s148 + $0xc18] sm:$0xff]
                %541 = vst [vmem:[%s149 + $0x618] sm:$0xff] %v540
                %v542 = vld [vmem:[%s148 + $0xc20] sm:$0xff]
                %543 = vst [vmem:[%s149 + $0x620] sm:$0xff] %v542
                %v544 = vld [vmem:[%s148 + $0xc28] sm:$0xff]
                %545 = vst [vmem:[%s149 + $0x628] sm:$0xff] %v544
                %v546 = vld [vmem:[%s148 + $0xc30] sm:$0xff]
                %547 = vst [vmem:[%s149 + $0x630] sm:$0xff] %v546
                %v548 = vld [vmem:[%s148 + $0xc38] sm:$0xff]
                %549 = vst [vmem:[%s149 + $0x638] sm:$0xff] %v548
                %v550 = vld [vmem:[%s148 + $0xc40] sm:$0xff]
                %551 = vst [vmem:[%s149 + $0x640] sm:$0xff] %v550
                %v552 = vld [vmem:[%s148 + $0xc48] sm:$0xff]
                %553 = vst [vmem:[%s149 + $0x648] sm:$0xff] %v552
                %v554 = vld [vmem:[%s148 + $0xc50] sm:$0xff]
                %555 = vst [vmem:[%s149 + $0x650] sm:$0xff] %v554
                %v556 = vld [vmem:[%s148 + $0xc58] sm:$0xff]
                %557 = vst [vmem:[%s149 + $0x658] sm:$0xff] %v556
                %v558 = vld [vmem:[%s148 + $0xc60] sm:$0xff]
                %559 = vst [vmem:[%s149 + $0x660] sm:$0xff] %v558
                %v560 = vld [vmem:[%s148 + $0xc68] sm:$0xff]
                %561 = vst [vmem:[%s149 + $0x668] sm:$0xff] %v560
                %v562 = vld [vmem:[%s148 + $0xc70] sm:$0xff]
                %563 = vst [vmem:[%s149 + $0x670] sm:$0xff] %v562
                %v564 = vld [vmem:[%s148 + $0xc78] sm:$0xff]
                %565 = vst [vmem:[%s149 + $0x678] sm:$0xff] %v564
                %v566 = vld [vmem:[%s148 + $0xc80] sm:$0xff]
                %567 = vst [vmem:[%s149 + $0x680] sm:$0xff] %v566
                %v568 = vld [vmem:[%s148 + $0xc88] sm:$0xff]
                %569 = vst [vmem:[%s149 + $0x688] sm:$0xff] %v568
                %v570 = vld [vmem:[%s148 + $0xc90] sm:$0xff]
                %571 = vst [vmem:[%s149 + $0x690] sm:$0xff] %v570
                %v572 = vld [vmem:[%s148 + $0xc98] sm:$0xff]
                %573 = vst [vmem:[%s149 + $0x698] sm:$0xff] %v572
                %v574 = vld [vmem:[%s148 + $0xca0] sm:$0xff]
                %575 = vst [vmem:[%s149 + $0x6a0] sm:$0xff] %v574
                %v576 = vld [vmem:[%s148 + $0xca8] sm:$0xff]
                %577 = vst [vmem:[%s149 + $0x6a8] sm:$0xff] %v576
                %v578 = vld [vmem:[%s148 + $0xcb0] sm:$0xff]
                %579 = vst [vmem:[%s149 + $0x6b0] sm:$0xff] %v578
                %v580 = vld [vmem:[%s148 + $0xcb8] sm:$0xff]
                %581 = vst [vmem:[%s149 + $0x6b8] sm:$0xff] %v580
                %v582 = vld [vmem:[%s148 + $0xcc0] sm:$0xff]
                %583 = vst [vmem:[%s149 + $0x6c0] sm:$0xff] %v582
                %v584 = vld [vmem:[%s148 + $0xcc8] sm:$0xff]
                %585 = vst [vmem:[%s149 + $0x6c8] sm:$0xff] %v584
                %v586 = vld [vmem:[%s148 + $0xcd0] sm:$0xff]
                %587 = vst [vmem:[%s149 + $0x6d0] sm:$0xff] %v586
                %v588 = vld [vmem:[%s148 + $0xcd8] sm:$0xff]
                %589 = vst [vmem:[%s149 + $0x6d8] sm:$0xff] %v588
                %v590 = vld [vmem:[%s148 + $0xce0] sm:$0xff]
                %591 = vst [vmem:[%s149 + $0x6e0] sm:$0xff] %v590
                %v592 = vld [vmem:[%s148 + $0xce8] sm:$0xff]
                %593 = vst [vmem:[%s149 + $0x6e8] sm:$0xff] %v592
                %v594 = vld [vmem:[%s148 + $0xcf0] sm:$0xff]
                %595 = vst [vmem:[%s149 + $0x6f0] sm:$0xff] %v594
                %v596 = vld [vmem:[%s148 + $0xcf8] sm:$0xff]
                %597 = vst [vmem:[%s149 + $0x6f8] sm:$0xff] %v596
                %v598 = vld [vmem:[%s148 + $0xe00] sm:$0xff]
                %599 = vst [vmem:[%s149 + $0x700] sm:$0xff] %v598
                %v600 = vld [vmem:[%s148 + $0xe08] sm:$0xff]
                %601 = vst [vmem:[%s149 + $0x708] sm:$0xff] %v600
                %v602 = vld [vmem:[%s148 + $0xe10] sm:$0xff]
                %603 = vst [vmem:[%s149 + $0x710] sm:$0xff] %v602
                %v604 = vld [vmem:[%s148 + $0xe18] sm:$0xff]
                %605 = vst [vmem:[%s149 + $0x718] sm:$0xff] %v604
                %v606 = vld [vmem:[%s148 + $0xe20] sm:$0xff]
                %607 = vst [vmem:[%s149 + $0x720] sm:$0xff] %v606
                %v608 = vld [vmem:[%s148 + $0xe28] sm:$0xff]
                %609 = vst [vmem:[%s149 + $0x728] sm:$0xff] %v608
                %v610 = vld [vmem:[%s148 + $0xe30] sm:$0xff]
                %611 = vst [vmem:[%s149 + $0x730] sm:$0xff] %v610
                %v612 = vld [vmem:[%s148 + $0xe38] sm:$0xff]
                %613 = vst [vmem:[%s149 + $0x738] sm:$0xff] %v612
                %v614 = vld [vmem:[%s148 + $0xe40] sm:$0xff]
                %615 = vst [vmem:[%s149 + $0x740] sm:$0xff] %v614
                %v616 = vld [vmem:[%s148 + $0xe48] sm:$0xff]
                %617 = vst [vmem:[%s149 + $0x748] sm:$0xff] %v616
                %v618 = vld [vmem:[%s148 + $0xe50] sm:$0xff]
                %619 = vst [vmem:[%s149 + $0x750] sm:$0xff] %v618
                %v620 = vld [vmem:[%s148 + $0xe58] sm:$0xff]
                %621 = vst [vmem:[%s149 + $0x758] sm:$0xff] %v620
                %v622 = vld [vmem:[%s148 + $0xe60] sm:$0xff]
                %623 = vst [vmem:[%s149 + $0x760] sm:$0xff] %v622
                %v624 = vld [vmem:[%s148 + $0xe68] sm:$0xff]
                %625 = vst [vmem:[%s149 + $0x768] sm:$0xff] %v624
                %v626 = vld [vmem:[%s148 + $0xe70] sm:$0xff]
                %627 = vst [vmem:[%s149 + $0x770] sm:$0xff] %v626
                %v628 = vld [vmem:[%s148 + $0xe78] sm:$0xff]
                %629 = vst [vmem:[%s149 + $0x778] sm:$0xff] %v628
                %v630 = vld [vmem:[%s148 + $0xe80] sm:$0xff]
                %631 = vst [vmem:[%s149 + $0x780] sm:$0xff] %v630
                %v632 = vld [vmem:[%s148 + $0xe88] sm:$0xff]
                %633 = vst [vmem:[%s149 + $0x788] sm:$0xff] %v632
                %v634 = vld [vmem:[%s148 + $0xe90] sm:$0xff]
                %635 = vst [vmem:[%s149 + $0x790] sm:$0xff] %v634
                %v636 = vld [vmem:[%s148 + $0xe98] sm:$0xff]
                %637 = vst [vmem:[%s149 + $0x798] sm:$0xff] %v636
                %v638 = vld [vmem:[%s148 + $0xea0] sm:$0xff]
                %639 = vst [vmem:[%s149 + $0x7a0] sm:$0xff] %v638
                %v640 = vld [vmem:[%s148 + $0xea8] sm:$0xff]
                %641 = vst [vmem:[%s149 + $0x7a8] sm:$0xff] %v640
                %v642 = vld [vmem:[%s148 + $0xeb0] sm:$0xff]
                %643 = vst [vmem:[%s149 + $0x7b0] sm:$0xff] %v642
                %v644 = vld [vmem:[%s148 + $0xeb8] sm:$0xff]
                %645 = vst [vmem:[%s149 + $0x7b8] sm:$0xff] %v644
                %v646 = vld [vmem:[%s148 + $0xec0] sm:$0xff]
                %647 = vst [vmem:[%s149 + $0x7c0] sm:$0xff] %v646
                %v648 = vld [vmem:[%s148 + $0xec8] sm:$0xff]
                %649 = vst [vmem:[%s149 + $0x7c8] sm:$0xff] %v648
                %v650 = vld [vmem:[%s148 + $0xed0] sm:$0xff]
                %651 = vst [vmem:[%s149 + $0x7d0] sm:$0xff] %v650
                %v652 = vld [vmem:[%s148 + $0xed8] sm:$0xff]
                %653 = vst [vmem:[%s149 + $0x7d8] sm:$0xff] %v652
                %v654 = vld [vmem:[%s148 + $0xee0] sm:$0xff]
                %655 = vst [vmem:[%s149 + $0x7e0] sm:$0xff] %v654
                %v656 = vld [vmem:[%s148 + $0xee8] sm:$0xff]
                %657 = vst [vmem:[%s149 + $0x7e8] sm:$0xff] %v656
                %v658 = vld [vmem:[%s148 + $0xef0] sm:$0xff]
                %659 = vst [vmem:[%s149 + $0x7f0] sm:$0xff] %v658
                %v660 = vld [vmem:[%s148 + $0xef8] sm:$0xff]
                %661 = vst [vmem:[%s149 + $0x7f8] sm:$0xff] %v660
                %v662 = vld [vmem:[%s148 + $0x1000] sm:$0xff]
                %663 = vst [vmem:[%s149 + $0x800] sm:$0xff] %v662
                %v664 = vld [vmem:[%s148 + $0x1008] sm:$0xff]
                %665 = vst [vmem:[%s149 + $0x808] sm:$0xff] %v664
                %v666 = vld [vmem:[%s148 + $0x1010] sm:$0xff]
                %667 = vst [vmem:[%s149 + $0x810] sm:$0xff] %v666
                %v668 = vld [vmem:[%s148 + $0x1018] sm:$0xff]
                %669 = vst [vmem:[%s149 + $0x818] sm:$0xff] %v668
                %v670 = vld [vmem:[%s148 + $0x1020] sm:$0xff]
                %671 = vst [vmem:[%s149 + $0x820] sm:$0xff] %v670
                %v672 = vld [vmem:[%s148 + $0x1028] sm:$0xff]
                %673 = vst [vmem:[%s149 + $0x828] sm:$0xff] %v672
                %v674 = vld [vmem:[%s148 + $0x1030] sm:$0xff]
                %675 = vst [vmem:[%s149 + $0x830] sm:$0xff] %v674
                %v676 = vld [vmem:[%s148 + $0x1038] sm:$0xff]
                %677 = vst [vmem:[%s149 + $0x838] sm:$0xff] %v676
                %v678 = vld [vmem:[%s148 + $0x1040] sm:$0xff]
                %679 = vst [vmem:[%s149 + $0x840] sm:$0xff] %v678
                %v680 = vld [vmem:[%s148 + $0x1048] sm:$0xff]
                %681 = vst [vmem:[%s149 + $0x848] sm:$0xff] %v680
                %v682 = vld [vmem:[%s148 + $0x1050] sm:$0xff]
                %683 = vst [vmem:[%s149 + $0x850] sm:$0xff] %v682
                %v684 = vld [vmem:[%s148 + $0x1058] sm:$0xff]
                %685 = vst [vmem:[%s149 + $0x858] sm:$0xff] %v684
                %v686 = vld [vmem:[%s148 + $0x1060] sm:$0xff]
                %687 = vst [vmem:[%s149 + $0x860] sm:$0xff] %v686
                %v688 = vld [vmem:[%s148 + $0x1068] sm:$0xff]
                %689 = vst [vmem:[%s149 + $0x868] sm:$0xff] %v688
                %v690 = vld [vmem:[%s148 + $0x1070] sm:$0xff]
                %691 = vst [vmem:[%s149 + $0x870] sm:$0xff] %v690
                %v692 = vld [vmem:[%s148 + $0x1078] sm:$0xff]
                %693 = vst [vmem:[%s149 + $0x878] sm:$0xff] %v692
                %v694 = vld [vmem:[%s148 + $0x1080] sm:$0xff]
                %695 = vst [vmem:[%s149 + $0x880] sm:$0xff] %v694
                %v696 = vld [vmem:[%s148 + $0x1088] sm:$0xff]
                %697 = vst [vmem:[%s149 + $0x888] sm:$0xff] %v696
                %v698 = vld [vmem:[%s148 + $0x1090] sm:$0xff]
                %699 = vst [vmem:[%s149 + $0x890] sm:$0xff] %v698
                %v700 = vld [vmem:[%s148 + $0x1098] sm:$0xff]
                %701 = vst [vmem:[%s149 + $0x898] sm:$0xff] %v700
                %v702 = vld [vmem:[%s148 + $0x10a0] sm:$0xff]
                %703 = vst [vmem:[%s149 + $0x8a0] sm:$0xff] %v702
                %v704 = vld [vmem:[%s148 + $0x10a8] sm:$0xff]
                %705 = vst [vmem:[%s149 + $0x8a8] sm:$0xff] %v704
                %v706 = vld [vmem:[%s148 + $0x10b0] sm:$0xff]
                %707 = vst [vmem:[%s149 + $0x8b0] sm:$0xff] %v706
                %v708 = vld [vmem:[%s148 + $0x10b8] sm:$0xff]
                %709 = vst [vmem:[%s149 + $0x8b8] sm:$0xff] %v708
                %v710 = vld [vmem:[%s148 + $0x10c0] sm:$0xff]
                %711 = vst [vmem:[%s149 + $0x8c0] sm:$0xff] %v710
                %v712 = vld [vmem:[%s148 + $0x10c8] sm:$0xff]
                %713 = vst [vmem:[%s149 + $0x8c8] sm:$0xff] %v712
                %v714 = vld [vmem:[%s148 + $0x10d0] sm:$0xff]
                %715 = vst [vmem:[%s149 + $0x8d0] sm:$0xff] %v714
                %v716 = vld [vmem:[%s148 + $0x10d8] sm:$0xff]
                %717 = vst [vmem:[%s149 + $0x8d8] sm:$0xff] %v716
                %v718 = vld [vmem:[%s148 + $0x10e0] sm:$0xff]
                %719 = vst [vmem:[%s149 + $0x8e0] sm:$0xff] %v718
                %v720 = vld [vmem:[%s148 + $0x10e8] sm:$0xff]
                %721 = vst [vmem:[%s149 + $0x8e8] sm:$0xff] %v720
                %v722 = vld [vmem:[%s148 + $0x10f0] sm:$0xff]
                %723 = vst [vmem:[%s149 + $0x8f0] sm:$0xff] %v722
                %v724 = vld [vmem:[%s148 + $0x10f8] sm:$0xff]
                %725 = vst [vmem:[%s149 + $0x8f8] sm:$0xff] %v724
              $region41: #{conv_transpose_net.3} parent=35 // loop_footer
                %s147 = sadd.s32 1, %s143
              $region42: #{conv_transpose_net.3} parent=35 // loop_footer_branch
                %142 = sbr.rel target = $region38
              $region43: #{conv_transpose_net.3} parent=35 // loop_exit
                _
            $region36: #{conv_transpose_net.3} parent=31 // pred_fallthru
              _
            // Predicated region
            $region44: #{conv_transpose_net.3} parent=31 // pred_check
              _
            $region45: #{conv_transpose_net.3} parent=31 // pred_check_branch
              %727 = sbr.rel target = $region47
            $region46: #{conv_transpose_net.3} parent=31 // pred_region
              _
            $region47: #{conv_transpose_net.3} parent=31 // pred_fallthru
              _
          $region32: #{conv_transpose_net.3} parent=27 // pred_fallthru
            _
          %728 = vnop
        $region28: #{conv_transpose_net.3} parent=23 // pred_fallthru
          _
      $region24: #{conv_transpose_net.3} parent=5 // pred_fallthru
        _
      %p729 = scmp.le.s32.totalorder 1, %s9
      %p730 = scmp.lt.s32.totalorder %s9, 3
      %p731 = pnand %p729, %p730
      %p732 = pneg %p731
      // Predicated region
      $region48: #{conv_transpose_net.3} parent=5 // pred_check
        _
      $region49: #{conv_transpose_net.3} parent=5 // pred_check_branch
        %734 = sbr.rel (%p731) target = $region51
      $region50: #{conv_transpose_net.3} parent=5 // pred_region
        %s735 = ssub.s32 %s9, 1
        %s736 = sand.u32 %s43, 1
        %s737 = sand.u32 %s43, 1
        %s738 = smul.addr %s737, 2304
        %s739 = scalar_lea.vmem [#allocation2], %s738
        // Predicated region
        $region52: #{conv_transpose_net.3} parent=50 // pred_check
          %p740 = pneg %p56
        $region53: #{conv_transpose_net.3} parent=50 // pred_check_branch
          %742 = sbr.rel (%p740) target = $region55
        $region54: #{conv_transpose_net.3} parent=50 // pred_region
          _
        $region55: #{conv_transpose_net.3} parent=50 // pred_fallthru
          _
        %p743 = pneg %p30
        %p744 = pneg %p27
        %s745 = sand.u32 %s43, 1
        %s746 = sand.u32 %s43, 1
        %s747 = smul.addr %s746, 2304
        %s748 = scalar_lea.vmem [#allocation2], %s747
        %p749 = pneg %p56
        %p750 = pneg %p53
        %p751 = pneg %p77
        %p752 = pneg %p74
        %p753 = pneg %p103
        %p754 = pneg %p100
        %s755 = smul.u32 32, %s14
        %p756 = scmp.lt.s32.totalorder %s755, 63
        %s757 = scalar_select %p756, %s755, 63
        %s758 = smul.addr %s757, 4
        %s759 = scalar_lea.vmem %s3, %s758
        %s760 = smul.u32 32, %s14
        %s761 = smul.u32 32, %s14
        %p762 = scmp.lt.s32.totalorder %s761, 63
        %s763 = scalar_select %p762, %s761, 63
        %s764 = smul.addr %s763, 4
        %s765 = scalar_lea.vmem %s3, %s764
        %s766 = smul.u32 32, %s14
        %v767 = vld [vmem:[%s0] sm:$0xf]
        %v768 = vld [vmem:[%s739] sm:$0xff]
        %v769 = vld [vmem:[%s739 + $0x8] sm:$0xff]
        %v770 = vld [vmem:[%s739 + $0x10] sm:$0xff]
        %v771 = vld [vmem:[%s739 + $0x18] sm:$0xff]
        %v772 = vld [vmem:[%s739 + $0x20] sm:$0xff]
        %v773 = vld [vmem:[%s739 + $0x28] sm:$0xff]
        %v774 = vld [vmem:[%s739 + $0x30] sm:$0xff]
        %v775 = vld [vmem:[%s739 + $0x38] sm:$0xff]
        %v776 = vld [vmem:[%s739 + $0x40] sm:$0xff]
        %v777 = vld [vmem:[%s739 + $0x48] sm:$0xff]
        %v778 = vld [vmem:[%s739 + $0x50] sm:$0xff]
        %v779 = vld [vmem:[%s739 + $0x58] sm:$0xff]
        %v780 = vld [vmem:[%s739 + $0x60] sm:$0xff]
        %v781 = vld [vmem:[%s739 + $0x68] sm:$0xff]
        %v782 = vld [vmem:[%s739 + $0x70] sm:$0xff]
        %v783 = vld [vmem:[%s739 + $0x78] sm:$0xff]
        %v784 = vld [vmem:[%s739 + $0x80] sm:$0xff]
        %v785 = vld [vmem:[%s739 + $0x88] sm:$0xff]
        %v786 = vld [vmem:[%s739 + $0x90] sm:$0xff]
        %v787 = vld [vmem:[%s739 + $0x98] sm:$0xff]
        %v788 = vld [vmem:[%s739 + $0xa0] sm:$0xff]
        %v789 = vld [vmem:[%s739 + $0xa8] sm:$0xff]
        %v790 = vld [vmem:[%s739 + $0xb0] sm:$0xff]
        %v791 = vld [vmem:[%s739 + $0xb8] sm:$0xff]
        %v792 = vld [vmem:[%s739 + $0xc0] sm:$0xff]
        %v793 = vld [vmem:[%s739 + $0xc8] sm:$0xff]
        %v794 = vld [vmem:[%s739 + $0xd0] sm:$0xff]
        %v795 = vld [vmem:[%s739 + $0xd8] sm:$0xff]
        %v796 = vld [vmem:[%s739 + $0xe0] sm:$0xff]
        %v797 = vld [vmem:[%s739 + $0xe8] sm:$0xff]
        %v798 = vld [vmem:[%s739 + $0xf0] sm:$0xff]
        %v799 = vld [vmem:[%s739 + $0xf8] sm:$0xff]
        %v800 = vld [vmem:[%s739 + $0x100] sm:$0xff]
        %v801 = vld [vmem:[%s739 + $0x108] sm:$0xff]
        %v802 = vld [vmem:[%s739 + $0x110] sm:$0xff]
        %v803 = vld [vmem:[%s739 + $0x118] sm:$0xff]
        %v804 = vld [vmem:[%s739 + $0x120] sm:$0xff]
        %v805 = vld [vmem:[%s739 + $0x128] sm:$0xff]
        %v806 = vld [vmem:[%s739 + $0x130] sm:$0xff]
        %v807 = vld [vmem:[%s739 + $0x138] sm:$0xff]
        %v808 = vld [vmem:[%s739 + $0x140] sm:$0xff]
        %v809 = vld [vmem:[%s739 + $0x148] sm:$0xff]
        %v810 = vld [vmem:[%s739 + $0x150] sm:$0xff]
        %v811 = vld [vmem:[%s739 + $0x158] sm:$0xff]
        %v812 = vld [vmem:[%s739 + $0x160] sm:$0xff]
        %v813 = vld [vmem:[%s739 + $0x168] sm:$0xff]
        %v814 = vld [vmem:[%s739 + $0x170] sm:$0xff]
        %v815 = vld [vmem:[%s739 + $0x178] sm:$0xff]
        %v816 = vld [vmem:[%s739 + $0x180] sm:$0xff]
        %v817 = vld [vmem:[%s739 + $0x188] sm:$0xff]
        %v818 = vld [vmem:[%s739 + $0x190] sm:$0xff]
        %v819 = vld [vmem:[%s739 + $0x198] sm:$0xff]
        %v820 = vld [vmem:[%s739 + $0x1a0] sm:$0xff]
        %v821 = vld [vmem:[%s739 + $0x1a8] sm:$0xff]
        %v822 = vld [vmem:[%s739 + $0x1b0] sm:$0xff]
        %v823 = vld [vmem:[%s739 + $0x1b8] sm:$0xff]
        %v824 = vld [vmem:[%s739 + $0x1c0] sm:$0xff]
        %v825 = vld [vmem:[%s739 + $0x1c8] sm:$0xff]
        %v826 = vld [vmem:[%s739 + $0x1d0] sm:$0xff]
        %v827 = vld [vmem:[%s739 + $0x1d8] sm:$0xff]
        %v828 = vld [vmem:[%s739 + $0x1e0] sm:$0xff]
        %v829 = vld [vmem:[%s739 + $0x1e8] sm:$0xff]
        %v830 = vld [vmem:[%s739 + $0x1f0] sm:$0xff]
        %v831 = vld [vmem:[%s739 + $0x1f8] sm:$0xff]
        %v832 = vld [vmem:[%s739 + $0x200] sm:$0xff]
        %v833 = vld [vmem:[%s739 + $0x208] sm:$0xff]
        %v834 = vld [vmem:[%s739 + $0x210] sm:$0xff]
        %v835 = vld [vmem:[%s739 + $0x218] sm:$0xff]
        %v836 = vld [vmem:[%s739 + $0x220] sm:$0xff]
        %v837 = vld [vmem:[%s739 + $0x228] sm:$0xff]
        %v838 = vld [vmem:[%s739 + $0x230] sm:$0xff]
        %v839 = vld [vmem:[%s739 + $0x238] sm:$0xff]
        %v840 = vld [vmem:[%s739 + $0x240] sm:$0xff]
        %v841 = vld [vmem:[%s739 + $0x248] sm:$0xff]
        %v842 = vld [vmem:[%s739 + $0x250] sm:$0xff]
        %v843 = vld [vmem:[%s739 + $0x258] sm:$0xff]
        %v844 = vld [vmem:[%s739 + $0x260] sm:$0xff]
        %v845 = vld [vmem:[%s739 + $0x268] sm:$0xff]
        %v846 = vld [vmem:[%s739 + $0x270] sm:$0xff]
        %v847 = vld [vmem:[%s739 + $0x278] sm:$0xff]
        %v848 = vld [vmem:[%s739 + $0x280] sm:$0xff]
        %v849 = vld [vmem:[%s739 + $0x288] sm:$0xff]
        %v850 = vld [vmem:[%s739 + $0x290] sm:$0xff]
        %v851 = vld [vmem:[%s739 + $0x298] sm:$0xff]
        %v852 = vld [vmem:[%s739 + $0x2a0] sm:$0xff]
        %v853 = vld [vmem:[%s739 + $0x2a8] sm:$0xff]
        %v854 = vld [vmem:[%s739 + $0x2b0] sm:$0xff]
        %v855 = vld [vmem:[%s739 + $0x2b8] sm:$0xff]
        %v856 = vld [vmem:[%s739 + $0x2c0] sm:$0xff]
        %v857 = vld [vmem:[%s739 + $0x2c8] sm:$0xff]
        %v858 = vld [vmem:[%s739 + $0x2d0] sm:$0xff]
        %v859 = vld [vmem:[%s739 + $0x2d8] sm:$0xff]
        %v860 = vld [vmem:[%s739 + $0x2e0] sm:$0xff]
        %v861 = vld [vmem:[%s739 + $0x2e8] sm:$0xff]
        %v862 = vld [vmem:[%s739 + $0x2f0] sm:$0xff]
        %v863 = vld [vmem:[%s739 + $0x2f8] sm:$0xff]
        %v864 = vld [vmem:[%s739 + $0x300] sm:$0xff]
        %v865 = vld [vmem:[%s739 + $0x308] sm:$0xff]
        %v866 = vld [vmem:[%s739 + $0x310] sm:$0xff]
        %v867 = vld [vmem:[%s739 + $0x318] sm:$0xff]
        %v868 = vld [vmem:[%s739 + $0x320] sm:$0xff]
        %v869 = vld [vmem:[%s739 + $0x328] sm:$0xff]
        %v870 = vld [vmem:[%s739 + $0x330] sm:$0xff]
        %v871 = vld [vmem:[%s739 + $0x338] sm:$0xff]
        %v872 = vld [vmem:[%s739 + $0x340] sm:$0xff]
        %v873 = vld [vmem:[%s739 + $0x348] sm:$0xff]
        %v874 = vld [vmem:[%s739 + $0x350] sm:$0xff]
        %v875 = vld [vmem:[%s739 + $0x358] sm:$0xff]
        %v876 = vld [vmem:[%s739 + $0x360] sm:$0xff]
        %v877 = vld [vmem:[%s739 + $0x368] sm:$0xff]
        %v878 = vld [vmem:[%s739 + $0x370] sm:$0xff]
        %v879 = vld [vmem:[%s739 + $0x378] sm:$0xff]
        %v880 = vld [vmem:[%s739 + $0x380] sm:$0xff]
        %v881 = vld [vmem:[%s739 + $0x388] sm:$0xff]
        %v882 = vld [vmem:[%s739 + $0x390] sm:$0xff]
        %v883 = vld [vmem:[%s739 + $0x398] sm:$0xff]
        %v884 = vld [vmem:[%s739 + $0x3a0] sm:$0xff]
        %v885 = vld [vmem:[%s739 + $0x3a8] sm:$0xff]
        %v886 = vld [vmem:[%s739 + $0x3b0] sm:$0xff]
        %v887 = vld [vmem:[%s739 + $0x3b8] sm:$0xff]
        %v888 = vld [vmem:[%s739 + $0x3c0] sm:$0xff]
        %v889 = vld [vmem:[%s739 + $0x3c8] sm:$0xff]
        %v890 = vld [vmem:[%s739 + $0x3d0] sm:$0xff]
        %v891 = vld [vmem:[%s739 + $0x3d8] sm:$0xff]
        %v892 = vld [vmem:[%s739 + $0x3e0] sm:$0xff]
        %v893 = vld [vmem:[%s739 + $0x3e8] sm:$0xff]
        %v894 = vld [vmem:[%s739 + $0x3f0] sm:$0xff]
        %v895 = vld [vmem:[%s739 + $0x3f8] sm:$0xff]
        %v896 = vld [vmem:[%s739 + $0x400] sm:$0xff]
        %v897 = vld [vmem:[%s739 + $0x408] sm:$0xff]
        %v898 = vld [vmem:[%s739 + $0x410] sm:$0xff]
        %v899 = vld [vmem:[%s739 + $0x418] sm:$0xff]
        %v900 = vld [vmem:[%s739 + $0x420] sm:$0xff]
        %v901 = vld [vmem:[%s739 + $0x428] sm:$0xff]
        %v902 = vld [vmem:[%s739 + $0x430] sm:$0xff]
        %v903 = vld [vmem:[%s739 + $0x438] sm:$0xff]
        %v904 = vld [vmem:[%s739 + $0x440] sm:$0xff]
        %v905 = vld [vmem:[%s739 + $0x448] sm:$0xff]
        %v906 = vld [vmem:[%s739 + $0x450] sm:$0xff]
        %v907 = vld [vmem:[%s739 + $0x458] sm:$0xff]
        %v908 = vld [vmem:[%s739 + $0x460] sm:$0xff]
        %v909 = vld [vmem:[%s739 + $0x468] sm:$0xff]
        %v910 = vld [vmem:[%s739 + $0x470] sm:$0xff]
        %v911 = vld [vmem:[%s739 + $0x478] sm:$0xff]
        %v912 = vld [vmem:[%s739 + $0x480] sm:$0xff]
        %v913 = vld [vmem:[%s739 + $0x488] sm:$0xff]
        %v914 = vld [vmem:[%s739 + $0x490] sm:$0xff]
        %v915 = vld [vmem:[%s739 + $0x498] sm:$0xff]
        %v916 = vld [vmem:[%s739 + $0x4a0] sm:$0xff]
        %v917 = vld [vmem:[%s739 + $0x4a8] sm:$0xff]
        %v918 = vld [vmem:[%s739 + $0x4b0] sm:$0xff]
        %v919 = vld [vmem:[%s739 + $0x4b8] sm:$0xff]
        %v920 = vld [vmem:[%s739 + $0x4c0] sm:$0xff]
        %v921 = vld [vmem:[%s739 + $0x4c8] sm:$0xff]
        %v922 = vld [vmem:[%s739 + $0x4d0] sm:$0xff]
        %v923 = vld [vmem:[%s739 + $0x4d8] sm:$0xff]
        %v924 = vld [vmem:[%s739 + $0x4e0] sm:$0xff]
        %v925 = vld [vmem:[%s739 + $0x4e8] sm:$0xff]
        %v926 = vld [vmem:[%s739 + $0x4f0] sm:$0xff]
        %v927 = vld [vmem:[%s739 + $0x4f8] sm:$0xff]
        %v928 = vld [vmem:[%s739 + $0x500] sm:$0xff]
        %v929 = vld [vmem:[%s739 + $0x508] sm:$0xff]
        %v930 = vld [vmem:[%s739 + $0x510] sm:$0xff]
        %v931 = vld [vmem:[%s739 + $0x518] sm:$0xff]
        %v932 = vld [vmem:[%s739 + $0x520] sm:$0xff]
        %v933 = vld [vmem:[%s739 + $0x528] sm:$0xff]
        %v934 = vld [vmem:[%s739 + $0x530] sm:$0xff]
        %v935 = vld [vmem:[%s739 + $0x538] sm:$0xff]
        %v936 = vld [vmem:[%s739 + $0x540] sm:$0xff]
        %v937 = vld [vmem:[%s739 + $0x548] sm:$0xff]
        %v938 = vld [vmem:[%s739 + $0x550] sm:$0xff]
        %v939 = vld [vmem:[%s739 + $0x558] sm:$0xff]
        %v940 = vld [vmem:[%s739 + $0x560] sm:$0xff]
        %v941 = vld [vmem:[%s739 + $0x568] sm:$0xff]
        %v942 = vld [vmem:[%s739 + $0x570] sm:$0xff]
        %v943 = vld [vmem:[%s739 + $0x578] sm:$0xff]
        %v944 = vld [vmem:[%s739 + $0x580] sm:$0xff]
        %v945 = vld [vmem:[%s739 + $0x588] sm:$0xff]
        %v946 = vld [vmem:[%s739 + $0x590] sm:$0xff]
        %v947 = vld [vmem:[%s739 + $0x598] sm:$0xff]
        %v948 = vld [vmem:[%s739 + $0x5a0] sm:$0xff]
        %v949 = vld [vmem:[%s739 + $0x5a8] sm:$0xff]
        %v950 = vld [vmem:[%s739 + $0x5b0] sm:$0xff]
        %v951 = vld [vmem:[%s739 + $0x5b8] sm:$0xff]
        %v952 = vld [vmem:[%s739 + $0x5c0] sm:$0xff]
        %v953 = vld [vmem:[%s739 + $0x5c8] sm:$0xff]
        %v954 = vld [vmem:[%s739 + $0x5d0] sm:$0xff]
        %v955 = vld [vmem:[%s739 + $0x5d8] sm:$0xff]
        %v956 = vld [vmem:[%s739 + $0x5e0] sm:$0xff]
        %v957 = vld [vmem:[%s739 + $0x5e8] sm:$0xff]
        %v958 = vld [vmem:[%s739 + $0x5f0] sm:$0xff]
        %v959 = vld [vmem:[%s739 + $0x5f8] sm:$0xff]
        %v960 = vld [vmem:[%s739 + $0x600] sm:$0xff]
        %v961 = vld [vmem:[%s739 + $0x608] sm:$0xff]
        %v962 = vld [vmem:[%s739 + $0x610] sm:$0xff]
        %v963 = vld [vmem:[%s739 + $0x618] sm:$0xff]
        %v964 = vld [vmem:[%s739 + $0x620] sm:$0xff]
        %v965 = vld [vmem:[%s739 + $0x628] sm:$0xff]
        %v966 = vld [vmem:[%s739 + $0x630] sm:$0xff]
        %v967 = vld [vmem:[%s739 + $0x638] sm:$0xff]
        %v968 = vld [vmem:[%s739 + $0x640] sm:$0xff]
        %v969 = vld [vmem:[%s739 + $0x648] sm:$0xff]
        %v970 = vld [vmem:[%s739 + $0x650] sm:$0xff]
        %v971 = vld [vmem:[%s739 + $0x658] sm:$0xff]
        %v972 = vld [vmem:[%s739 + $0x660] sm:$0xff]
        %v973 = vld [vmem:[%s739 + $0x668] sm:$0xff]
        %v974 = vld [vmem:[%s739 + $0x670] sm:$0xff]
        %v975 = vld [vmem:[%s739 + $0x678] sm:$0xff]
        %v976 = vld [vmem:[%s739 + $0x680] sm:$0xff]
        %v977 = vld [vmem:[%s739 + $0x688] sm:$0xff]
        %v978 = vld [vmem:[%s739 + $0x690] sm:$0xff]
        %v979 = vld [vmem:[%s739 + $0x698] sm:$0xff]
        %v980 = vld [vmem:[%s739 + $0x6a0] sm:$0xff]
        %v981 = vld [vmem:[%s739 + $0x6a8] sm:$0xff]
        %v982 = vld [vmem:[%s739 + $0x6b0] sm:$0xff]
        %v983 = vld [vmem:[%s739 + $0x6b8] sm:$0xff]
        %v984 = vld [vmem:[%s739 + $0x6c0] sm:$0xff]
        %v985 = vld [vmem:[%s739 + $0x6c8] sm:$0xff]
        %v986 = vld [vmem:[%s739 + $0x6d0] sm:$0xff]
        %v987 = vld [vmem:[%s739 + $0x6d8] sm:$0xff]
        %v988 = vld [vmem:[%s739 + $0x6e0] sm:$0xff]
        %v989 = vld [vmem:[%s739 + $0x6e8] sm:$0xff]
        %v990 = vld [vmem:[%s739 + $0x6f0] sm:$0xff]
        %v991 = vld [vmem:[%s739 + $0x6f8] sm:$0xff]
        %v992 = vld [vmem:[%s739 + $0x700] sm:$0xff]
        %v993 = vld [vmem:[%s739 + $0x708] sm:$0xff]
        %v994 = vld [vmem:[%s739 + $0x710] sm:$0xff]
        %v995 = vld [vmem:[%s739 + $0x718] sm:$0xff]
        %v996 = vld [vmem:[%s739 + $0x720] sm:$0xff]
        %v997 = vld [vmem:[%s739 + $0x728] sm:$0xff]
        %v998 = vld [vmem:[%s739 + $0x730] sm:$0xff]
        %v999 = vld [vmem:[%s739 + $0x738] sm:$0xff]
        %v1000 = vld [vmem:[%s739 + $0x740] sm:$0xff]
        %v1001 = vld [vmem:[%s739 + $0x748] sm:$0xff]
        %v1002 = vld [vmem:[%s739 + $0x750] sm:$0xff]
        %v1003 = vld [vmem:[%s739 + $0x758] sm:$0xff]
        %v1004 = vld [vmem:[%s739 + $0x760] sm:$0xff]
        %v1005 = vld [vmem:[%s739 + $0x768] sm:$0xff]
        %v1006 = vld [vmem:[%s739 + $0x770] sm:$0xff]
        %v1007 = vld [vmem:[%s739 + $0x778] sm:$0xff]
        %v1008 = vld [vmem:[%s739 + $0x780] sm:$0xff]
        %v1009 = vld [vmem:[%s739 + $0x788] sm:$0xff]
        %v1010 = vld [vmem:[%s739 + $0x790] sm:$0xff]
        %v1011 = vld [vmem:[%s739 + $0x798] sm:$0xff]
        %v1012 = vld [vmem:[%s739 + $0x7a0] sm:$0xff]
        %v1013 = vld [vmem:[%s739 + $0x7a8] sm:$0xff]
        %v1014 = vld [vmem:[%s739 + $0x7b0] sm:$0xff]
        %v1015 = vld [vmem:[%s739 + $0x7b8] sm:$0xff]
        %v1016 = vld [vmem:[%s739 + $0x7c0] sm:$0xff]
        %v1017 = vld [vmem:[%s739 + $0x7c8] sm:$0xff]
        %v1018 = vld [vmem:[%s739 + $0x7d0] sm:$0xff]
        %v1019 = vld [vmem:[%s739 + $0x7d8] sm:$0xff]
        %v1020 = vld [vmem:[%s739 + $0x7e0] sm:$0xff]
        %v1021 = vld [vmem:[%s739 + $0x7e8] sm:$0xff]
        %v1022 = vld [vmem:[%s739 + $0x7f0] sm:$0xff]
        %v1023 = vld [vmem:[%s739 + $0x7f8] sm:$0xff]
        %v1024 = vld [vmem:[%s739 + $0x800] sm:$0xff]
        %v1025 = vld [vmem:[%s739 + $0x808] sm:$0xff]
        %v1026 = vld [vmem:[%s739 + $0x810] sm:$0xff]
        %v1027 = vld [vmem:[%s739 + $0x818] sm:$0xff]
        %v1028 = vld [vmem:[%s739 + $0x820] sm:$0xff]
        %v1029 = vld [vmem:[%s739 + $0x828] sm:$0xff]
        %v1030 = vld [vmem:[%s739 + $0x830] sm:$0xff]
        %v1031 = vld [vmem:[%s739 + $0x838] sm:$0xff]
        %v1032 = vld [vmem:[%s739 + $0x840] sm:$0xff]
        %v1033 = vld [vmem:[%s739 + $0x848] sm:$0xff]
        %v1034 = vld [vmem:[%s739 + $0x850] sm:$0xff]
        %v1035 = vld [vmem:[%s739 + $0x858] sm:$0xff]
        %v1036 = vld [vmem:[%s739 + $0x860] sm:$0xff]
        %v1037 = vld [vmem:[%s739 + $0x868] sm:$0xff]
        %v1038 = vld [vmem:[%s739 + $0x870] sm:$0xff]
        %v1039 = vld [vmem:[%s739 + $0x878] sm:$0xff]
        %v1040 = vld [vmem:[%s739 + $0x880] sm:$0xff]
        %v1041 = vld [vmem:[%s739 + $0x888] sm:$0xff]
        %v1042 = vld [vmem:[%s739 + $0x890] sm:$0xff]
        %v1043 = vld [vmem:[%s739 + $0x898] sm:$0xff]
        %v1044 = vld [vmem:[%s739 + $0x8a0] sm:$0xff]
        %v1045 = vld [vmem:[%s739 + $0x8a8] sm:$0xff]
        %v1046 = vld [vmem:[%s739 + $0x8b0] sm:$0xff]
        %v1047 = vld [vmem:[%s739 + $0x8b8] sm:$0xff]
        %v1048 = vld [vmem:[%s739 + $0x8c0] sm:$0xff]
        %v1049 = vld [vmem:[%s739 + $0x8c8] sm:$0xff]
        %v1050 = vld [vmem:[%s739 + $0x8d0] sm:$0xff]
        %v1051 = vld [vmem:[%s739 + $0x8d8] sm:$0xff]
        %v1052 = vld [vmem:[%s739 + $0x8e0] sm:$0xff]
        %v1053 = vld [vmem:[%s739 + $0x8e8] sm:$0xff]
        %v1054 = vld [vmem:[%s739 + $0x8f0] sm:$0xff]
        %v1055 = vld [vmem:[%s739 + $0x8f8] sm:$0xff]
        %v1056 = vld [vmem:[%s2] sm:$0xf]
        %1058 = vset.pattern.permute.xlu0 0
        %1059 = vperm.xlu0 %1058, %v1056
        %v1060 = vpop.permute.xlu0 %1059
        %vm1062 = vcmask 588800
        %v1064 = vsel %vm1062, %v767, 0
        %1066 = vmatprep.subr.mxu0 0.0
        %1067 = vmatpush1.msra.mxu0 0.0
        %1068 = vmatprep.subr.mxu0 0.0
        %1069 = vmatpush1.msra.mxu0 0.0
        %1070 = vmatprep.subr.mxu0 0.0
        %1071 = vmatpush1.msra.mxu0 0.0
        %1072 = vmatprep.subr.mxu0 0.0
        %1073 = vmatpush1.msra.mxu0 0.0
        %1074 = vmatprep.subr.mxu0 0.0
        %1075 = vmatpush1.msra.mxu0 0.0
        %1076 = vmatprep.subr.mxu0 0.0
        %1077 = vmatpush1.msra.mxu0 0.0
        %1078 = vmatprep.subr.mxu0 0.0
        %1079 = vmatpush1.msra.mxu0 0.0
        %1080 = vmatprep.subr.mxu0 %v1025
        %1081 = vmatpush1.msra.mxu0 %v1024
        %1082 = vmatprep.subr.mxu0 %v993
        %1083 = vmatpush1.msra.mxu0 %v992
        %1084 = vmatprep.subr.mxu0 %v961
        %1085 = vmatpush1.msra.mxu0 %v960
        %1086 = vmatprep.subr.mxu0 %v929
        %1087 = vmatpush1.msra.mxu0 %v928
        %1088 = vmatprep.subr.mxu0 %v897
        %1089 = vmatpush1.msra.mxu0 %v896
        %1090 = vmatprep.subr.mxu0 %v865
        %1091 = vmatpush1.msra.mxu0 %v864
        %1092 = vmatprep.subr.mxu0 %v833
        %1093 = vmatpush1.msra.mxu0 %v832
        %1094 = vmatprep.subr.mxu0 %v801
        %1095 = vmatpush1.msra.mxu0 %v800
        %1096 = vmatprep.subr.mxu0 %v769
        %1097 = vmatpush1.msra.mxu0 %v768
        %1098 = vmatprep.subr.mxu0 0.0
        %1099 = vmatpush2.msra.mxu0 0.0
        %1100 = vmatprep.subr.mxu0 0.0
        %1101 = vmatpush2.msra.mxu0 0.0
        %1102 = vmatprep.subr.mxu0 0.0
        %1103 = vmatpush2.msra.mxu0 0.0
        %1104 = vmatprep.subr.mxu0 0.0
        %1105 = vmatpush2.msra.mxu0 0.0
        %1106 = vmatprep.subr.mxu0 0.0
        %1107 = vmatpush2.msra.mxu0 0.0
        %1108 = vmatprep.subr.mxu0 0.0
        %1109 = vmatpush2.msra.mxu0 0.0
        %1110 = vmatprep.subr.mxu0 0.0
        %1111 = vmatpush2.msra.mxu0 0.0
        %1112 = vmatprep.subr.mxu0 0.0
        %1113 = vmatpush2.msra.mxu0 0.0
        %1114 = vmatprep.subr.mxu0 0.0
        %1115 = vmatpush2.msra.mxu0 0.0
        %1116 = vmatprep.subr.mxu0 0.0
        %1117 = vmatpush2.msra.mxu0 0.0
        %1118 = vmatprep.subr.mxu0 0.0
        %1119 = vmatpush2.msra.mxu0 0.0
        %1120 = vmatprep.subr.mxu0 0.0
        %1121 = vmatpush2.msra.mxu0 0.0
        %1122 = vmatprep.subr.mxu0 0.0
        %1123 = vmatpush2.msra.mxu0 0.0
        %1124 = vmatprep.subr.mxu0 0.0
        %1125 = vmatpush2.msra.mxu0 0.0
        %1126 = vmatprep.subr.mxu0 0.0
        %1127 = vmatpush2.msra.mxu0 0.0
        %1128 = vmatprep.subr.mxu0 0.0
        %1129 = vmatpush2.msra.mxu0 0.0
        %1130 = vmatprep.mubr.f32.mxu0 0.0
        %1131 = vmatmul.mubr.f32.gmra.mxu0 %v1064
        %v1132 = vpop.f32.mrf.mxu0
        %v1133 = vadd.f32 %v1060, %v1132
        %v1134 = vpop.f32.mrf.mxu0
        %v1135 = vadd.f32 %v1060, %v1134
        %1136 = vdwg.mxu0
        %1137 = vmatprep.subr.mxu0 0.0
        %1138 = vmatpush1.msra.mxu0 0.0
        %1139 = vmatprep.subr.mxu0 0.0
        %1140 = vmatpush1.msra.mxu0 0.0
        %1141 = vmatprep.subr.mxu0 0.0
        %1142 = vmatpush1.msra.mxu0 0.0
        %1143 = vmatprep.subr.mxu0 0.0
        %1144 = vmatpush1.msra.mxu0 0.0
        %1145 = vmatprep.subr.mxu0 0.0
        %1146 = vmatpush1.msra.mxu0 0.0
        %1147 = vmatprep.subr.mxu0 0.0
        %1148 = vmatpush1.msra.mxu0 0.0
        %1149 = vmatprep.subr.mxu0 0.0
        %1150 = vmatpush1.msra.mxu0 0.0
        %1151 = vmatprep.subr.mxu0 %v1027
        %1152 = vmatpush1.msra.mxu0 %v1026
        %1153 = vmatprep.subr.mxu0 %v995
        %1154 = vmatpush1.msra.mxu0 %v994
        %1155 = vmatprep.subr.mxu0 %v963
        %1156 = vmatpush1.msra.mxu0 %v962
        %1157 = vmatprep.subr.mxu0 %v931
        %1158 = vmatpush1.msra.mxu0 %v930
        %1159 = vmatprep.subr.mxu0 %v899
        %1160 = vmatpush1.msra.mxu0 %v898
        %1161 = vmatprep.subr.mxu0 %v867
        %1162 = vmatpush1.msra.mxu0 %v866
        %1163 = vmatprep.subr.mxu0 %v835
        %1164 = vmatpush1.msra.mxu0 %v834
        %1165 = vmatprep.subr.mxu0 %v803
        %1166 = vmatpush1.msra.mxu0 %v802
        %1167 = vmatprep.subr.mxu0 %v771
        %1168 = vmatpush1.msra.mxu0 %v770
        %1169 = vmatprep.subr.mxu0 0.0
        %1170 = vmatpush2.msra.mxu0 0.0
        %1171 = vmatprep.subr.mxu0 0.0
        %1172 = vmatpush2.msra.mxu0 0.0
        %1173 = vmatprep.subr.mxu0 0.0
        %1174 = vmatpush2.msra.mxu0 0.0
        %1175 = vmatprep.subr.mxu0 0.0
        %1176 = vmatpush2.msra.mxu0 0.0
        %1177 = vmatprep.subr.mxu0 0.0
        %1178 = vmatpush2.msra.mxu0 0.0
        %1179 = vmatprep.subr.mxu0 0.0
        %1180 = vmatpush2.msra.mxu0 0.0
        %1181 = vmatprep.subr.mxu0 0.0
        %1182 = vmatpush2.msra.mxu0 0.0
        %1183 = vmatprep.subr.mxu0 0.0
        %1184 = vmatpush2.msra.mxu0 0.0
        %1185 = vmatprep.subr.mxu0 0.0
        %1186 = vmatpush2.msra.mxu0 0.0
        %1187 = vmatprep.subr.mxu0 0.0
        %1188 = vmatpush2.msra.mxu0 0.0
        %1189 = vmatprep.subr.mxu0 0.0
        %1190 = vmatpush2.msra.mxu0 0.0
        %1191 = vmatprep.subr.mxu0 0.0
        %1192 = vmatpush2.msra.mxu0 0.0
        %1193 = vmatprep.subr.mxu0 0.0
        %1194 = vmatpush2.msra.mxu0 0.0
        %1195 = vmatprep.subr.mxu0 0.0
        %1196 = vmatpush2.msra.mxu0 0.0
        %1197 = vmatprep.subr.mxu0 0.0
        %1198 = vmatpush2.msra.mxu0 0.0
        %1199 = vmatprep.subr.mxu0 0.0
        %1200 = vmatpush2.msra.mxu0 0.0
        %1201 = vmatprep.mubr.f32.mxu0 0.0
        %1202 = vmatmul.mubr.f32.gmra.mxu0 %v1064
        %v1203 = vpop.f32.mrf.mxu0
        %v1204 = vadd.f32 %v1060, %v1203
        %v1205 = vpop.f32.mrf.mxu0
        %v1206 = vadd.f32 %v1060, %v1205
        %1207 = vdwg.mxu0
        %1208 = vmatprep.subr.mxu0 0.0
        %1209 = vmatpush1.msra.mxu0 0.0
        %1210 = vmatprep.subr.mxu0 0.0
        %1211 = vmatpush1.msra.mxu0 0.0
        %1212 = vmatprep.subr.mxu0 0.0
        %1213 = vmatpush1.msra.mxu0 0.0
        %1214 = vmatprep.subr.mxu0 0.0
        %1215 = vmatpush1.msra.mxu0 0.0
        %1216 = vmatprep.subr.mxu0 0.0
        %1217 = vmatpush1.msra.mxu0 0.0
        %1218 = vmatprep.subr.mxu0 0.0
        %1219 = vmatpush1.msra.mxu0 0.0
        %1220 = vmatprep.subr.mxu0 0.0
        %1221 = vmatpush1.msra.mxu0 0.0
        %1222 = vmatprep.subr.mxu0 %v1029
        %1223 = vmatpush1.msra.mxu0 %v1028
        %1224 = vmatprep.subr.mxu0 %v997
        %1225 = vmatpush1.msra.mxu0 %v996
        %1226 = vmatprep.subr.mxu0 %v965
        %1227 = vmatpush1.msra.mxu0 %v964
        %1228 = vmatprep.subr.mxu0 %v933
        %1229 = vmatpush1.msra.mxu0 %v932
        %1230 = vmatprep.subr.mxu0 %v901
        %1231 = vmatpush1.msra.mxu0 %v900
        %1232 = vmatprep.subr.mxu0 %v869
        %1233 = vmatpush1.msra.mxu0 %v868
        %1234 = vmatprep.subr.mxu0 %v837
        %1235 = vmatpush1.msra.mxu0 %v836
        %1236 = vmatprep.subr.mxu0 %v805
        %1237 = vmatpush1.msra.mxu0 %v804
        %1238 = vmatprep.subr.mxu0 %v773
        %1239 = vmatpush1.msra.mxu0 %v772
        %1240 = vmatprep.subr.mxu0 0.0
        %1241 = vmatpush2.msra.mxu0 0.0
        %1242 = vmatprep.subr.mxu0 0.0
        %1243 = vmatpush2.msra.mxu0 0.0
        %1244 = vmatprep.subr.mxu0 0.0
        %1245 = vmatpush2.msra.mxu0 0.0
        %1246 = vmatprep.subr.mxu0 0.0
        %1247 = vmatpush2.msra.mxu0 0.0
        %1248 = vmatprep.subr.mxu0 0.0
        %1249 = vmatpush2.msra.mxu0 0.0
        %1250 = vmatprep.subr.mxu0 0.0
        %1251 = vmatpush2.msra.mxu0 0.0
        %1252 = vmatprep.subr.mxu0 0.0
        %1253 = vmatpush2.msra.mxu0 0.0
        %1254 = vmatprep.subr.mxu0 0.0
        %1255 = vmatpush2.msra.mxu0 0.0
        %1256 = vmatprep.subr.mxu0 0.0
        %1257 = vmatpush2.msra.mxu0 0.0
        %1258 = vmatprep.subr.mxu0 0.0
        %1259 = vmatpush2.msra.mxu0 0.0
        %1260 = vmatprep.subr.mxu0 0.0
        %1261 = vmatpush2.msra.mxu0 0.0
        %1262 = vmatprep.subr.mxu0 0.0
        %1263 = vmatpush2.msra.mxu0 0.0
        %1264 = vmatprep.subr.mxu0 0.0
        %1265 = vmatpush2.msra.mxu0 0.0
        %1266 = vmatprep.subr.mxu0 0.0
        %1267 = vmatpush2.msra.mxu0 0.0
        %1268 = vmatprep.subr.mxu0 0.0
        %1269 = vmatpush2.msra.mxu0 0.0
        %1270 = vmatprep.subr.mxu0 0.0
        %1271 = vmatpush2.msra.mxu0 0.0
        %1272 = vmatprep.mubr.f32.mxu0 0.0
        %1273 = vmatmul.mubr.f32.gmra.mxu0 %v1064
        %v1274 = vpop.f32.mrf.mxu0
        %v1275 = vadd.f32 %v1060, %v1274
        %v1276 = vpop.f32.mrf.mxu0
        %v1277 = vadd.f32 %v1060, %v1276
        %1278 = vdwg.mxu0
        %1279 = vmatprep.subr.mxu0 0.0
        %1280 = vmatpush1.msra.mxu0 0.0
        %1281 = vmatprep.subr.mxu0 0.0
        %1282 = vmatpush1.msra.mxu0 0.0
        %1283 = vmatprep.subr.mxu0 0.0
        %1284 = vmatpush1.msra.mxu0 0.0
        %1285 = vmatprep.subr.mxu0 0.0
        %1286 = vmatpush1.msra.mxu0 0.0
        %1287 = vmatprep.subr.mxu0 0.0
        %1288 = vmatpush1.msra.mxu0 0.0
        %1289 = vmatprep.subr.mxu0 0.0
        %1290 = vmatpush1.msra.mxu0 0.0
        %1291 = vmatprep.subr.mxu0 0.0
        %1292 = vmatpush1.msra.mxu0 0.0
        %1293 = vmatprep.subr.mxu0 %v1031
        %1294 = vmatpush1.msra.mxu0 %v1030
        %1295 = vmatprep.subr.mxu0 %v999
        %1296 = vmatpush1.msra.mxu0 %v998
        %1297 = vmatprep.subr.mxu0 %v967
        %1298 = vmatpush1.msra.mxu0 %v966
        %1299 = vmatprep.subr.mxu0 %v935
        %1300 = vmatpush1.msra.mxu0 %v934
        %1301 = vmatprep.subr.mxu0 %v903
        %1302 = vmatpush1.msra.mxu0 %v902
        %1303 = vmatprep.subr.mxu0 %v871
        %1304 = vmatpush1.msra.mxu0 %v870
        %1305 = vmatprep.subr.mxu0 %v839
        %1306 = vmatpush1.msra.mxu0 %v838
        %1307 = vmatprep.subr.mxu0 %v807
        %1308 = vmatpush1.msra.mxu0 %v806
        %1309 = vmatprep.subr.mxu0 %v775
        %1310 = vmatpush1.msra.mxu0 %v774
        %1311 = vmatprep.subr.mxu0 0.0
        %1312 = vmatpush2.msra.mxu0 0.0
        %1313 = vmatprep.subr.mxu0 0.0
        %1314 = vmatpush2.msra.mxu0 0.0
        %1315 = vmatprep.subr.mxu0 0.0
        %1316 = vmatpush2.msra.mxu0 0.0
        %1317 = vmatprep.subr.mxu0 0.0
        %1318 = vmatpush2.msra.mxu0 0.0
        %1319 = vmatprep.subr.mxu0 0.0
        %1320 = vmatpush2.msra.mxu0 0.0
        %1321 = vmatprep.subr.mxu0 0.0
        %1322 = vmatpush2.msra.mxu0 0.0
        %1323 = vmatprep.subr.mxu0 0.0
        %1324 = vmatpush2.msra.mxu0 0.0
        %1325 = vmatprep.subr.mxu0 0.0
        %1326 = vmatpush2.msra.mxu0 0.0
        %1327 = vmatprep.subr.mxu0 0.0
        %1328 = vmatpush2.msra.mxu0 0.0
        %1329 = vmatprep.subr.mxu0 0.0
        %1330 = vmatpush2.msra.mxu0 0.0
        %1331 = vmatprep.subr.mxu0 0.0
        %1332 = vmatpush2.msra.mxu0 0.0
        %1333 = vmatprep.subr.mxu0 0.0
        %1334 = vmatpush2.msra.mxu0 0.0
        %1335 = vmatprep.subr.mxu0 0.0
        %1336 = vmatpush2.msra.mxu0 0.0
        %1337 = vmatprep.subr.mxu0 0.0
        %1338 = vmatpush2.msra.mxu0 0.0
        %1339 = vmatprep.subr.mxu0 0.0
        %1340 = vmatpush2.msra.mxu0 0.0
        %1341 = vmatprep.subr.mxu0 0.0
        %1342 = vmatpush2.msra.mxu0 0.0
        %1343 = vmatprep.mubr.f32.mxu0 0.0
        %1344 = vmatmul.mubr.f32.gmra.mxu0 %v1064
        %v1345 = vpop.f32.mrf.mxu0
        %v1346 = vadd.f32 %v1060, %v1345
        %v1347 = vpop.f32.mrf.mxu0
        %v1348 = vadd.f32 %v1060, %v1347
        %1349 = vdwg.mxu0
        %1350 = vmatprep.subr.mxu0 0.0
        %1351 = vmatpush1.msra.mxu0 0.0
        %1352 = vmatprep.subr.mxu0 0.0
        %1353 = vmatpush1.msra.mxu0 0.0
        %1354 = vmatprep.subr.mxu0 0.0
        %1355 = vmatpush1.msra.mxu0 0.0
        %1356 = vmatprep.subr.mxu0 0.0
        %1357 = vmatpush1.msra.mxu0 0.0
        %1358 = vmatprep.subr.mxu0 0.0
        %1359 = vmatpush1.msra.mxu0 0.0
        %1360 = vmatprep.subr.mxu0 0.0
        %1361 = vmatpush1.msra.mxu0 0.0
        %1362 = vmatprep.subr.mxu0 0.0
        %1363 = vmatpush1.msra.mxu0 0.0
        %1364 = vmatprep.subr.mxu0 %v1033
        %1365 = vmatpush1.msra.mxu0 %v1032
        %1366 = vmatprep.subr.mxu0 %v1001
        %1367 = vmatpush1.msra.mxu0 %v1000
        %1368 = vmatprep.subr.mxu0 %v969
        %1369 = vmatpush1.msra.mxu0 %v968
        %1370 = vmatprep.subr.mxu0 %v937
        %1371 = vmatpush1.msra.mxu0 %v936
        %1372 = vmatprep.subr.mxu0 %v905
        %1373 = vmatpush1.msra.mxu0 %v904
        %1374 = vmatprep.subr.mxu0 %v873
        %1375 = vmatpush1.msra.mxu0 %v872
        %1376 = vmatprep.subr.mxu0 %v841
        %1377 = vmatpush1.msra.mxu0 %v840
        %1378 = vmatprep.subr.mxu0 %v809
        %1379 = vmatpush1.msra.mxu0 %v808
        %1380 = vmatprep.subr.mxu0 %v777
        %1381 = vmatpush1.msra.mxu0 %v776
        %1382 = vmatprep.subr.mxu0 0.0
        %1383 = vmatpush2.msra.mxu0 0.0
        %1384 = vmatprep.subr.mxu0 0.0
        %1385 = vmatpush2.msra.mxu0 0.0
        %1386 = vmatprep.subr.mxu0 0.0
        %1387 = vmatpush2.msra.mxu0 0.0
        %1388 = vmatprep.subr.mxu0 0.0
        %1389 = vmatpush2.msra.mxu0 0.0
        %1390 = vmatprep.subr.mxu0 0.0
        %1391 = vmatpush2.msra.mxu0 0.0
        %1392 = vmatprep.subr.mxu0 0.0
        %1393 = vmatpush2.msra.mxu0 0.0
        %1394 = vmatprep.subr.mxu0 0.0
        %1395 = vmatpush2.msra.mxu0 0.0
        %1396 = vmatprep.subr.mxu0 0.0
        %1397 = vmatpush2.msra.mxu0 0.0
        %1398 = vmatprep.subr.mxu0 0.0
        %1399 = vmatpush2.msra.mxu0 0.0
        %1400 = vmatprep.subr.mxu0 0.0
        %1401 = vmatpush2.msra.mxu0 0.0
        %1402 = vmatprep.subr.mxu0 0.0
        %1403 = vmatpush2.msra.mxu0 0.0
        %1404 = vmatprep.subr.mxu0 0.0
        %1405 = vmatpush2.msra.mxu0 0.0
        %1406 = vmatprep.subr.mxu0 0.0
        %1407 = vmatpush2.msra.mxu0 0.0
        %1408 = vmatprep.subr.mxu0 0.0
        %1409 = vmatpush2.msra.mxu0 0.0
        %1410 = vmatprep.subr.mxu0 0.0
        %1411 = vmatpush2.msra.mxu0 0.0
        %1412 = vmatprep.subr.mxu0 0.0
        %1413 = vmatpush2.msra.mxu0 0.0
        %1414 = vmatprep.mubr.f32.mxu0 0.0
        %1415 = vmatmul.mubr.f32.gmra.mxu0 %v1064
        %v1416 = vpop.f32.mrf.mxu0
        %v1417 = vadd.f32 %v1060, %v1416
        %v1418 = vpop.f32.mrf.mxu0
        %v1419 = vadd.f32 %v1060, %v1418
        %1420 = vdwg.mxu0
        %1421 = vmatprep.subr.mxu0 0.0
        %1422 = vmatpush1.msra.mxu0 0.0
        %1423 = vmatprep.subr.mxu0 0.0
        %1424 = vmatpush1.msra.mxu0 0.0
        %1425 = vmatprep.subr.mxu0 0.0
        %1426 = vmatpush1.msra.mxu0 0.0
        %1427 = vmatprep.subr.mxu0 0.0
        %1428 = vmatpush1.msra.mxu0 0.0
        %1429 = vmatprep.subr.mxu0 0.0
        %1430 = vmatpush1.msra.mxu0 0.0
        %1431 = vmatprep.subr.mxu0 0.0
        %1432 = vmatpush1.msra.mxu0 0.0
        %1433 = vmatprep.subr.mxu0 0.0
        %1434 = vmatpush1.msra.mxu0 0.0
        %1435 = vmatprep.subr.mxu0 %v1035
        %1436 = vmatpush1.msra.mxu0 %v1034
        %1437 = vmatprep.subr.mxu0 %v1003
        %1438 = vmatpush1.msra.mxu0 %v1002
        %1439 = vmatprep.subr.mxu0 %v971
        %1440 = vmatpush1.msra.mxu0 %v970
        %1441 = vmatprep.subr.mxu0 %v939
        %1442 = vmatpush1.msra.mxu0 %v938
        %1443 = vmatprep.subr.mxu0 %v907
        %1444 = vmatpush1.msra.mxu0 %v906
        %1445 = vmatprep.subr.mxu0 %v875
        %1446 = vmatpush1.msra.mxu0 %v874
        %1447 = vmatprep.subr.mxu0 %v843
        %1448 = vmatpush1.msra.mxu0 %v842
        %1449 = vmatprep.subr.mxu0 %v811
        %1450 = vmatpush1.msra.mxu0 %v810
        %1451 = vmatprep.subr.mxu0 %v779
        %1452 = vmatpush1.msra.mxu0 %v778
        %1453 = vmatprep.subr.mxu0 0.0
        %1454 = vmatpush2.msra.mxu0 0.0
        %1455 = vmatprep.subr.mxu0 0.0
        %1456 = vmatpush2.msra.mxu0 0.0
        %1457 = vmatprep.subr.mxu0 0.0
        %1458 = vmatpush2.msra.mxu0 0.0
        %1459 = vmatprep.subr.mxu0 0.0
        %1460 = vmatpush2.msra.mxu0 0.0
        %1461 = vmatprep.subr.mxu0 0.0
        %1462 = vmatpush2.msra.mxu0 0.0
        %1463 = vmatprep.subr.mxu0 0.0
        %1464 = vmatpush2.msra.mxu0 0.0
        %1465 = vmatprep.subr.mxu0 0.0
        %1466 = vmatpush2.msra.mxu0 0.0
        %1467 = vmatprep.subr.mxu0 0.0
        %1468 = vmatpush2.msra.mxu0 0.0
        %1469 = vmatprep.subr.mxu0 0.0
        %1470 = vmatpush2.msra.mxu0 0.0
        %1471 = vmatprep.subr.mxu0 0.0
        %1472 = vmatpush2.msra.mxu0 0.0
        %1473 = vmatprep.subr.mxu0 0.0
        %1474 = vmatpush2.msra.mxu0 0.0
        %1475 = vmatprep.subr.mxu0 0.0
        %1476 = vmatpush2.msra.mxu0 0.0
        %1477 = vmatprep.subr.mxu0 0.0
        %1478 = vmatpush2.msra.mxu0 0.0
        %1479 = vmatprep.subr.mxu0 0.0
        %1480 = vmatpush2.msra.mxu0 0.0
        %1481 = vmatprep.subr.mxu0 0.0
        %1482 = vmatpush2.msra.mxu0 0.0
        %1483 = vmatprep.subr.mxu0 0.0
        %1484 = vmatpush2.msra.mxu0 0.0
        %1485 = vmatprep.mubr.f32.mxu0 0.0
        %1486 = vmatmul.mubr.f32.gmra.mxu0 %v1064
        %v1487 = vpop.f32.mrf.mxu0
        %v1488 = vadd.f32 %v1060, %v1487
        %v1489 = vpop.f32.mrf.mxu0
        %v1490 = vadd.f32 %v1060, %v1489
        %1491 = vdwg.mxu0
        %1492 = vmatprep.subr.mxu0 0.0
        %1493 = vmatpush1.msra.mxu0 0.0
        %1494 = vmatprep.subr.mxu0 0.0
        %1495 = vmatpush1.msra.mxu0 0.0
        %1496 = vmatprep.subr.mxu0 0.0
        %1497 = vmatpush1.msra.mxu0 0.0
        %1498 = vmatprep.subr.mxu0 0.0
        %1499 = vmatpush1.msra.mxu0 0.0
        %1500 = vmatprep.subr.mxu0 0.0
        %1501 = vmatpush1.msra.mxu0 0.0
        %1502 = vmatprep.subr.mxu0 0.0
        %1503 = vmatpush1.msra.mxu0 0.0
        %1504 = vmatprep.subr.mxu0 0.0
        %1505 = vmatpush1.msra.mxu0 0.0
        %1506 = vmatprep.subr.mxu0 %v1037
        %1507 = vmatpush1.msra.mxu0 %v1036
        %1508 = vmatprep.subr.mxu0 %v1005
        %1509 = vmatpush1.msra.mxu0 %v1004
        %1510 = vmatprep.subr.mxu0 %v973
        %1511 = vmatpush1.msra.mxu0 %v972
        %1512 = vmatprep.subr.mxu0 %v941
        %1513 = vmatpush1.msra.mxu0 %v940
        %1514 = vmatprep.subr.mxu0 %v909
        %1515 = vmatpush1.msra.mxu0 %v908
        %1516 = vmatprep.subr.mxu0 %v877
        %1517 = vmatpush1.msra.mxu0 %v876
        %1518 = vmatprep.subr.mxu0 %v845
        %1519 = vmatpush1.msra.mxu0 %v844
        %1520 = vmatprep.subr.mxu0 %v813
        %1521 = vmatpush1.msra.mxu0 %v812
        %1522 = vmatprep.subr.mxu0 %v781
        %1523 = vmatpush1.msra.mxu0 %v780
        %1524 = vmatprep.subr.mxu0 0.0
        %1525 = vmatpush2.msra.mxu0 0.0
        %1526 = vmatprep.subr.mxu0 0.0
        %1527 = vmatpush2.msra.mxu0 0.0
        %1528 = vmatprep.subr.mxu0 0.0
        %1529 = vmatpush2.msra.mxu0 0.0
        %1530 = vmatprep.subr.mxu0 0.0
        %1531 = vmatpush2.msra.mxu0 0.0
        %1532 = vmatprep.subr.mxu0 0.0
        %1533 = vmatpush2.msra.mxu0 0.0
        %1534 = vmatprep.subr.mxu0 0.0
        %1535 = vmatpush2.msra.mxu0 0.0
        %1536 = vmatprep.subr.mxu0 0.0
        %1537 = vmatpush2.msra.mxu0 0.0
        %1538 = vmatprep.subr.mxu0 0.0
        %1539 = vmatpush2.msra.mxu0 0.0
        %1540 = vmatprep.subr.mxu0 0.0
        %1541 = vmatpush2.msra.mxu0 0.0
        %1542 = vmatprep.subr.mxu0 0.0
        %1543 = vmatpush2.msra.mxu0 0.0
        %1544 = vmatprep.subr.mxu0 0.0
        %1545 = vmatpush2.msra.mxu0 0.0
        %1546 = vmatprep.subr.mxu0 0.0
        %1547 = vmatpush2.msra.mxu0 0.0
        %1548 = vmatprep.subr.mxu0 0.0
        %1549 = vmatpush2.msra.mxu0 0.0
        %1550 = vmatprep.subr.mxu0 0.0
        %1551 = vmatpush2.msra.mxu0 0.0
        %1552 = vmatprep.subr.mxu0 0.0
        %1553 = vmatpush2.msra.mxu0 0.0
        %1554 = vmatprep.subr.mxu0 0.0
        %1555 = vmatpush2.msra.mxu0 0.0
        %1556 = vmatprep.mubr.f32.mxu0 0.0
        %1557 = vmatmul.mubr.f32.gmra.mxu0 %v1064
        %v1558 = vpop.f32.mrf.mxu0
        %v1559 = vadd.f32 %v1060, %v1558
        %v1560 = vpop.f32.mrf.mxu0
        %v1561 = vadd.f32 %v1060, %v1560
        %1562 = vdwg.mxu0
        %1563 = vmatprep.subr.mxu0 0.0
        %1564 = vmatpush1.msra.mxu0 0.0
        %1565 = vmatprep.subr.mxu0 0.0
        %1566 = vmatpush1.msra.mxu0 0.0
        %1567 = vmatprep.subr.mxu0 0.0
        %1568 = vmatpush1.msra.mxu0 0.0
        %1569 = vmatprep.subr.mxu0 0.0
        %1570 = vmatpush1.msra.mxu0 0.0
        %1571 = vmatprep.subr.mxu0 0.0
        %1572 = vmatpush1.msra.mxu0 0.0
        %1573 = vmatprep.subr.mxu0 0.0
        %1574 = vmatpush1.msra.mxu0 0.0
        %1575 = vmatprep.subr.mxu0 0.0
        %1576 = vmatpush1.msra.mxu0 0.0
        %1577 = vmatprep.subr.mxu0 %v1039
        %1578 = vmatpush1.msra.mxu0 %v1038
        %1579 = vmatprep.subr.mxu0 %v1007
        %1580 = vmatpush1.msra.mxu0 %v1006
        %1581 = vmatprep.subr.mxu0 %v975
        %1582 = vmatpush1.msra.mxu0 %v974
        %1583 = vmatprep.subr.mxu0 %v943
        %1584 = vmatpush1.msra.mxu0 %v942
        %1585 = vmatprep.subr.mxu0 %v911
        %1586 = vmatpush1.msra.mxu0 %v910
        %1587 = vmatprep.subr.mxu0 %v879
        %1588 = vmatpush1.msra.mxu0 %v878
        %1589 = vmatprep.subr.mxu0 %v847
        %1590 = vmatpush1.msra.mxu0 %v846
        %1591 = vmatprep.subr.mxu0 %v815
        %1592 = vmatpush1.msra.mxu0 %v814
        %1593 = vmatprep.subr.mxu0 %v783
        %1594 = vmatpush1.msra.mxu0 %v782
        %1595 = vmatprep.subr.mxu0 0.0
        %1596 = vmatpush2.msra.mxu0 0.0
        %1597 = vmatprep.subr.mxu0 0.0
        %1598 = vmatpush2.msra.mxu0 0.0
        %1599 = vmatprep.subr.mxu0 0.0
        %1600 = vmatpush2.msra.mxu0 0.0
        %1601 = vmatprep.subr.mxu0 0.0
        %1602 = vmatpush2.msra.mxu0 0.0
        %1603 = vmatprep.subr.mxu0 0.0
        %1604 = vmatpush2.msra.mxu0 0.0
        %1605 = vmatprep.subr.mxu0 0.0
        %1606 = vmatpush2.msra.mxu0 0.0
        %1607 = vmatprep.subr.mxu0 0.0
        %1608 = vmatpush2.msra.mxu0 0.0
        %1609 = vmatprep.subr.mxu0 0.0
        %1610 = vmatpush2.msra.mxu0 0.0
        %1611 = vmatprep.subr.mxu0 0.0
        %1612 = vmatpush2.msra.mxu0 0.0
        %1613 = vmatprep.subr.mxu0 0.0
        %1614 = vmatpush2.msra.mxu0 0.0
        %1615 = vmatprep.subr.mxu0 0.0
        %1616 = vmatpush2.msra.mxu0 0.0
        %1617 = vmatprep.subr.mxu0 0.0
        %1618 = vmatpush2.msra.mxu0 0.0
        %1619 = vmatprep.subr.mxu0 0.0
        %1620 = vmatpush2.msra.mxu0 0.0
        %1621 = vmatprep.subr.mxu0 0.0
        %1622 = vmatpush2.msra.mxu0 0.0
        %1623 = vmatprep.subr.mxu0 0.0
        %1624 = vmatpush2.msra.mxu0 0.0
        %1625 = vmatprep.subr.mxu0 0.0
        %1626 = vmatpush2.msra.mxu0 0.0
        %1627 = vmatprep.mubr.f32.mxu0 0.0
        %1628 = vmatmul.mubr.f32.gmra.mxu0 %v1064
        %v1629 = vpop.f32.mrf.mxu0
        %v1630 = vadd.f32 %v1060, %v1629
        %v1631 = vpop.f32.mrf.mxu0
        %v1632 = vadd.f32 %v1060, %v1631
        %1633 = vdwg.mxu0
        %1634 = vmatprep.subr.mxu0 0.0
        %1635 = vmatpush1.msra.mxu0 0.0
        %1636 = vmatprep.subr.mxu0 0.0
        %1637 = vmatpush1.msra.mxu0 0.0
        %1638 = vmatprep.subr.mxu0 0.0
        %1639 = vmatpush1.msra.mxu0 0.0
        %1640 = vmatprep.subr.mxu0 0.0
        %1641 = vmatpush1.msra.mxu0 0.0
        %1642 = vmatprep.subr.mxu0 0.0
        %1643 = vmatpush1.msra.mxu0 0.0
        %1644 = vmatprep.subr.mxu0 0.0
        %1645 = vmatpush1.msra.mxu0 0.0
        %1646 = vmatprep.subr.mxu0 0.0
        %1647 = vmatpush1.msra.mxu0 0.0
        %1648 = vmatprep.subr.mxu0 %v1041
        %1649 = vmatpush1.msra.mxu0 %v1040
        %1650 = vmatprep.subr.mxu0 %v1009
        %1651 = vmatpush1.msra.mxu0 %v1008
        %1652 = vmatprep.subr.mxu0 %v977
        %1653 = vmatpush1.msra.mxu0 %v976
        %1654 = vmatprep.subr.mxu0 %v945
        %1655 = vmatpush1.msra.mxu0 %v944
        %1656 = vmatprep.subr.mxu0 %v913
        %1657 = vmatpush1.msra.mxu0 %v912
        %1658 = vmatprep.subr.mxu0 %v881
        %1659 = vmatpush1.msra.mxu0 %v880
        %1660 = vmatprep.subr.mxu0 %v849
        %1661 = vmatpush1.msra.mxu0 %v848
        %1662 = vmatprep.subr.mxu0 %v817
        %1663 = vmatpush1.msra.mxu0 %v816
        %1664 = vmatprep.subr.mxu0 %v785
        %1665 = vmatpush1.msra.mxu0 %v784
        %1666 = vmatprep.subr.mxu0 0.0
        %1667 = vmatpush2.msra.mxu0 0.0
        %1668 = vmatprep.subr.mxu0 0.0
        %1669 = vmatpush2.msra.mxu0 0.0
        %1670 = vmatprep.subr.mxu0 0.0
        %1671 = vmatpush2.msra.mxu0 0.0
        %1672 = vmatprep.subr.mxu0 0.0
        %1673 = vmatpush2.msra.mxu0 0.0
        %1674 = vmatprep.subr.mxu0 0.0
        %1675 = vmatpush2.msra.mxu0 0.0
        %1676 = vmatprep.subr.mxu0 0.0
        %1677 = vmatpush2.msra.mxu0 0.0
        %1678 = vmatprep.subr.mxu0 0.0
        %1679 = vmatpush2.msra.mxu0 0.0
        %1680 = vmatprep.subr.mxu0 0.0
        %1681 = vmatpush2.msra.mxu0 0.0
        %1682 = vmatprep.subr.mxu0 0.0
        %1683 = vmatpush2.msra.mxu0 0.0
        %1684 = vmatprep.subr.mxu0 0.0
        %1685 = vmatpush2.msra.mxu0 0.0
        %1686 = vmatprep.subr.mxu0 0.0
        %1687 = vmatpush2.msra.mxu0 0.0
        %1688 = vmatprep.subr.mxu0 0.0
        %1689 = vmatpush2.msra.mxu0 0.0
        %1690 = vmatprep.subr.mxu0 0.0
        %1691 = vmatpush2.msra.mxu0 0.0
        %1692 = vmatprep.subr.mxu0 0.0
        %1693 = vmatpush2.msra.mxu0 0.0
        %1694 = vmatprep.subr.mxu0 0.0
        %1695 = vmatpush2.msra.mxu0 0.0
        %1696 = vmatprep.subr.mxu0 0.0
        %1697 = vmatpush2.msra.mxu0 0.0
        %1698 = vmatprep.mubr.f32.mxu0 0.0
        %1699 = vmatmul.mubr.f32.gmra.mxu0 %v1064
        %v1700 = vpop.f32.mrf.mxu0
        %v1701 = vadd.f32 %v1060, %v1700
        %v1702 = vpop.f32.mrf.mxu0
        %v1703 = vadd.f32 %v1060, %v1702
        %1704 = vdwg.mxu0
        %1705 = vmatprep.subr.mxu0 0.0
        %1706 = vmatpush1.msra.mxu0 0.0
        %1707 = vmatprep.subr.mxu0 0.0
        %1708 = vmatpush1.msra.mxu0 0.0
        %1709 = vmatprep.subr.mxu0 0.0
        %1710 = vmatpush1.msra.mxu0 0.0
        %1711 = vmatprep.subr.mxu0 0.0
        %1712 = vmatpush1.msra.mxu0 0.0
        %1713 = vmatprep.subr.mxu0 0.0
        %1714 = vmatpush1.msra.mxu0 0.0
        %1715 = vmatprep.subr.mxu0 0.0
        %1716 = vmatpush1.msra.mxu0 0.0
        %1717 = vmatprep.subr.mxu0 0.0
        %1718 = vmatpush1.msra.mxu0 0.0
        %1719 = vmatprep.subr.mxu0 %v1043
        %1720 = vmatpush1.msra.mxu0 %v1042
        %1721 = vmatprep.subr.mxu0 %v1011
        %1722 = vmatpush1.msra.mxu0 %v1010
        %1723 = vmatprep.subr.mxu0 %v979
        %1724 = vmatpush1.msra.mxu0 %v978
        %1725 = vmatprep.subr.mxu0 %v947
        %1726 = vmatpush1.msra.mxu0 %v946
        %1727 = vmatprep.subr.mxu0 %v915
        %1728 = vmatpush1.msra.mxu0 %v914
        %1729 = vmatprep.subr.mxu0 %v883
        %1730 = vmatpush1.msra.mxu0 %v882
        %1731 = vmatprep.subr.mxu0 %v851
        %1732 = vmatpush1.msra.mxu0 %v850
        %1733 = vmatprep.subr.mxu0 %v819
        %1734 = vmatpush1.msra.mxu0 %v818
        %1735 = vmatprep.subr.mxu0 %v787
        %1736 = vmatpush1.msra.mxu0 %v786
        %1737 = vmatprep.subr.mxu0 0.0
        %1738 = vmatpush2.msra.mxu0 0.0
        %1739 = vmatprep.subr.mxu0 0.0
        %1740 = vmatpush2.msra.mxu0 0.0
        %1741 = vmatprep.subr.mxu0 0.0
        %1742 = vmatpush2.msra.mxu0 0.0
        %1743 = vmatprep.subr.mxu0 0.0
        %1744 = vmatpush2.msra.mxu0 0.0
        %1745 = vmatprep.subr.mxu0 0.0
        %1746 = vmatpush2.msra.mxu0 0.0
        %1747 = vmatprep.subr.mxu0 0.0
        %1748 = vmatpush2.msra.mxu0 0.0
        %1749 = vmatprep.subr.mxu0 0.0
        %1750 = vmatpush2.msra.mxu0 0.0
        %1751 = vmatprep.subr.mxu0 0.0
        %1752 = vmatpush2.msra.mxu0 0.0
        %1753 = vmatprep.subr.mxu0 0.0
        %1754 = vmatpush2.msra.mxu0 0.0
        %1755 = vmatprep.subr.mxu0 0.0
        %1756 = vmatpush2.msra.mxu0 0.0
        %1757 = vmatprep.subr.mxu0 0.0
        %1758 = vmatpush2.msra.mxu0 0.0
        %1759 = vmatprep.subr.mxu0 0.0
        %1760 = vmatpush2.msra.mxu0 0.0
        %1761 = vmatprep.subr.mxu0 0.0
        %1762 = vmatpush2.msra.mxu0 0.0
        %1763 = vmatprep.subr.mxu0 0.0
        %1764 = vmatpush2.msra.mxu0 0.0
        %1765 = vmatprep.subr.mxu0 0.0
        %1766 = vmatpush2.msra.mxu0 0.0
        %1767 = vmatprep.subr.mxu0 0.0
        %1768 = vmatpush2.msra.mxu0 0.0
        %1769 = vmatprep.mubr.f32.mxu0 0.0
        %1770 = vmatmul.mubr.f32.gmra.mxu0 %v1064
        %v1771 = vpop.f32.mrf.mxu0
        %v1772 = vadd.f32 %v1060, %v1771
        %v1773 = vpop.f32.mrf.mxu0
        %v1774 = vadd.f32 %v1060, %v1773
        %1775 = vdwg.mxu0
        %1776 = vmatprep.subr.mxu0 0.0
        %1777 = vmatpush1.msra.mxu0 0.0
        %1778 = vmatprep.subr.mxu0 0.0
        %1779 = vmatpush1.msra.mxu0 0.0
        %1780 = vmatprep.subr.mxu0 0.0
        %1781 = vmatpush1.msra.mxu0 0.0
        %1782 = vmatprep.subr.mxu0 0.0
        %1783 = vmatpush1.msra.mxu0 0.0
        %1784 = vmatprep.subr.mxu0 0.0
        %1785 = vmatpush1.msra.mxu0 0.0
        %1786 = vmatprep.subr.mxu0 0.0
        %1787 = vmatpush1.msra.mxu0 0.0
        %1788 = vmatprep.subr.mxu0 0.0
        %1789 = vmatpush1.msra.mxu0 0.0
        %1790 = vmatprep.subr.mxu0 %v1045
        %1791 = vmatpush1.msra.mxu0 %v1044
        %1792 = vmatprep.subr.mxu0 %v1013
        %1793 = vmatpush1.msra.mxu0 %v1012
        %1794 = vmatprep.subr.mxu0 %v981
        %1795 = vmatpush1.msra.mxu0 %v980
        %1796 = vmatprep.subr.mxu0 %v949
        %1797 = vmatpush1.msra.mxu0 %v948
        %1798 = vmatprep.subr.mxu0 %v917
        %1799 = vmatpush1.msra.mxu0 %v916
        %1800 = vmatprep.subr.mxu0 %v885
        %1801 = vmatpush1.msra.mxu0 %v884
        %1802 = vmatprep.subr.mxu0 %v853
        %1803 = vmatpush1.msra.mxu0 %v852
        %1804 = vmatprep.subr.mxu0 %v821
        %1805 = vmatpush1.msra.mxu0 %v820
        %1806 = vmatprep.subr.mxu0 %v789
        %1807 = vmatpush1.msra.mxu0 %v788
        %1808 = vmatprep.subr.mxu0 0.0
        %1809 = vmatpush2.msra.mxu0 0.0
        %1810 = vmatprep.subr.mxu0 0.0
        %1811 = vmatpush2.msra.mxu0 0.0
        %1812 = vmatprep.subr.mxu0 0.0
        %1813 = vmatpush2.msra.mxu0 0.0
        %1814 = vmatprep.subr.mxu0 0.0
        %1815 = vmatpush2.msra.mxu0 0.0
        %1816 = vmatprep.subr.mxu0 0.0
        %1817 = vmatpush2.msra.mxu0 0.0
        %1818 = vmatprep.subr.mxu0 0.0
        %1819 = vmatpush2.msra.mxu0 0.0
        %1820 = vmatprep.subr.mxu0 0.0
        %1821 = vmatpush2.msra.mxu0 0.0
        %1822 = vmatprep.subr.mxu0 0.0
        %1823 = vmatpush2.msra.mxu0 0.0
        %1824 = vmatprep.subr.mxu0 0.0
        %1825 = vmatpush2.msra.mxu0 0.0
        %1826 = vmatprep.subr.mxu0 0.0
        %1827 = vmatpush2.msra.mxu0 0.0
        %1828 = vmatprep.subr.mxu0 0.0
        %1829 = vmatpush2.msra.mxu0 0.0
        %1830 = vmatprep.subr.mxu0 0.0
        %1831 = vmatpush2.msra.mxu0 0.0
        %1832 = vmatprep.subr.mxu0 0.0
        %1833 = vmatpush2.msra.mxu0 0.0
        %1834 = vmatprep.subr.mxu0 0.0
        %1835 = vmatpush2.msra.mxu0 0.0
        %1836 = vmatprep.subr.mxu0 0.0
        %1837 = vmatpush2.msra.mxu0 0.0
        %1838 = vmatprep.subr.mxu0 0.0
        %1839 = vmatpush2.msra.mxu0 0.0
        %1840 = vmatprep.mubr.f32.mxu0 0.0
        %1841 = vmatmul.mubr.f32.gmra.mxu0 %v1064
        %v1842 = vpop.f32.mrf.mxu0
        %v1843 = vadd.f32 %v1060, %v1842
        %v1844 = vpop.f32.mrf.mxu0
        %v1845 = vadd.f32 %v1060, %v1844
        %1846 = vdwg.mxu0
        %1847 = vmatprep.subr.mxu0 0.0
        %1848 = vmatpush1.msra.mxu0 0.0
        %1849 = vmatprep.subr.mxu0 0.0
        %1850 = vmatpush1.msra.mxu0 0.0
        %1851 = vmatprep.subr.mxu0 0.0
        %1852 = vmatpush1.msra.mxu0 0.0
        %1853 = vmatprep.subr.mxu0 0.0
        %1854 = vmatpush1.msra.mxu0 0.0
        %1855 = vmatprep.subr.mxu0 0.0
        %1856 = vmatpush1.msra.mxu0 0.0
        %1857 = vmatprep.subr.mxu0 0.0
        %1858 = vmatpush1.msra.mxu0 0.0
        %1859 = vmatprep.subr.mxu0 0.0
        %1860 = vmatpush1.msra.mxu0 0.0
        %1861 = vmatprep.subr.mxu0 %v1047
        %1862 = vmatpush1.msra.mxu0 %v1046
        %1863 = vmatprep.subr.mxu0 %v1015
        %1864 = vmatpush1.msra.mxu0 %v1014
        %1865 = vmatprep.subr.mxu0 %v983
        %1866 = vmatpush1.msra.mxu0 %v982
        %1867 = vmatprep.subr.mxu0 %v951
        %1868 = vmatpush1.msra.mxu0 %v950
        %1869 = vmatprep.subr.mxu0 %v919
        %1870 = vmatpush1.msra.mxu0 %v918
        %1871 = vmatprep.subr.mxu0 %v887
        %1872 = vmatpush1.msra.mxu0 %v886
        %1873 = vmatprep.subr.mxu0 %v855
        %1874 = vmatpush1.msra.mxu0 %v854
        %1875 = vmatprep.subr.mxu0 %v823
        %1876 = vmatpush1.msra.mxu0 %v822
        %1877 = vmatprep.subr.mxu0 %v791
        %1878 = vmatpush1.msra.mxu0 %v790
        %1879 = vmatprep.subr.mxu0 0.0
        %1880 = vmatpush2.msra.mxu0 0.0
        %1881 = vmatprep.subr.mxu0 0.0
        %1882 = vmatpush2.msra.mxu0 0.0
        %1883 = vmatprep.subr.mxu0 0.0
        %1884 = vmatpush2.msra.mxu0 0.0
        %1885 = vmatprep.subr.mxu0 0.0
        %1886 = vmatpush2.msra.mxu0 0.0
        %1887 = vmatprep.subr.mxu0 0.0
        %1888 = vmatpush2.msra.mxu0 0.0
        %1889 = vmatprep.subr.mxu0 0.0
        %1890 = vmatpush2.msra.mxu0 0.0
        %1891 = vmatprep.subr.mxu0 0.0
        %1892 = vmatpush2.msra.mxu0 0.0
        %1893 = vmatprep.subr.mxu0 0.0
        %1894 = vmatpush2.msra.mxu0 0.0
        %1895 = vmatprep.subr.mxu0 0.0
        %1896 = vmatpush2.msra.mxu0 0.0
        %1897 = vmatprep.subr.mxu0 0.0
        %1898 = vmatpush2.msra.mxu0 0.0
        %1899 = vmatprep.subr.mxu0 0.0
        %1900 = vmatpush2.msra.mxu0 0.0
        %1901 = vmatprep.subr.mxu0 0.0
        %1902 = vmatpush2.msra.mxu0 0.0
        %1903 = vmatprep.subr.mxu0 0.0
        %1904 = vmatpush2.msra.mxu0 0.0
        %1905 = vmatprep.subr.mxu0 0.0
        %1906 = vmatpush2.msra.mxu0 0.0
        %1907 = vmatprep.subr.mxu0 0.0
        %1908 = vmatpush2.msra.mxu0 0.0
        %1909 = vmatprep.subr.mxu0 0.0
        %1910 = vmatpush2.msra.mxu0 0.0
        %1911 = vmatprep.mubr.f32.mxu0 0.0
        %1912 = vmatmul.mubr.f32.gmra.mxu0 %v1064
        %v1913 = vpop.f32.mrf.mxu0
        %v1914 = vadd.f32 %v1060, %v1913
        %v1915 = vpop.f32.mrf.mxu0
        %v1916 = vadd.f32 %v1060, %v1915
        %1917 = vdwg.mxu0
        %1918 = vmatprep.subr.mxu0 0.0
        %1919 = vmatpush1.msra.mxu0 0.0
        %1920 = vmatprep.subr.mxu0 0.0
        %1921 = vmatpush1.msra.mxu0 0.0
        %1922 = vmatprep.subr.mxu0 0.0
        %1923 = vmatpush1.msra.mxu0 0.0
        %1924 = vmatprep.subr.mxu0 0.0
        %1925 = vmatpush1.msra.mxu0 0.0
        %1926 = vmatprep.subr.mxu0 0.0
        %1927 = vmatpush1.msra.mxu0 0.0
        %1928 = vmatprep.subr.mxu0 0.0
        %1929 = vmatpush1.msra.mxu0 0.0
        %1930 = vmatprep.subr.mxu0 0.0
        %1931 = vmatpush1.msra.mxu0 0.0
        %1932 = vmatprep.subr.mxu0 %v1049
        %1933 = vmatpush1.msra.mxu0 %v1048
        %1934 = vmatprep.subr.mxu0 %v1017
        %1935 = vmatpush1.msra.mxu0 %v1016
        %1936 = vmatprep.subr.mxu0 %v985
        %1937 = vmatpush1.msra.mxu0 %v984
        %1938 = vmatprep.subr.mxu0 %v953
        %1939 = vmatpush1.msra.mxu0 %v952
        %1940 = vmatprep.subr.mxu0 %v921
        %1941 = vmatpush1.msra.mxu0 %v920
        %1942 = vmatprep.subr.mxu0 %v889
        %1943 = vmatpush1.msra.mxu0 %v888
        %1944 = vmatprep.subr.mxu0 %v857
        %1945 = vmatpush1.msra.mxu0 %v856
        %1946 = vmatprep.subr.mxu0 %v825
        %1947 = vmatpush1.msra.mxu0 %v824
        %1948 = vmatprep.subr.mxu0 %v793
        %1949 = vmatpush1.msra.mxu0 %v792
        %1950 = vmatprep.subr.mxu0 0.0
        %1951 = vmatpush2.msra.mxu0 0.0
        %1952 = vmatprep.subr.mxu0 0.0
        %1953 = vmatpush2.msra.mxu0 0.0
        %1954 = vmatprep.subr.mxu0 0.0
        %1955 = vmatpush2.msra.mxu0 0.0
        %1956 = vmatprep.subr.mxu0 0.0
        %1957 = vmatpush2.msra.mxu0 0.0
        %1958 = vmatprep.subr.mxu0 0.0
        %1959 = vmatpush2.msra.mxu0 0.0
        %1960 = vmatprep.subr.mxu0 0.0
        %1961 = vmatpush2.msra.mxu0 0.0
        %1962 = vmatprep.subr.mxu0 0.0
        %1963 = vmatpush2.msra.mxu0 0.0
        %1964 = vmatprep.subr.mxu0 0.0
        %1965 = vmatpush2.msra.mxu0 0.0
        %1966 = vmatprep.subr.mxu0 0.0
        %1967 = vmatpush2.msra.mxu0 0.0
        %1968 = vmatprep.subr.mxu0 0.0
        %1969 = vmatpush2.msra.mxu0 0.0
        %1970 = vmatprep.subr.mxu0 0.0
        %1971 = vmatpush2.msra.mxu0 0.0
        %1972 = vmatprep.subr.mxu0 0.0
        %1973 = vmatpush2.msra.mxu0 0.0
        %1974 = vmatprep.subr.mxu0 0.0
        %1975 = vmatpush2.msra.mxu0 0.0
        %1976 = vmatprep.subr.mxu0 0.0
        %1977 = vmatpush2.msra.mxu0 0.0
        %1978 = vmatprep.subr.mxu0 0.0
        %1979 = vmatpush2.msra.mxu0 0.0
        %1980 = vmatprep.subr.mxu0 0.0
        %1981 = vmatpush2.msra.mxu0 0.0
        %1982 = vmatprep.mubr.f32.mxu0 0.0
        %1983 = vmatmul.mubr.f32.gmra.mxu0 %v1064
        %v1984 = vpop.f32.mrf.mxu0
        %v1985 = vadd.f32 %v1060, %v1984
        %v1986 = vpop.f32.mrf.mxu0
        %v1987 = vadd.f32 %v1060, %v1986
        %1988 = vdwg.mxu0
        %1989 = vmatprep.subr.mxu0 0.0
        %1990 = vmatpush1.msra.mxu0 0.0
        %1991 = vmatprep.subr.mxu0 0.0
        %1992 = vmatpush1.msra.mxu0 0.0
        %1993 = vmatprep.subr.mxu0 0.0
        %1994 = vmatpush1.msra.mxu0 0.0
        %1995 = vmatprep.subr.mxu0 0.0
        %1996 = vmatpush1.msra.mxu0 0.0
        %1997 = vmatprep.subr.mxu0 0.0
        %1998 = vmatpush1.msra.mxu0 0.0
        %1999 = vmatprep.subr.mxu0 0.0
        %2000 = vmatpush1.msra.mxu0 0.0
        %2001 = vmatprep.subr.mxu0 0.0
        %2002 = vmatpush1.msra.mxu0 0.0
        %2003 = vmatprep.subr.mxu0 %v1051
        %2004 = vmatpush1.msra.mxu0 %v1050
        %2005 = vmatprep.subr.mxu0 %v1019
        %2006 = vmatpush1.msra.mxu0 %v1018
        %2007 = vmatprep.subr.mxu0 %v987
        %2008 = vmatpush1.msra.mxu0 %v986
        %2009 = vmatprep.subr.mxu0 %v955
        %2010 = vmatpush1.msra.mxu0 %v954
        %2011 = vmatprep.subr.mxu0 %v923
        %2012 = vmatpush1.msra.mxu0 %v922
        %2013 = vmatprep.subr.mxu0 %v891
        %2014 = vmatpush1.msra.mxu0 %v890
        %2015 = vmatprep.subr.mxu0 %v859
        %2016 = vmatpush1.msra.mxu0 %v858
        %2017 = vmatprep.subr.mxu0 %v827
        %2018 = vmatpush1.msra.mxu0 %v826
        %2019 = vmatprep.subr.mxu0 %v795
        %2020 = vmatpush1.msra.mxu0 %v794
        %2021 = vmatprep.subr.mxu0 0.0
        %2022 = vmatpush2.msra.mxu0 0.0
        %2023 = vmatprep.subr.mxu0 0.0
        %2024 = vmatpush2.msra.mxu0 0.0
        %2025 = vmatprep.subr.mxu0 0.0
        %2026 = vmatpush2.msra.mxu0 0.0
        %2027 = vmatprep.subr.mxu0 0.0
        %2028 = vmatpush2.msra.mxu0 0.0
        %2029 = vmatprep.subr.mxu0 0.0
        %2030 = vmatpush2.msra.mxu0 0.0
        %2031 = vmatprep.subr.mxu0 0.0
        %2032 = vmatpush2.msra.mxu0 0.0
        %2033 = vmatprep.subr.mxu0 0.0
        %2034 = vmatpush2.msra.mxu0 0.0
        %2035 = vmatprep.subr.mxu0 0.0
        %2036 = vmatpush2.msra.mxu0 0.0
        %2037 = vmatprep.subr.mxu0 0.0
        %2038 = vmatpush2.msra.mxu0 0.0
        %2039 = vmatprep.subr.mxu0 0.0
        %2040 = vmatpush2.msra.mxu0 0.0
        %2041 = vmatprep.subr.mxu0 0.0
        %2042 = vmatpush2.msra.mxu0 0.0
        %2043 = vmatprep.subr.mxu0 0.0
        %2044 = vmatpush2.msra.mxu0 0.0
        %2045 = vmatprep.subr.mxu0 0.0
        %2046 = vmatpush2.msra.mxu0 0.0
        %2047 = vmatprep.subr.mxu0 0.0
        %2048 = vmatpush2.msra.mxu0 0.0
        %2049 = vmatprep.subr.mxu0 0.0
        %2050 = vmatpush2.msra.mxu0 0.0
        %2051 = vmatprep.subr.mxu0 0.0
        %2052 = vmatpush2.msra.mxu0 0.0
        %2053 = vmatprep.mubr.f32.mxu0 0.0
        %2054 = vmatmul.mubr.f32.gmra.mxu0 %v1064
        %v2055 = vpop.f32.mrf.mxu0
        %v2056 = vadd.f32 %v1060, %v2055
        %v2057 = vpop.f32.mrf.mxu0
        %v2058 = vadd.f32 %v1060, %v2057
        %2059 = vdwg.mxu0
        %2060 = vmatprep.subr.mxu0 0.0
        %2061 = vmatpush1.msra.mxu0 0.0
        %2062 = vmatprep.subr.mxu0 0.0
        %2063 = vmatpush1.msra.mxu0 0.0
        %2064 = vmatprep.subr.mxu0 0.0
        %2065 = vmatpush1.msra.mxu0 0.0
        %2066 = vmatprep.subr.mxu0 0.0
        %2067 = vmatpush1.msra.mxu0 0.0
        %2068 = vmatprep.subr.mxu0 0.0
        %2069 = vmatpush1.msra.mxu0 0.0
        %2070 = vmatprep.subr.mxu0 0.0
        %2071 = vmatpush1.msra.mxu0 0.0
        %2072 = vmatprep.subr.mxu0 0.0
        %2073 = vmatpush1.msra.mxu0 0.0
        %2074 = vmatprep.subr.mxu0 %v1053
        %2075 = vmatpush1.msra.mxu0 %v1052
        %2076 = vmatprep.subr.mxu0 %v1021
        %2077 = vmatpush1.msra.mxu0 %v1020
        %2078 = vmatprep.subr.mxu0 %v989
        %2079 = vmatpush1.msra.mxu0 %v988
        %2080 = vmatprep.subr.mxu0 %v957
        %2081 = vmatpush1.msra.mxu0 %v956
        %2082 = vmatprep.subr.mxu0 %v925
        %2083 = vmatpush1.msra.mxu0 %v924
        %2084 = vmatprep.subr.mxu0 %v893
        %2085 = vmatpush1.msra.mxu0 %v892
        %2086 = vmatprep.subr.mxu0 %v861
        %2087 = vmatpush1.msra.mxu0 %v860
        %2088 = vmatprep.subr.mxu0 %v829
        %2089 = vmatpush1.msra.mxu0 %v828
        %2090 = vmatprep.subr.mxu0 %v797
        %2091 = vmatpush1.msra.mxu0 %v796
        %2092 = vmatprep.subr.mxu0 0.0
        %2093 = vmatpush2.msra.mxu0 0.0
        %2094 = vmatprep.subr.mxu0 0.0
        %2095 = vmatpush2.msra.mxu0 0.0
        %2096 = vmatprep.subr.mxu0 0.0
        %2097 = vmatpush2.msra.mxu0 0.0
        %2098 = vmatprep.subr.mxu0 0.0
        %2099 = vmatpush2.msra.mxu0 0.0
        %2100 = vmatprep.subr.mxu0 0.0
        %2101 = vmatpush2.msra.mxu0 0.0
        %2102 = vmatprep.subr.mxu0 0.0
        %2103 = vmatpush2.msra.mxu0 0.0
        %2104 = vmatprep.subr.mxu0 0.0
        %2105 = vmatpush2.msra.mxu0 0.0
        %2106 = vmatprep.subr.mxu0 0.0
        %2107 = vmatpush2.msra.mxu0 0.0
        %2108 = vmatprep.subr.mxu0 0.0
        %2109 = vmatpush2.msra.mxu0 0.0
        %2110 = vmatprep.subr.mxu0 0.0
        %2111 = vmatpush2.msra.mxu0 0.0
        %2112 = vmatprep.subr.mxu0 0.0
        %2113 = vmatpush2.msra.mxu0 0.0
        %2114 = vmatprep.subr.mxu0 0.0
        %2115 = vmatpush2.msra.mxu0 0.0
        %2116 = vmatprep.subr.mxu0 0.0
        %2117 = vmatpush2.msra.mxu0 0.0
        %2118 = vmatprep.subr.mxu0 0.0
        %2119 = vmatpush2.msra.mxu0 0.0
        %2120 = vmatprep.subr.mxu0 0.0
        %2121 = vmatpush2.msra.mxu0 0.0
        %2122 = vmatprep.subr.mxu0 0.0
        %2123 = vmatpush2.msra.mxu0 0.0
        %2124 = vmatprep.mubr.f32.mxu0 0.0
        %2125 = vmatmul.mubr.f32.gmra.mxu0 %v1064
        %v2126 = vpop.f32.mrf.mxu0
        %v2127 = vadd.f32 %v1060, %v2126
        %v2128 = vpop.f32.mrf.mxu0
        %v2129 = vadd.f32 %v1060, %v2128
        %2130 = vdwg.mxu0
        %2131 = vmatprep.subr.mxu0 0.0
        %2132 = vmatpush1.msra.mxu0 0.0
        %2133 = vmatprep.subr.mxu0 0.0
        %2134 = vmatpush1.msra.mxu0 0.0
        %2135 = vmatprep.subr.mxu0 0.0
        %2136 = vmatpush1.msra.mxu0 0.0
        %2137 = vmatprep.subr.mxu0 0.0
        %2138 = vmatpush1.msra.mxu0 0.0
        %2139 = vmatprep.subr.mxu0 0.0
        %2140 = vmatpush1.msra.mxu0 0.0
        %2141 = vmatprep.subr.mxu0 0.0
        %2142 = vmatpush1.msra.mxu0 0.0
        %2143 = vmatprep.subr.mxu0 0.0
        %2144 = vmatpush1.msra.mxu0 0.0
        %2145 = vmatprep.subr.mxu0 %v1055
        %2146 = vmatpush1.msra.mxu0 %v1054
        %2147 = vmatprep.subr.mxu0 %v1023
        %2148 = vmatpush1.msra.mxu0 %v1022
        %2149 = vmatprep.subr.mxu0 %v991
        %2150 = vmatpush1.msra.mxu0 %v990
        %2151 = vmatprep.subr.mxu0 %v959
        %2152 = vmatpush1.msra.mxu0 %v958
        %2153 = vmatprep.subr.mxu0 %v927
        %2154 = vmatpush1.msra.mxu0 %v926
        %2155 = vmatprep.subr.mxu0 %v895
        %2156 = vmatpush1.msra.mxu0 %v894
        %2157 = vmatprep.subr.mxu0 %v863
        %2158 = vmatpush1.msra.mxu0 %v862
        %2159 = vmatprep.subr.mxu0 %v831
        %2160 = vmatpush1.msra.mxu0 %v830
        %2161 = vmatprep.subr.mxu0 %v799
        %2162 = vmatpush1.msra.mxu0 %v798
        %2163 = vmatprep.subr.mxu0 0.0
        %2164 = vmatpush2.msra.mxu0 0.0
        %2165 = vmatprep.subr.mxu0 0.0
        %2166 = vmatpush2.msra.mxu0 0.0
        %2167 = vmatprep.subr.mxu0 0.0
        %2168 = vmatpush2.msra.mxu0 0.0
        %2169 = vmatprep.subr.mxu0 0.0
        %2170 = vmatpush2.msra.mxu0 0.0
        %2171 = vmatprep.subr.mxu0 0.0
        %2172 = vmatpush2.msra.mxu0 0.0
        %2173 = vmatprep.subr.mxu0 0.0
        %2174 = vmatpush2.msra.mxu0 0.0
        %2175 = vmatprep.subr.mxu0 0.0
        %2176 = vmatpush2.msra.mxu0 0.0
        %2177 = vmatprep.subr.mxu0 0.0
        %2178 = vmatpush2.msra.mxu0 0.0
        %2179 = vmatprep.subr.mxu0 0.0
        %2180 = vmatpush2.msra.mxu0 0.0
        %2181 = vmatprep.subr.mxu0 0.0
        %2182 = vmatpush2.msra.mxu0 0.0
        %2183 = vmatprep.subr.mxu0 0.0
        %2184 = vmatpush2.msra.mxu0 0.0
        %2185 = vmatprep.subr.mxu0 0.0
        %2186 = vmatpush2.msra.mxu0 0.0
        %2187 = vmatprep.subr.mxu0 0.0
        %2188 = vmatpush2.msra.mxu0 0.0
        %2189 = vmatprep.subr.mxu0 0.0
        %2190 = vmatpush2.msra.mxu0 0.0
        %2191 = vmatprep.subr.mxu0 0.0
        %2192 = vmatpush2.msra.mxu0 0.0
        %2193 = vmatprep.subr.mxu0 0.0
        %2194 = vmatpush2.msra.mxu0 0.0
        %2195 = vmatprep.mubr.f32.mxu0 0.0
        %2196 = vmatmul.mubr.f32.gmra.mxu0 %v1064
        %v2197 = vpop.f32.mrf.mxu0
        %v2198 = vadd.f32 %v1060, %v2197
        %v2199 = vpop.f32.mrf.mxu0
        %v2200 = vadd.f32 %v1060, %v2199
        %2201 = vdwg.mxu0
        %v2202 = vtanh.pop %v1133
        %v2203 = vtanh.pop %v1135
        %v2204 = vtanh.pop %v1204
        %v2205 = vtanh.pop %v1206
        %v2206 = vtanh.pop %v1275
        %v2207 = vtanh.pop %v1277
        %v2208 = vtanh.pop %v1346
        %v2209 = vtanh.pop %v1348
        %v2210 = vtanh.pop %v1417
        %v2211 = vtanh.pop %v1419
        %v2212 = vtanh.pop %v1488
        %v2213 = vtanh.pop %v1490
        %v2214 = vtanh.pop %v1559
        %v2215 = vtanh.pop %v1561
        %v2216 = vtanh.pop %v1630
        %v2217 = vtanh.pop %v1632
        %v2218 = vtanh.pop %v1701
        %v2219 = vtanh.pop %v1703
        %v2220 = vtanh.pop %v1772
        %v2221 = vtanh.pop %v1774
        %v2222 = vtanh.pop %v1843
        %v2223 = vtanh.pop %v1845
        %v2224 = vtanh.pop %v1914
        %v2225 = vtanh.pop %v1916
        %v2226 = vtanh.pop %v1985
        %v2227 = vtanh.pop %v1987
        %v2228 = vtanh.pop %v2056
        %v2229 = vtanh.pop %v2058
        %v2230 = vtanh.pop %v2127
        %v2231 = vtanh.pop %v2129
        %v2232 = vtanh.pop %v2198
        %v2233 = vtanh.pop %v2200
        %v2266 = vcombine.low %v2202, %v2203
        %v2267 = vcombine.low %v2204, %v2205
        %v2268 = vcombine.low %v2206, %v2207
        %v2269 = vcombine.low %v2208, %v2209
        %v2270 = vcombine.low %v2210, %v2211
        %v2271 = vcombine.low %v2212, %v2213
        %v2272 = vcombine.low %v2214, %v2215
        %v2273 = vcombine.low %v2216, %v2217
        %v2274 = vcombine.low %v2218, %v2219
        %v2275 = vcombine.low %v2220, %v2221
        %v2276 = vcombine.low %v2222, %v2223
        %v2277 = vcombine.low %v2224, %v2225
        %v2278 = vcombine.low %v2226, %v2227
        %v2279 = vcombine.low %v2228, %v2229
        %v2280 = vcombine.low %v2230, %v2231
        %v2281 = vcombine.low %v2232, %v2233
        %2298 = vst [vmem:[%s765] sm:$0xff] %v2266
        %2299 = vst [vmem:[%s765 + $0x8] sm:$0xff] %v2267
        %2300 = vst [vmem:[%s765 + $0x10] sm:$0xff] %v2268
        %2301 = vst [vmem:[%s765 + $0x18] sm:$0xff] %v2269
        %2302 = vst [vmem:[%s765 + $0x20] sm:$0xff] %v2270
        %2303 = vst [vmem:[%s765 + $0x28] sm:$0xff] %v2271
        %2304 = vst [vmem:[%s765 + $0x30] sm:$0xff] %v2272
        %2305 = vst [vmem:[%s765 + $0x38] sm:$0xff] %v2273
        %2306 = vst [vmem:[%s765 + $0x40] sm:$0xff] %v2274
        %2307 = vst [vmem:[%s765 + $0x48] sm:$0xff] %v2275
        %2308 = vst [vmem:[%s765 + $0x50] sm:$0xff] %v2276
        %2309 = vst [vmem:[%s765 + $0x58] sm:$0xff] %v2277
        %2310 = vst [vmem:[%s765 + $0x60] sm:$0xff] %v2278
        %2311 = vst [vmem:[%s765 + $0x68] sm:$0xff] %v2279
        %2312 = vst [vmem:[%s765 + $0x70] sm:$0xff] %v2280
        %2313 = vst [vmem:[%s765 + $0x78] sm:$0xff] %v2281
        %s2314 = smul.u32 32, %s14
        %p2315 = scmp.lt.s32.totalorder %s2314, 63
        %s2316 = scalar_select %p2315, %s2314, 63
        %s2317 = smul.addr %s2316, 4
        %s2318 = scalar_lea.vmem %s3, %s2317
        // Predicated region
        $region56: #{conv_transpose_net.3} parent=50 // pred_check
          %p2319 = pneg %p100
        $region57: #{conv_transpose_net.3} parent=50 // pred_check_branch
          %2321 = sbr.rel (%p2319) target = $region59
        $region58: #{conv_transpose_net.3} parent=50 // pred_region
          %s2322 = smul.u32 32, %s14
        $region59: #{conv_transpose_net.3} parent=50 // pred_fallthru
          _
      $region51: #{conv_transpose_net.3} parent=5 // pred_fallthru
        _
      %p2323 = scmp.le.s32.totalorder 2, %s9
      // Predicated region
      $region60: #{conv_transpose_net.3} parent=5 // pred_check
        %p2324 = pneg %p2323
      $region61: #{conv_transpose_net.3} parent=5 // pred_check_branch
        %2326 = sbr.rel (%p2324) target = $region63
      $region62: #{conv_transpose_net.3} parent=5 // pred_region
        %s2327 = ssub.s32 %s9, 2
        // Predicated region
        $region64: #{conv_transpose_net.3} parent=62 // pred_check
          %p2328 = pneg %p106
        $region65: #{conv_transpose_net.3} parent=62 // pred_check_branch
          %2330 = sbr.rel (%p2328) target = $region67
        $region66: #{conv_transpose_net.3} parent=62 // pred_region
          %s2331 = smul.u32 32, %s15
          %p2332 = scmp.lt.s32.totalorder %s2331, 63
          %s2333 = scalar_select %p2332, %s2331, 63
          %s2334 = smul.addr %s2333, 4
          %s2335 = scalar_lea.vmem %s3, %s2334
        $region67: #{conv_transpose_net.3} parent=62 // pred_fallthru
          _
      $region63: #{conv_transpose_net.3} parent=5 // pred_fallthru
        _
    $region6: #{conv_transpose_net.3} parent=1 // loop_footer
      %s13 = sadd.s32 1, %s9
    $region7: #{conv_transpose_net.3} parent=1 // loop_footer_branch
      %8 = sbr.rel target = $region3
    $region8: #{conv_transpose_net.3} parent=1 // loop_exit
      _

</llo_original>
